<compile_context>
chip_gen: v5e
topology: v5e:2x2
jax: 0.10.0
libtpu: 0.0.40
codegen_flags: <defaults>
</compile_context>

<pallas_src>
import math
import jax
import jax.numpy as jnp
from jax import lax
from jax.experimental import pallas as pl
from jax.experimental.pallas import tpu as pltpu


# ----------------------------- kernel helpers -----------------------------

def _layernorm(x, w, b, eps=1e-6):
    # x: (N, C); w, b: (1, C); f32 math
    mu = jnp.mean(x, axis=-1, keepdims=True)
    xc = x - mu
    var = jnp.mean(xc * xc, axis=-1, keepdims=True)
    return xc * lax.rsqrt(var + eps) * w + b


def _gelu_exact(x):
    # nn.GELU() default: exact (erf-based) GELU
    return 0.5 * x * (1.0 + lax.erf(x * (1.0 / math.sqrt(2.0))))


# ------------------------------ fused kernel ------------------------------

def make_block_kernel(num_heads, H, W, N, C):
    hd = C // num_heads
    scale = 1.0 / math.sqrt(hd)
    bf16 = jnp.bfloat16

    # row layout of the packed small-parameter array (18, C)
    ROW_TAP0 = 0                       # rows 0..8 : depthwise 3x3 taps (kh*3+kw)
    ROW_LN1W, ROW_LN1B = 9, 10
    ROW_UPNW, ROW_UPNB = 11, 12
    ROW_LN2W, ROW_LN2B = 13, 14
    ROW_BPROJ = 15
    ROW_BDW = 16
    ROW_B2 = 17

    def row(ref, i):
        return ref[i:i + 1, :]         # (1, C)

    def kernel(x_ref, qkvw_ref, qkvb_ref, wproj3_ref, wprojF_ref,
               w1_ref, b1_ref, w2_ref, smallp_ref,
               out_ref, attn_ref, pad_ref):
        x = x_ref[0]                                   # (N, C) f32

        # ---- norm1 ----
        xn = _layernorm(x, row(smallp_ref, ROW_LN1W), row(smallp_ref, ROW_LN1B))
        xn_bf = xn.astype(bf16)

        # ---- multi-head attention; proj folded per head (MXU, bf16 operands) ----
        acc = jnp.zeros((N, C), jnp.float32)           # (x_attn @ Wproj) accumulator
        v_parts = []
        for h in range(num_heads):
            qh = jnp.dot(xn_bf, qkvw_ref[0, h],
                         preferred_element_type=jnp.float32) + qkvb_ref[0, h]
            kh = jnp.dot(xn_bf, qkvw_ref[1, h],
                         preferred_element_type=jnp.float32) + qkvb_ref[1, h]
            vh = jnp.dot(xn_bf, qkvw_ref[2, h],
                         preferred_element_type=jnp.float32) + qkvb_ref[2, h]
            v_parts.append(vh)

            # scores: q @ k^T via dot_general (no explicit transpose)
            s = lax.dot_general(qh.astype(bf16), kh.astype(bf16),
                                (((1,), (1,)), ((), ())),
                                preferred_element_type=jnp.float32) * scale
            s = s - jnp.max(s, axis=-1, keepdims=True)
            e = jnp.exp(s)
            p = e * pl.reciprocal(jnp.sum(e, axis=-1, keepdims=True), approx=True)

            # lane-dense bf16 attention slab: columns [h*N, (h+1)*N) of (N, heads*N)
            attn_ref[0, :, h * N:(h + 1) * N] = p.astype(bf16)

            po = jnp.dot(p.astype(bf16), vh.astype(bf16),
                         preferred_element_type=jnp.float32)          # (N, hd)
            acc = acc + jnp.dot(po.astype(bf16), wproj3_ref[h],
                                preferred_element_type=jnp.float32)   # (N, C)

        # ---- identity branch: v -> HWC image -> depthwise 3x3 conv -> up_norm ----
        v_full = jnp.concatenate(v_parts, axis=-1)     # (N, C), head-major channels
        img = v_full.reshape(H, W, C)

        pad_ref[...] = jnp.zeros((H + 2, W + 2, C), jnp.float32)
        pad_ref[1:H + 1, 1:W + 1, :] = img

        # bias folded into the first tap accumulation
        conv = (pad_ref[0:H, 0:W, :] * row(smallp_ref, ROW_TAP0)
                + row(smallp_ref, ROW_BDW))
        for i in range(1, 9):
            dh, dw = i // 3, i % 3
            conv = conv + pad_ref[dh:dh + H, dw:dw + W, :] * row(smallp_ref, ROW_TAP0 + i)

        identity = conv.reshape(N, C)
        id_n = _layernorm(identity, row(smallp_ref, ROW_UPNW), row(smallp_ref, ROW_UPNB))

        # ---- proj: (x_attn + id_n) @ Wproj + bproj ----
        attn_out = (acc
                    + jnp.dot(id_n.astype(bf16), wprojF_ref[...],
                              preferred_element_type=jnp.float32)
                    + row(smallp_ref, ROW_BPROJ))

        # ---- residual + MLP (norm2 -> fc1 -> GELU -> fc2) + residual ----
        x1 = x + attn_out
        x2 = _layernorm(x1, row(smallp_ref, ROW_LN2W), row(smallp_ref, ROW_LN2B))
        hmid = _gelu_exact(jnp.dot(x2.astype(bf16), w1_ref[...],
                                   preferred_element_type=jnp.float32) + b1_ref[...])
        mlp = jnp.dot(hmid.astype(bf16), w2_ref[...],
                      preferred_element_type=jnp.float32) + row(smallp_ref, ROW_B2)
        out_ref[0] = x1 + mlp

    return kernel


# -------------------------------- wrapper ---------------------------------

def block_with_restrict(x, params, H, W, num_heads):
    (ln1_w, ln1_b, wq, bq, wkv, bkv, w_dw, b_dw, upn_w, upn_b,
     wproj, bproj, ln2_w, ln2_b, w1, b1, w2, b2) = params
    B, N, C = x.shape
    assert N == H * W
    hd = C // num_heads
    bf16 = jnp.bfloat16

    # split Wkv -> Wk, Wv in the wrapper (avoids unaligned lane slice in-kernel)
    wk, wv = wkv[:, :C], wkv[:, C:]
    bk, bv = bkv[:, :C], bkv[:, C:]

    def per_head_w(w):     # (C, C) -> (heads, C, hd)
        return w.reshape(C, num_heads, hd).transpose(1, 0, 2)

    def per_head_b(b):     # (1, C) -> (heads, 1, hd)
        return b.reshape(num_heads, 1, hd)

    qkvw = jnp.stack([per_head_w(wq), per_head_w(wk), per_head_w(wv)], axis=0).astype(bf16)
    qkvb = jnp.stack([per_head_b(bq), per_head_b(bk), per_head_b(bv)], axis=0).astype(jnp.float32)
    wproj3 = wproj.reshape(num_heads, hd, C).astype(bf16)   # row-slices of Wproj per head
    wprojF = wproj.astype(bf16)
    w1_bf = w1.astype(bf16)
    w2_bf = w2.astype(bf16)
    # packed small params: rows 0-8 conv taps, 9 ln1w, 10 ln1b, 11 upnw, 12 upnb,
    #                      13 ln2w, 14 ln2b, 15 bproj, 16 b_dw, 17 b2
    smallp = jnp.concatenate(
        [w_dw, ln1_w, ln1_b, upn_w, upn_b, ln2_w, ln2_b, bproj, b_dw, b2],
        axis=0).astype(jnp.float32)

    kernel = make_block_kernel(num_heads, H, W, N, C)

    def full_spec(shape):
        nd = len(shape)
        return pl.BlockSpec(shape, lambda b, _nd=nd: (0,) * _nd)

    weights = [qkvw, qkvb, wproj3, wprojF, w1_bf, b1, w2_bf, smallp]
    in_specs = [pl.BlockSpec((1, N, C), lambda b: (b, 0, 0))]
    in_specs += [full_spec(w.shape) for w in weights]

    out_specs = [pl.BlockSpec((1, N, C), lambda b: (b, 0, 0)),
                 pl.BlockSpec((1, N, num_heads * N), lambda b: (b, 0, 0))]
    out_shape = [jax.ShapeDtypeStruct((B, N, C), jnp.float32),
                 jax.ShapeDtypeStruct((B, N, num_heads * N), bf16)]

    out, attn = pl.pallas_call(
        kernel,
        grid=(B,),
        in_specs=in_specs,
        out_specs=out_specs,
        out_shape=out_shape,
        scratch_shapes=[pltpu.VMEM((H + 2, W + 2, C), jnp.float32)],
        compiler_params=pltpu.CompilerParams(
            dimension_semantics=("parallel",)),
    )(x, *weights)

    # kernel emits [q, (h, k)]; reorder to PyTorch's flat [h, q, k] outside the kernel
    attn_vector = (attn.reshape(B, N, num_heads, N)
                       .transpose(0, 2, 1, 3)
                       .reshape(B, 1, num_heads * N * N))
    return out, attn_vector


# ------------------------- pure-JAX reference (check) ----------------------

def _ref_block(x, params, H, W, num_heads):
    (ln1_w, ln1_b, wq, bq, wkv, bkv, w_dw, b_dw, upn_w, upn_b,
     wproj, bproj, ln2_w, ln2_b, w1, b1, w2, b2) = params
    B, N, C = x.shape
    hd = C // num_heads
    scale = 1.0 / math.sqrt(hd)

    def ln(v, w, b):
        mu = jnp.mean(v, -1, keepdims=True)
        var = jnp.mean((v - mu) ** 2, -1, keepdims=True)
        return (v - mu) / jnp.sqrt(var + 1e-6) * w + b

    xn = ln(x, ln1_w, ln1_b)
    q = xn @ wq + bq
    kv = xn @ wkv + bkv
    k, v = kv[..., :C], kv[..., C:]
    qh = q.reshape(B, N, num_heads, hd).transpose(0, 2, 1, 3)
    kh = k.reshape(B, N, num_heads, hd).transpose(0, 2, 1, 3)
    vh = v.reshape(B, N, num_heads, hd).transpose(0, 2, 1, 3)
    attn = jax.nn.softmax(jnp.einsum('bhqd,bhkd->bhqk', qh, kh) * scale, axis=-1)
    attn_vec = attn.reshape(B, 1, num_heads * N * N)
    x_attn = jnp.einsum('bhqk,bhkd->bhqd', attn, vh).transpose(0, 2, 1, 3).reshape(B, N, C)

    img = v.reshape(B, H, W, C)
    padded = jnp.pad(img, ((0, 0), (1, 1), (1, 1), (0, 0)))
    conv = jnp.zeros((B, H, W, C)) + b_dw
    for dh in range(3):
        for dw in range(3):
            conv = conv + padded[:, dh:dh + H, dw:dw + W, :] * w_dw[dh * 3 + dw]
    identity = conv.reshape(B, N, C)
    id_n = ln(identity, upn_w, upn_b)

    attn_out = (x_attn + id_n) @ wproj + bproj
    x1 = x + attn_out
    x2 = ln(x1, ln2_w, ln2_b)
    mlp = jax.nn.gelu(x2 @ w1 + b1, approximate=False) @ w2 + b2
    return x1 + mlp, attn_vec


# ---------------------------------- main -----------------------------------

if __name__ == "__main__":
    B, dim, num_heads, H, W = 2, 32, 4, 8, 8
    N = H * W
    key = jax.random.PRNGKey(0)
    ks = jax.random.split(key, 20)

    def nrm(k, shape, s=0.02):
        return jax.random.normal(k, shape, jnp.float32) * s

    x = jax.random.normal(ks[0], (B, N, dim), jnp.float32)

    params = [
        1.0 + nrm(ks[1], (1, dim)),            # ln1 weight
        nrm(ks[2], (1, dim)),                  # ln1 bias
        nrm(ks[3], (dim, dim)),                # Wq   (in, out)
        nrm(ks[4], (1, dim)),                  # bq
        nrm(ks[5], (dim, 2 * dim)),            # Wkv  (in, 2*out) -> [k | v]
        nrm(ks[6], (1, 2 * dim)),              # bkv
        nrm(ks[7], (9, dim)),                  # depthwise 3x3 taps (row = kh*3+kw)
        nrm(ks[8], (1, dim)),                  # depthwise bias
        1.0 + nrm(ks[9], (1, dim)),            # up_norm weight
        nrm(ks[10], (1, dim)),                 # up_norm bias
        nrm(ks[11], (dim, dim)),               # Wproj
        nrm(ks[12], (1, dim)),                 # bproj
        1.0 + nrm(ks[13], (1, dim)),           # ln2 weight
        nrm(ks[14], (1, dim)),                 # ln2 bias
        nrm(ks[15], (dim, 4 * dim)),           # fc1 W
        nrm(ks[16], (1, 4 * dim)),             # fc1 b
        nrm(ks[17], (4 * dim, dim)),           # fc2 W
        nrm(ks[18], (1, dim)),                 # fc2 b
    ]

    out, attn_vector = block_with_restrict(x, params, H, W, num_heads)
    out = jax.block_until_ready(out)
    attn_vector = jax.block_until_ready(attn_vector)

    ref_out, ref_attn = _ref_block(x, params, H, W, num_heads)
    assert out.shape == (B, N, dim)
    assert attn_vector.shape == (B, 1, num_heads * N * N)
    # bf16 MXU operands + bf16 attention output + approx reciprocal -> slightly looser
    # tolerances than pure-f32 (accumulation is still f32).
    assert jnp.allclose(out, ref_out, atol=1e-2, rtol=1e-2)
    assert jnp.allclose(attn_vector.astype(jnp.float32), ref_attn, atol=2e-3, rtol=1e-2)

    print("KERNEL_OK")
</pallas_src>

<mosaic_0001>
module attributes {stable_mosaic.version = 11 : i64} {
  func.func @kernel(%arg0: i32, %arg1: memref<1x64x32xf32, #tpu.memory_space<vmem>>, %arg2: memref<3x4x32x8xbf16, #tpu.memory_space<vmem>>, %arg3: memref<3x4x1x8xf32, #tpu.memory_space<vmem>>, %arg4: memref<4x8x32xbf16, #tpu.memory_space<vmem>>, %arg5: memref<32x32xbf16, #tpu.memory_space<vmem>>, %arg6: memref<32x128xbf16, #tpu.memory_space<vmem>>, %arg7: memref<1x128xf32, #tpu.memory_space<vmem>>, %arg8: memref<128x32xbf16, #tpu.memory_space<vmem>>, %arg9: memref<18x32xf32, #tpu.memory_space<vmem>>, %arg10: memref<1x64x32xf32, #tpu.memory_space<vmem>>, %arg11: memref<1x64x256xbf16, #tpu.memory_space<vmem>>, %arg12: memref<10x10x32xf32, #tpu.memory_space<vmem>>) attributes {dimension_semantics = [#tpu.dimension_semantics<parallel>], iteration_bounds = array<i64: 2>, scalar_prefetch = 0 : i64, scratch_operands = 1 : i64, tpu.core_type = #tpu.core_type<tc>, window_params = [{transform_indices = @transform_0, window_bounds = array<i64: 1, 64, 32>}, {pipeline_mode = #tpu.pipeline_mode<synchronous>, transform_indices = @transform_1, window_bounds = array<i64: 3, 4, 32, 8>}, {pipeline_mode = #tpu.pipeline_mode<synchronous>, transform_indices = @transform_2, window_bounds = array<i64: 3, 4, 1, 8>}, {pipeline_mode = #tpu.pipeline_mode<synchronous>, transform_indices = @transform_3, window_bounds = array<i64: 4, 8, 32>}, {pipeline_mode = #tpu.pipeline_mode<synchronous>, transform_indices = @transform_4, window_bounds = array<i64: 32, 32>}, {pipeline_mode = #tpu.pipeline_mode<synchronous>, transform_indices = @transform_5, window_bounds = array<i64: 32, 128>}, {pipeline_mode = #tpu.pipeline_mode<synchronous>, transform_indices = @transform_6, window_bounds = array<i64: 1, 128>}, {pipeline_mode = #tpu.pipeline_mode<synchronous>, transform_indices = @transform_7, window_bounds = array<i64: 128, 32>}, {pipeline_mode = #tpu.pipeline_mode<synchronous>, transform_indices = @transform_8, window_bounds = array<i64: 18, 32>}, {transform_indices = @transform_9, window_bounds = array<i64: 1, 64, 32>}, {transform_indices = @transform_10, window_bounds = array<i64: 1, 64, 256>}]} {
    %c0 = arith.constant 0 : index
    %c0_0 = arith.constant 0 : index
    %c0_1 = arith.constant 0 : index
    %0 = vector.load %arg1[%c0, %c0_0, %c0_1] : memref<1x64x32xf32, #tpu.memory_space<vmem>>, vector<1x64x32xf32>
    %1 = vector.shape_cast %0 : vector<1x64x32xf32> to vector<64x32xf32>
    %c9 = arith.constant 9 : index
    %c0_2 = arith.constant 0 : index
    %2 = vector.load %arg9[%c9, %c0_2] : memref<18x32xf32, #tpu.memory_space<vmem>>, vector<1x32xf32>
    %c10 = arith.constant 10 : index
    %c0_3 = arith.constant 0 : index
    %3 = vector.load %arg9[%c10, %c0_3] : memref<18x32xf32, #tpu.memory_space<vmem>>, vector<1x32xf32>
    %cst = arith.constant dense<0.000000e+00> : vector<64xf32>
    %4 = vector.multi_reduction <add>, %1, %cst [1] : vector<64x32xf32> to vector<64xf32>
    %5 = vector.shape_cast %4 : vector<64xf32> to vector<64x1xf32>
    %cst_4 = arith.constant 3.200000e+01 : f32
    %6 = vector.broadcast %cst_4 : f32 to vector<64x1xf32>
    %7 = arith.divf %5, %6 : vector<64x1xf32>
    %8 = vector.broadcast %7 : vector<64x1xf32> to vector<64x32xf32>
    %9 = arith.subf %1, %8 : vector<64x32xf32>
    %10 = arith.mulf %9, %9 : vector<64x32xf32>
    %cst_5 = arith.constant dense<0.000000e+00> : vector<64xf32>
    %11 = vector.multi_reduction <add>, %10, %cst_5 [1] : vector<64x32xf32> to vector<64xf32>
    %12 = vector.shape_cast %11 : vector<64xf32> to vector<64x1xf32>
    %cst_6 = arith.constant 3.200000e+01 : f32
    %13 = vector.broadcast %cst_6 : f32 to vector<64x1xf32>
    %14 = arith.divf %12, %13 : vector<64x1xf32>
    %cst_7 = arith.constant 9.99999997E-7 : f32
    %15 = vector.broadcast %cst_7 : f32 to vector<64x1xf32>
    %16 = arith.addf %14, %15 : vector<64x1xf32>
    %17 = math.rsqrt %16 : vector<64x1xf32>
    %18 = vector.broadcast %17 : vector<64x1xf32> to vector<64x32xf32>
    %19 = arith.mulf %9, %18 : vector<64x32xf32>
    %20 = vector.broadcast %2 : vector<1x32xf32> to vector<64x32xf32>
    %21 = arith.mulf %19, %20 : vector<64x32xf32>
    %22 = vector.broadcast %3 : vector<1x32xf32> to vector<64x32xf32>
    %23 = arith.addf %21, %22 : vector<64x32xf32>
    %24 = arith.truncf %23 : vector<64x32xf32> to vector<64x32xbf16>
    %cst_8 = arith.constant 0.000000e+00 : f32
    %25 = vector.broadcast %cst_8 : f32 to vector<64x32xf32>
    %c0_9 = arith.constant 0 : index
    %c0_10 = arith.constant 0 : index
    %c0_11 = arith.constant 0 : index
    %c0_12 = arith.constant 0 : index
    %26 = vector.load %arg2[%c0_9, %c0_10, %c0_11, %c0_12] : memref<3x4x32x8xbf16, #tpu.memory_space<vmem>>, vector<1x1x32x8xbf16>
    %27 = vector.shape_cast %26 : vector<1x1x32x8xbf16> to vector<32x8xbf16>
    %cst_13 = arith.constant dense<0.000000e+00> : vector<64x8xf32>
    %28 = tpu.matmul %24, %27, %cst_13 {dimension_numbers = #tpu.dot_dimension_numbers<[1], [0], [0], [1], [0, 0, 1, 1], [], []>} : vector<64x32xbf16>, vector<32x8xbf16>, vector<64x8xf32> -> vector<64x8xf32>
    %c0_14 = arith.constant 0 : index
    %c0_15 = arith.constant 0 : index
    %c0_16 = arith.constant 0 : index
    %c0_17 = arith.constant 0 : index
    %29 = vector.load %arg3[%c0_14, %c0_15, %c0_16, %c0_17] : memref<3x4x1x8xf32, #tpu.memory_space<vmem>>, vector<1x1x1x8xf32>
    %30 = vector.shape_cast %29 : vector<1x1x1x8xf32> to vector<1x8xf32>
    %31 = vector.broadcast %30 : vector<1x8xf32> to vector<64x8xf32>
    %32 = arith.addf %28, %31 : vector<64x8xf32>
    %c1 = arith.constant 1 : index
    %c0_18 = arith.constant 0 : index
    %c0_19 = arith.constant 0 : index
    %c0_20 = arith.constant 0 : index
    %33 = vector.load %arg2[%c1, %c0_18, %c0_19, %c0_20] : memref<3x4x32x8xbf16, #tpu.memory_space<vmem>>, vector<1x1x32x8xbf16>
    %34 = vector.shape_cast %33 : vector<1x1x32x8xbf16> to vector<32x8xbf16>
    %cst_21 = arith.constant dense<0.000000e+00> : vector<64x8xf32>
    %35 = tpu.matmul %24, %34, %cst_21 {dimension_numbers = #tpu.dot_dimension_numbers<[1], [0], [0], [1], [0, 0, 1, 1], [], []>} : vector<64x32xbf16>, vector<32x8xbf16>, vector<64x8xf32> -> vector<64x8xf32>
    %c1_22 = arith.constant 1 : index
    %c0_23 = arith.constant 0 : index
    %c0_24 = arith.constant 0 : index
    %c0_25 = arith.constant 0 : index
    %36 = vector.load %arg3[%c1_22, %c0_23, %c0_24, %c0_25] : memref<3x4x1x8xf32, #tpu.memory_space<vmem>>, vector<1x1x1x8xf32>
    %37 = vector.shape_cast %36 : vector<1x1x1x8xf32> to vector<1x8xf32>
    %38 = vector.broadcast %37 : vector<1x8xf32> to vector<64x8xf32>
    %39 = arith.addf %35, %38 : vector<64x8xf32>
    %c2 = arith.constant 2 : index
    %c0_26 = arith.constant 0 : index
    %c0_27 = arith.constant 0 : index
    %c0_28 = arith.constant 0 : index
    %40 = vector.load %arg2[%c2, %c0_26, %c0_27, %c0_28] : memref<3x4x32x8xbf16, #tpu.memory_space<vmem>>, vector<1x1x32x8xbf16>
    %41 = vector.shape_cast %40 : vector<1x1x32x8xbf16> to vector<32x8xbf16>
    %cst_29 = arith.constant dense<0.000000e+00> : vector<64x8xf32>
    %42 = tpu.matmul %24, %41, %cst_29 {dimension_numbers = #tpu.dot_dimension_numbers<[1], [0], [0], [1], [0, 0, 1, 1], [], []>} : vector<64x32xbf16>, vector<32x8xbf16>, vector<64x8xf32> -> vector<64x8xf32>
    %c2_30 = arith.constant 2 : index
    %c0_31 = arith.constant 0 : index
    %c0_32 = arith.constant 0 : index
    %c0_33 = arith.constant 0 : index
    %43 = vector.load %arg3[%c2_30, %c0_31, %c0_32, %c0_33] : memref<3x4x1x8xf32, #tpu.memory_space<vmem>>, vector<1x1x1x8xf32>
    %44 = vector.shape_cast %43 : vector<1x1x1x8xf32> to vector<1x8xf32>
    %45 = vector.broadcast %44 : vector<1x8xf32> to vector<64x8xf32>
    %46 = arith.addf %42, %45 : vector<64x8xf32>
    %47 = arith.truncf %32 : vector<64x8xf32> to vector<64x8xbf16>
    %48 = arith.truncf %39 : vector<64x8xf32> to vector<64x8xbf16>
    %cst_34 = arith.constant dense<0.000000e+00> : vector<64x64xf32>
    %49 = tpu.matmul %47, %48, %cst_34 {dimension_numbers = #tpu.dot_dimension_numbers<[1], [1], [0], [0], [0, 0, 1, 0], [], []>} : vector<64x8xbf16>, vector<64x8xbf16>, vector<64x64xf32> -> vector<64x64xf32>
    %cst_35 = arith.constant 0.353553385 : f32
    %50 = vector.broadcast %cst_35 : f32 to vector<64x64xf32>
    %51 = arith.mulf %49, %50 : vector<64x64xf32>
    %cst_36 = arith.constant dense<0xFF800000> : vector<64xf32>
    %52 = vector.multi_reduction <maximumf>, %51, %cst_36 [1] : vector<64x64xf32> to vector<64xf32>
    %53 = vector.shape_cast %52 : vector<64xf32> to vector<64x1xf32>
    %54 = vector.broadcast %53 : vector<64x1xf32> to vector<64x64xf32>
    %55 = arith.subf %51, %54 : vector<64x64xf32>
    %56 = math.exp %55 : vector<64x64xf32>
    %cst_37 = arith.constant dense<0.000000e+00> : vector<64xf32>
    %57 = vector.multi_reduction <add>, %56, %cst_37 [1] : vector<64x64xf32> to vector<64xf32>
    %58 = vector.shape_cast %57 : vector<64xf32> to vector<64x1xf32>
    %59 = tpu.reciprocal %58 {approx = true} : vector<64x1xf32> -> vector<64x1xf32>
    %60 = vector.broadcast %59 : vector<64x1xf32> to vector<64x64xf32>
    %61 = arith.mulf %56, %60 : vector<64x64xf32>
    %62 = arith.truncf %61 : vector<64x64xf32> to vector<64x64xbf16>
    %c0_38 = arith.constant 0 : index
    %c0_39 = arith.constant 0 : index
    %c0_40 = arith.constant 0 : index
    %63 = vector.load %arg11[%c0_38, %c0_39, %c0_40] : memref<1x64x256xbf16, #tpu.memory_space<vmem>>, vector<1x64x64xbf16>
    %64 = vector.shape_cast %63 : vector<1x64x64xbf16> to vector<64x64xbf16>
    %65 = vector.shape_cast %62 : vector<64x64xbf16> to vector<1x64x64xbf16>
    tpu.vector_store %arg11[%c0_38, %c0_39, %c0_40], %65 {strides = array<i32>} : memref<1x64x256xbf16, #tpu.memory_space<vmem>>, vector<1x64x64xbf16>,
    %66 = arith.truncf %61 : vector<64x64xf32> to vector<64x64xbf16>
    %67 = arith.truncf %46 : vector<64x8xf32> to vector<64x8xbf16>
    %cst_41 = arith.constant dense<0.000000e+00> : vector<64x8xf32>
    %68 = tpu.matmul %66, %67, %cst_41 {dimension_numbers = #tpu.dot_dimension_numbers<[1], [0], [0], [1], [0, 0, 1, 1], [], []>} : vector<64x64xbf16>, vector<64x8xbf16>, vector<64x8xf32> -> vector<64x8xf32>
    %69 = arith.truncf %68 : vector<64x8xf32> to vector<64x8xbf16>
    %c0_42 = arith.constant 0 : index
    %c0_43 = arith.constant 0 : index
    %c0_44 = arith.constant 0 : index
    %70 = vector.load %arg4[%c0_42, %c0_43, %c0_44] : memref<4x8x32xbf16, #tpu.memory_space<vmem>>, vector<1x8x32xbf16>
    %71 = vector.shape_cast %70 : vector<1x8x32xbf16> to vector<8x32xbf16>
    %cst_45 = arith.constant dense<0.000000e+00> : vector<64x32xf32>
    %72 = tpu.matmul %69, %71, %cst_45 {dimension_numbers = #tpu.dot_dimension_numbers<[1], [0], [0], [1], [0, 0, 1, 1], [], []>} : vector<64x8xbf16>, vector<8x32xbf16>, vector<64x32xf32> -> vector<64x32xf32>
    %73 = arith.addf %25, %72 : vector<64x32xf32>
    %c0_46 = arith.constant 0 : index
    %c1_47 = arith.constant 1 : index
    %c0_48 = arith.constant 0 : index
    %c0_49 = arith.constant 0 : index
    %74 = vector.load %arg2[%c0_46, %c1_47, %c0_48, %c0_49] : memref<3x4x32x8xbf16, #tpu.memory_space<vmem>>, vector<1x1x32x8xbf16>
    %75 = vector.shape_cast %74 : vector<1x1x32x8xbf16> to vector<32x8xbf16>
    %cst_50 = arith.constant dense<0.000000e+00> : vector<64x8xf32>
    %76 = tpu.matmul %24, %75, %cst_50 {dimension_numbers = #tpu.dot_dimension_numbers<[1], [0], [0], [1], [0, 0, 1, 1], [], []>} : vector<64x32xbf16>, vector<32x8xbf16>, vector<64x8xf32> -> vector<64x8xf32>
    %c0_51 = arith.constant 0 : index
    %c1_52 = arith.constant 1 : index
    %c0_53 = arith.constant 0 : index
    %c0_54 = arith.constant 0 : index
    %77 = vector.load %arg3[%c0_51, %c1_52, %c0_53, %c0_54] : memref<3x4x1x8xf32, #tpu.memory_space<vmem>>, vector<1x1x1x8xf32>
    %78 = vector.shape_cast %77 : vector<1x1x1x8xf32> to vector<1x8xf32>
    %79 = vector.broadcast %78 : vector<1x8xf32> to vector<64x8xf32>
    %80 = arith.addf %76, %79 : vector<64x8xf32>
    %c1_55 = arith.constant 1 : index
    %c1_56 = arith.constant 1 : index
    %c0_57 = arith.constant 0 : index
    %c0_58 = arith.constant 0 : index
    %81 = vector.load %arg2[%c1_55, %c1_56, %c0_57, %c0_58] : memref<3x4x32x8xbf16, #tpu.memory_space<vmem>>, vector<1x1x32x8xbf16>
    %82 = vector.shape_cast %81 : vector<1x1x32x8xbf16> to vector<32x8xbf16>
    %cst_59 = arith.constant dense<0.000000e+00> : vector<64x8xf32>
    %83 = tpu.matmul %24, %82, %cst_59 {dimension_numbers = #tpu.dot_dimension_numbers<[1], [0], [0], [1], [0, 0, 1, 1], [], []>} : vector<64x32xbf16>, vector<32x8xbf16>, vector<64x8xf32> -> vector<64x8xf32>
    %c1_60 = arith.constant 1 : index
    %c1_61 = arith.constant 1 : index
    %c0_62 = arith.constant 0 : index
    %c0_63 = arith.constant 0 : index
    %84 = vector.load %arg3[%c1_60, %c1_61, %c0_62, %c0_63] : memref<3x4x1x8xf32, #tpu.memory_space<vmem>>, vector<1x1x1x8xf32>
    %85 = vector.shape_cast %84 : vector<1x1x1x8xf32> to vector<1x8xf32>
    %86 = vector.broadcast %85 : vector<1x8xf32> to vector<64x8xf32>
    %87 = arith.addf %83, %86 : vector<64x8xf32>
    %c2_64 = arith.constant 2 : index
    %c1_65 = arith.constant 1 : index
    %c0_66 = arith.constant 0 : index
    %c0_67 = arith.constant 0 : index
    %88 = vector.load %arg2[%c2_64, %c1_65, %c0_66, %c0_67] : memref<3x4x32x8xbf16, #tpu.memory_space<vmem>>, vector<1x1x32x8xbf16>
    %89 = vector.shape_cast %88 : vector<1x1x32x8xbf16> to vector<32x8xbf16>
    %cst_68 = arith.constant dense<0.000000e+00> : vector<64x8xf32>
    %90 = tpu.matmul %24, %89, %cst_68 {dimension_numbers = #tpu.dot_dimension_numbers<[1], [0], [0], [1], [0, 0, 1, 1], [], []>} : vector<64x32xbf16>, vector<32x8xbf16>, vector<64x8xf32> -> vector<64x8xf32>
    %c2_69 = arith.constant 2 : index
    %c1_70 = arith.constant 1 : index
    %c0_71 = arith.constant 0 : index
    %c0_72 = arith.constant 0 : index
    %91 = vector.load %arg3[%c2_69, %c1_70, %c0_71, %c0_72] : memref<3x4x1x8xf32, #tpu.memory_space<vmem>>, vector<1x1x1x8xf32>
    %92 = vector.shape_cast %91 : vector<1x1x1x8xf32> to vector<1x8xf32>
    %93 = vector.broadcast %92 : vector<1x8xf32> to vector<64x8xf32>
    %94 = arith.addf %90, %93 : vector<64x8xf32>
    %95 = arith.truncf %80 : vector<64x8xf32> to vector<64x8xbf16>
    %96 = arith.truncf %87 : vector<64x8xf32> to vector<64x8xbf16>
    %cst_73 = arith.constant dense<0.000000e+00> : vector<64x64xf32>
    %97 = tpu.matmul %95, %96, %cst_73 {dimension_numbers = #tpu.dot_dimension_numbers<[1], [1], [0], [0], [0, 0, 1, 0], [], []>} : vector<64x8xbf16>, vector<64x8xbf16>, vector<64x64xf32> -> vector<64x64xf32>
    %cst_74 = arith.constant 0.353553385 : f32
    %98 = vector.broadcast %cst_74 : f32 to vector<64x64xf32>
    %99 = arith.mulf %97, %98 : vector<64x64xf32>
    %cst_75 = arith.constant dense<0xFF800000> : vector<64xf32>
    %100 = vector.multi_reduction <maximumf>, %99, %cst_75 [1] : vector<64x64xf32> to vector<64xf32>
    %101 = vector.shape_cast %100 : vector<64xf32> to vector<64x1xf32>
    %102 = vector.broadcast %101 : vector<64x1xf32> to vector<64x64xf32>
    %103 = arith.subf %99, %102 : vector<64x64xf32>
    %104 = math.exp %103 : vector<64x64xf32>
    %cst_76 = arith.constant dense<0.000000e+00> : vector<64xf32>
    %105 = vector.multi_reduction <add>, %104, %cst_76 [1] : vector<64x64xf32> to vector<64xf32>
    %106 = vector.shape_cast %105 : vector<64xf32> to vector<64x1xf32>
    %107 = tpu.reciprocal %106 {approx = true} : vector<64x1xf32> -> vector<64x1xf32>
    %108 = vector.broadcast %107 : vector<64x1xf32> to vector<64x64xf32>
    %109 = arith.mulf %104, %108 : vector<64x64xf32>
    %110 = arith.truncf %109 : vector<64x64xf32> to vector<64x64xbf16>
    %c0_77 = arith.constant 0 : index
    %c0_78 = arith.constant 0 : index
    %c64 = arith.constant 64 : index
    %111 = vector.load %arg11[%c0_77, %c0_78, %c64] : memref<1x64x256xbf16, #tpu.memory_space<vmem>>, vector<1x64x64xbf16>
    %112 = vector.shape_cast %111 : vector<1x64x64xbf16> to vector<64x64xbf16>
    %113 = vector.shape_cast %110 : vector<64x64xbf16> to vector<1x64x64xbf16>
    tpu.vector_store %arg11[%c0_77, %c0_78, %c64], %113 {strides = array<i32>} : memref<1x64x256xbf16, #tpu.memory_space<vmem>>, vector<1x64x64xbf16>,
    %114 = arith.truncf %109 : vector<64x64xf32> to vector<64x64xbf16>
    %115 = arith.truncf %94 : vector<64x8xf32> to vector<64x8xbf16>
    %cst_79 = arith.constant dense<0.000000e+00> : vector<64x8xf32>
    %116 = tpu.matmul %114, %115, %cst_79 {dimension_numbers = #tpu.dot_dimension_numbers<[1], [0], [0], [1], [0, 0, 1, 1], [], []>} : vector<64x64xbf16>, vector<64x8xbf16>, vector<64x8xf32> -> vector<64x8xf32>
    %117 = arith.truncf %116 : vector<64x8xf32> to vector<64x8xbf16>
    %c1_80 = arith.constant 1 : index
    %c0_81 = arith.constant 0 : index
    %c0_82 = arith.constant 0 : index
    %118 = vector.load %arg4[%c1_80, %c0_81, %c0_82] : memref<4x8x32xbf16, #tpu.memory_space<vmem>>, vector<1x8x32xbf16>
    %119 = vector.shape_cast %118 : vector<1x8x32xbf16> to vector<8x32xbf16>
    %cst_83 = arith.constant dense<0.000000e+00> : vector<64x32xf32>
    %120 = tpu.matmul %117, %119, %cst_83 {dimension_numbers = #tpu.dot_dimension_numbers<[1], [0], [0], [1], [0, 0, 1, 1], [], []>} : vector<64x8xbf16>, vector<8x32xbf16>, vector<64x32xf32> -> vector<64x32xf32>
    %121 = arith.addf %73, %120 : vector<64x32xf32>
    %c0_84 = arith.constant 0 : index
    %c2_85 = arith.constant 2 : index
    %c0_86 = arith.constant 0 : index
    %c0_87 = arith.constant 0 : index
    %122 = vector.load %arg2[%c0_84, %c2_85, %c0_86, %c0_87] : memref<3x4x32x8xbf16, #tpu.memory_space<vmem>>, vector<1x1x32x8xbf16>
    %123 = vector.shape_cast %122 : vector<1x1x32x8xbf16> to vector<32x8xbf16>
    %cst_88 = arith.constant dense<0.000000e+00> : vector<64x8xf32>
    %124 = tpu.matmul %24, %123, %cst_88 {dimension_numbers = #tpu.dot_dimension_numbers<[1], [0], [0], [1], [0, 0, 1, 1], [], []>} : vector<64x32xbf16>, vector<32x8xbf16>, vector<64x8xf32> -> vector<64x8xf32>
    %c0_89 = arith.constant 0 : index
    %c2_90 = arith.constant 2 : index
    %c0_91 = arith.constant 0 : index
    %c0_92 = arith.constant 0 : index
    %125 = vector.load %arg3[%c0_89, %c2_90, %c0_91, %c0_92] : memref<3x4x1x8xf32, #tpu.memory_space<vmem>>, vector<1x1x1x8xf32>
    %126 = vector.shape_cast %125 : vector<1x1x1x8xf32> to vector<1x8xf32>
    %127 = vector.broadcast %126 : vector<1x8xf32> to vector<64x8xf32>
    %128 = arith.addf %124, %127 : vector<64x8xf32>
    %c1_93 = arith.constant 1 : index
    %c2_94 = arith.constant 2 : index
    %c0_95 = arith.constant 0 : index
    %c0_96 = arith.constant 0 : index
    %129 = vector.load %arg2[%c1_93, %c2_94, %c0_95, %c0_96] : memref<3x4x32x8xbf16, #tpu.memory_space<vmem>>, vector<1x1x32x8xbf16>
    %130 = vector.shape_cast %129 : vector<1x1x32x8xbf16> to vector<32x8xbf16>
    %cst_97 = arith.constant dense<0.000000e+00> : vector<64x8xf32>
    %131 = tpu.matmul %24, %130, %cst_97 {dimension_numbers = #tpu.dot_dimension_numbers<[1], [0], [0], [1], [0, 0, 1, 1], [], []>} : vector<64x32xbf16>, vector<32x8xbf16>, vector<64x8xf32> -> vector<64x8xf32>
    %c1_98 = arith.constant 1 : index
    %c2_99 = arith.constant 2 : index
    %c0_100 = arith.constant 0 : index
    %c0_101 = arith.constant 0 : index
    %132 = vector.load %arg3[%c1_98, %c2_99, %c0_100, %c0_101] : memref<3x4x1x8xf32, #tpu.memory_space<vmem>>, vector<1x1x1x8xf32>
    %133 = vector.shape_cast %132 : vector<1x1x1x8xf32> to vector<1x8xf32>
    %134 = vector.broadcast %133 : vector<1x8xf32> to vector<64x8xf32>
    %135 = arith.addf %131, %134 : vector<64x8xf32>
    %c2_102 = arith.constant 2 : index
    %c2_103 = arith.constant 2 : index
    %c0_104 = arith.constant 0 : index
    %c0_105 = arith.constant 0 : index
    %136 = vector.load %arg2[%c2_102, %c2_103, %c0_104, %c0_105] : memref<3x4x32x8xbf16, #tpu.memory_space<vmem>>, vector<1x1x32x8xbf16>
    %137 = vector.shape_cast %136 : vector<1x1x32x8xbf16> to vector<32x8xbf16>
    %cst_106 = arith.constant dense<0.000000e+00> : vector<64x8xf32>
    %138 = tpu.matmul %24, %137, %cst_106 {dimension_numbers = #tpu.dot_dimension_numbers<[1], [0], [0], [1], [0, 0, 1, 1], [], []>} : vector<64x32xbf16>, vector<32x8xbf16>, vector<64x8xf32> -> vector<64x8xf32>
    %c2_107 = arith.constant 2 : index
    %c2_108 = arith.constant 2 : index
    %c0_109 = arith.constant 0 : index
    %c0_110 = arith.constant 0 : index
    %139 = vector.load %arg3[%c2_107, %c2_108, %c0_109, %c0_110] : memref<3x4x1x8xf32, #tpu.memory_space<vmem>>, vector<1x1x1x8xf32>
    %140 = vector.shape_cast %139 : vector<1x1x1x8xf32> to vector<1x8xf32>
    %141 = vector.broadcast %140 : vector<1x8xf32> to vector<64x8xf32>
    %142 = arith.addf %138, %141 : vector<64x8xf32>
    %143 = arith.truncf %128 : vector<64x8xf32> to vector<64x8xbf16>
    %144 = arith.truncf %135 : vector<64x8xf32> to vector<64x8xbf16>
    %cst_111 = arith.constant dense<0.000000e+00> : vector<64x64xf32>
    %145 = tpu.matmul %143, %144, %cst_111 {dimension_numbers = #tpu.dot_dimension_numbers<[1], [1], [0], [0], [0, 0, 1, 0], [], []>} : vector<64x8xbf16>, vector<64x8xbf16>, vector<64x64xf32> -> vector<64x64xf32>
    %cst_112 = arith.constant 0.353553385 : f32
    %146 = vector.broadcast %cst_112 : f32 to vector<64x64xf32>
    %147 = arith.mulf %145, %146 : vector<64x64xf32>
    %cst_113 = arith.constant dense<0xFF800000> : vector<64xf32>
    %148 = vector.multi_reduction <maximumf>, %147, %cst_113 [1] : vector<64x64xf32> to vector<64xf32>
    %149 = vector.shape_cast %148 : vector<64xf32> to vector<64x1xf32>
    %150 = vector.broadcast %149 : vector<64x1xf32> to vector<64x64xf32>
    %151 = arith.subf %147, %150 : vector<64x64xf32>
    %152 = math.exp %151 : vector<64x64xf32>
    %cst_114 = arith.constant dense<0.000000e+00> : vector<64xf32>
    %153 = vector.multi_reduction <add>, %152, %cst_114 [1] : vector<64x64xf32> to vector<64xf32>
    %154 = vector.shape_cast %153 : vector<64xf32> to vector<64x1xf32>
    %155 = tpu.reciprocal %154 {approx = true} : vector<64x1xf32> -> vector<64x1xf32>
    %156 = vector.broadcast %155 : vector<64x1xf32> to vector<64x64xf32>
    %157 = arith.mulf %152, %156 : vector<64x64xf32>
    %158 = arith.truncf %157 : vector<64x64xf32> to vector<64x64xbf16>
    %c0_115 = arith.constant 0 : index
    %c0_116 = arith.constant 0 : index
    %c128 = arith.constant 128 : index
    %159 = vector.load %arg11[%c0_115, %c0_116, %c128] : memref<1x64x256xbf16, #tpu.memory_space<vmem>>, vector<1x64x64xbf16>
    %160 = vector.shape_cast %159 : vector<1x64x64xbf16> to vector<64x64xbf16>
    %161 = vector.shape_cast %158 : vector<64x64xbf16> to vector<1x64x64xbf16>
    tpu.vector_store %arg11[%c0_115, %c0_116, %c128], %161 {strides = array<i32>} : memref<1x64x256xbf16, #tpu.memory_space<vmem>>, vector<1x64x64xbf16>,
    %162 = arith.truncf %157 : vector<64x64xf32> to vector<64x64xbf16>
    %163 = arith.truncf %142 : vector<64x8xf32> to vector<64x8xbf16>
    %cst_117 = arith.constant dense<0.000000e+00> : vector<64x8xf32>
    %164 = tpu.matmul %162, %163, %cst_117 {dimension_numbers = #tpu.dot_dimension_numbers<[1], [0], [0], [1], [0, 0, 1, 1], [], []>} : vector<64x64xbf16>, vector<64x8xbf16>, vector<64x8xf32> -> vector<64x8xf32>
    %165 = arith.truncf %164 : vector<64x8xf32> to vector<64x8xbf16>
    %c2_118 = arith.constant 2 : index
    %c0_119 = arith.constant 0 : index
    %c0_120 = arith.constant 0 : index
    %166 = vector.load %arg4[%c2_118, %c0_119, %c0_120] : memref<4x8x32xbf16, #tpu.memory_space<vmem>>, vector<1x8x32xbf16>
    %167 = vector.shape_cast %166 : vector<1x8x32xbf16> to vector<8x32xbf16>
    %cst_121 = arith.constant dense<0.000000e+00> : vector<64x32xf32>
    %168 = tpu.matmul %165, %167, %cst_121 {dimension_numbers = #tpu.dot_dimension_numbers<[1], [0], [0], [1], [0, 0, 1, 1], [], []>} : vector<64x8xbf16>, vector<8x32xbf16>, vector<64x32xf32> -> vector<64x32xf32>
    %169 = arith.addf %121, %168 : vector<64x32xf32>
    %c0_122 = arith.constant 0 : index
    %c3 = arith.constant 3 : index
    %c0_123 = arith.constant 0 : index
    %c0_124 = arith.constant 0 : index
    %170 = vector.load %arg2[%c0_122, %c3, %c0_123, %c0_124] : memref<3x4x32x8xbf16, #tpu.memory_space<vmem>>, vector<1x1x32x8xbf16>
    %171 = vector.shape_cast %170 : vector<1x1x32x8xbf16> to vector<32x8xbf16>
    %cst_125 = arith.constant dense<0.000000e+00> : vector<64x8xf32>
    %172 = tpu.matmul %24, %171, %cst_125 {dimension_numbers = #tpu.dot_dimension_numbers<[1], [0], [0], [1], [0, 0, 1, 1], [], []>} : vector<64x32xbf16>, vector<32x8xbf16>, vector<64x8xf32> -> vector<64x8xf32>
    %c0_126 = arith.constant 0 : index
    %c3_127 = arith.constant 3 : index
    %c0_128 = arith.constant 0 : index
    %c0_129 = arith.constant 0 : index
    %173 = vector.load %arg3[%c0_126, %c3_127, %c0_128, %c0_129] : memref<3x4x1x8xf32, #tpu.memory_space<vmem>>, vector<1x1x1x8xf32>
    %174 = vector.shape_cast %173 : vector<1x1x1x8xf32> to vector<1x8xf32>
    %175 = vector.broadcast %174 : vector<1x8xf32> to vector<64x8xf32>
    %176 = arith.addf %172, %175 : vector<64x8xf32>
    %c1_130 = arith.constant 1 : index
    %c3_131 = arith.constant 3 : index
    %c0_132 = arith.constant 0 : index
    %c0_133 = arith.constant 0 : index
    %177 = vector.load %arg2[%c1_130, %c3_131, %c0_132, %c0_133] : memref<3x4x32x8xbf16, #tpu.memory_space<vmem>>, vector<1x1x32x8xbf16>
    %178 = vector.shape_cast %177 : vector<1x1x32x8xbf16> to vector<32x8xbf16>
    %cst_134 = arith.constant dense<0.000000e+00> : vector<64x8xf32>
    %179 = tpu.matmul %24, %178, %cst_134 {dimension_numbers = #tpu.dot_dimension_numbers<[1], [0], [0], [1], [0, 0, 1, 1], [], []>} : vector<64x32xbf16>, vector<32x8xbf16>, vector<64x8xf32> -> vector<64x8xf32>
    %c1_135 = arith.constant 1 : index
    %c3_136 = arith.constant 3 : index
    %c0_137 = arith.constant 0 : index
    %c0_138 = arith.constant 0 : index
    %180 = vector.load %arg3[%c1_135, %c3_136, %c0_137, %c0_138] : memref<3x4x1x8xf32, #tpu.memory_space<vmem>>, vector<1x1x1x8xf32>
    %181 = vector.shape_cast %180 : vector<1x1x1x8xf32> to vector<1x8xf32>
    %182 = vector.broadcast %181 : vector<1x8xf32> to vector<64x8xf32>
    %183 = arith.addf %179, %182 : vector<64x8xf32>
    %c2_139 = arith.constant 2 : index
    %c3_140 = arith.constant 3 : index
    %c0_141 = arith.constant 0 : index
    %c0_142 = arith.constant 0 : index
    %184 = vector.load %arg2[%c2_139, %c3_140, %c0_141, %c0_142] : memref<3x4x32x8xbf16, #tpu.memory_space<vmem>>, vector<1x1x32x8xbf16>
    %185 = vector.shape_cast %184 : vector<1x1x32x8xbf16> to vector<32x8xbf16>
    %cst_143 = arith.constant dense<0.000000e+00> : vector<64x8xf32>
    %186 = tpu.matmul %24, %185, %cst_143 {dimension_numbers = #tpu.dot_dimension_numbers<[1], [0], [0], [1], [0, 0, 1, 1], [], []>} : vector<64x32xbf16>, vector<32x8xbf16>, vector<64x8xf32> -> vector<64x8xf32>
    %c2_144 = arith.constant 2 : index
    %c3_145 = arith.constant 3 : index
    %c0_146 = arith.constant 0 : index
    %c0_147 = arith.constant 0 : index
    %187 = vector.load %arg3[%c2_144, %c3_145, %c0_146, %c0_147] : memref<3x4x1x8xf32, #tpu.memory_space<vmem>>, vector<1x1x1x8xf32>
    %188 = vector.shape_cast %187 : vector<1x1x1x8xf32> to vector<1x8xf32>
    %189 = vector.broadcast %188 : vector<1x8xf32> to vector<64x8xf32>
    %190 = arith.addf %186, %189 : vector<64x8xf32>
    %191 = arith.truncf %176 : vector<64x8xf32> to vector<64x8xbf16>
    %192 = arith.truncf %183 : vector<64x8xf32> to vector<64x8xbf16>
    %cst_148 = arith.constant dense<0.000000e+00> : vector<64x64xf32>
    %193 = tpu.matmul %191, %192, %cst_148 {dimension_numbers = #tpu.dot_dimension_numbers<[1], [1], [0], [0], [0, 0, 1, 0], [], []>} : vector<64x8xbf16>, vector<64x8xbf16>, vector<64x64xf32> -> vector<64x64xf32>
    %cst_149 = arith.constant 0.353553385 : f32
    %194 = vector.broadcast %cst_149 : f32 to vector<64x64xf32>
    %195 = arith.mulf %193, %194 : vector<64x64xf32>
    %cst_150 = arith.constant dense<0xFF800000> : vector<64xf32>
    %196 = vector.multi_reduction <maximumf>, %195, %cst_150 [1] : vector<64x64xf32> to vector<64xf32>
    %197 = vector.shape_cast %196 : vector<64xf32> to vector<64x1xf32>
    %198 = vector.broadcast %197 : vector<64x1xf32> to vector<64x64xf32>
    %199 = arith.subf %195, %198 : vector<64x64xf32>
    %200 = math.exp %199 : vector<64x64xf32>
    %cst_151 = arith.constant dense<0.000000e+00> : vector<64xf32>
    %201 = vector.multi_reduction <add>, %200, %cst_151 [1] : vector<64x64xf32> to vector<64xf32>
    %202 = vector.shape_cast %201 : vector<64xf32> to vector<64x1xf32>
    %203 = tpu.reciprocal %202 {approx = true} : vector<64x1xf32> -> vector<64x1xf32>
    %204 = vector.broadcast %203 : vector<64x1xf32> to vector<64x64xf32>
    %205 = arith.mulf %200, %204 : vector<64x64xf32>
    %206 = arith.truncf %205 : vector<64x64xf32> to vector<64x64xbf16>
    %c0_152 = arith.constant 0 : index
    %c0_153 = arith.constant 0 : index
    %c192 = arith.constant 192 : index
    %207 = vector.load %arg11[%c0_152, %c0_153, %c192] : memref<1x64x256xbf16, #tpu.memory_space<vmem>>, vector<1x64x64xbf16>
    %208 = vector.shape_cast %207 : vector<1x64x64xbf16> to vector<64x64xbf16>
    %209 = vector.shape_cast %206 : vector<64x64xbf16> to vector<1x64x64xbf16>
    tpu.vector_store %arg11[%c0_152, %c0_153, %c192], %209 {strides = array<i32>} : memref<1x64x256xbf16, #tpu.memory_space<vmem>>, vector<1x64x64xbf16>,
    %210 = arith.truncf %205 : vector<64x64xf32> to vector<64x64xbf16>
    %211 = arith.truncf %190 : vector<64x8xf32> to vector<64x8xbf16>
    %cst_154 = arith.constant dense<0.000000e+00> : vector<64x8xf32>
    %212 = tpu.matmul %210, %211, %cst_154 {dimension_numbers = #tpu.dot_dimension_numbers<[1], [0], [0], [1], [0, 0, 1, 1], [], []>} : vector<64x64xbf16>, vector<64x8xbf16>, vector<64x8xf32> -> vector<64x8xf32>
    %213 = arith.truncf %212 : vector<64x8xf32> to vector<64x8xbf16>
    %c3_155 = arith.constant 3 : index
    %c0_156 = arith.constant 0 : index
    %c0_157 = arith.constant 0 : index
    %214 = vector.load %arg4[%c3_155, %c0_156, %c0_157] : memref<4x8x32xbf16, #tpu.memory_space<vmem>>, vector<1x8x32xbf16>
    %215 = vector.shape_cast %214 : vector<1x8x32xbf16> to vector<8x32xbf16>
    %cst_158 = arith.constant dense<0.000000e+00> : vector<64x32xf32>
    %216 = tpu.matmul %213, %215, %cst_158 {dimension_numbers = #tpu.dot_dimension_numbers<[1], [0], [0], [1], [0, 0, 1, 1], [], []>} : vector<64x8xbf16>, vector<8x32xbf16>, vector<64x32xf32> -> vector<64x32xf32>
    %217 = arith.addf %169, %216 : vector<64x32xf32>
    %218 = tpu.concatenate %46, %94, %142, %190 in 1 : vector<64x8xf32>, vector<64x8xf32>, vector<64x8xf32>, vector<64x8xf32> -> vector<64x32xf32>
    %219 = vector.shape_cast %218 : vector<64x32xf32> to vector<8x8x32xf32>
    %cst_159 = arith.constant 0.000000e+00 : f32
    %220 = vector.broadcast %cst_159 : f32 to vector<10x10x32xf32>
    %c0_160 = arith.constant 0 : index
    %c0_161 = arith.constant 0 : index
    %c0_162 = arith.constant 0 : index
    %221 = vector.load %arg12[%c0_160, %c0_161, %c0_162] : memref<10x10x32xf32, #tpu.memory_space<vmem>>, vector<10x10x32xf32>
    tpu.vector_store %arg12[%c0_160, %c0_161, %c0_162], %220 {strides = array<i32>} : memref<10x10x32xf32, #tpu.memory_space<vmem>>, vector<10x10x32xf32>,
    %c1_163 = arith.constant 1 : index
    %c1_164 = arith.constant 1 : index
    %c0_165 = arith.constant 0 : index
    %222 = vector.load %arg12[%c1_163, %c1_164, %c0_165] : memref<10x10x32xf32, #tpu.memory_space<vmem>>, vector<8x8x32xf32>
    tpu.vector_store %arg12[%c1_163, %c1_164, %c0_165], %219 {strides = array<i32>} : memref<10x10x32xf32, #tpu.memory_space<vmem>>, vector<8x8x32xf32>,
    %c0_166 = arith.constant 0 : index
    %c0_167 = arith.constant 0 : index
    %c0_168 = arith.constant 0 : index
    %223 = vector.load %arg12[%c0_166, %c0_167, %c0_168] : memref<10x10x32xf32, #tpu.memory_space<vmem>>, vector<8x8x32xf32>
    %c0_169 = arith.constant 0 : index
    %c0_170 = arith.constant 0 : index
    %224 = vector.load %arg9[%c0_169, %c0_170] : memref<18x32xf32, #tpu.memory_space<vmem>>, vector<1x32xf32>
    %225 = vector.shape_cast %224 : vector<1x32xf32> to vector<1x1x32xf32>
    %226 = vector.broadcast %225 : vector<1x1x32xf32> to vector<8x8x32xf32>
    %227 = arith.mulf %223, %226 : vector<8x8x32xf32>
    %c16 = arith.constant 16 : index
    %c0_171 = arith.constant 0 : index
    %228 = vector.load %arg9[%c16, %c0_171] : memref<18x32xf32, #tpu.memory_space<vmem>>, vector<1x32xf32>
    %229 = vector.shape_cast %228 : vector<1x32xf32> to vector<1x1x32xf32>
    %230 = vector.broadcast %229 : vector<1x1x32xf32> to vector<8x8x32xf32>
    %231 = arith.addf %227, %230 : vector<8x8x32xf32>
    %c0_172 = arith.constant 0 : index
    %c1_173 = arith.constant 1 : index
    %c0_174 = arith.constant 0 : index
    %232 = vector.load %arg12[%c0_172, %c1_173, %c0_174] : memref<10x10x32xf32, #tpu.memory_space<vmem>>, vector<8x8x32xf32>
    %c1_175 = arith.constant 1 : index
    %c0_176 = arith.constant 0 : index
    %233 = vector.load %arg9[%c1_175, %c0_176] : memref<18x32xf32, #tpu.memory_space<vmem>>, vector<1x32xf32>
    %234 = vector.shape_cast %233 : vector<1x32xf32> to vector<1x1x32xf32>
    %235 = vector.broadcast %234 : vector<1x1x32xf32> to vector<8x8x32xf32>
    %236 = arith.mulf %232, %235 : vector<8x8x32xf32>
    %237 = arith.addf %231, %236 : vector<8x8x32xf32>
    %c0_177 = arith.constant 0 : index
    %c2_178 = arith.constant 2 : index
    %c0_179 = arith.constant 0 : index
    %238 = vector.load %arg12[%c0_177, %c2_178, %c0_179] : memref<10x10x32xf32, #tpu.memory_space<vmem>>, vector<8x8x32xf32>
    %c2_180 = arith.constant 2 : index
    %c0_181 = arith.constant 0 : index
    %239 = vector.load %arg9[%c2_180, %c0_181] : memref<18x32xf32, #tpu.memory_space<vmem>>, vector<1x32xf32>
    %240 = vector.shape_cast %239 : vector<1x32xf32> to vector<1x1x32xf32>
    %241 = vector.broadcast %240 : vector<1x1x32xf32> to vector<8x8x32xf32>
    %242 = arith.mulf %238, %241 : vector<8x8x32xf32>
    %243 = arith.addf %237, %242 : vector<8x8x32xf32>
    %c1_182 = arith.constant 1 : index
    %c0_183 = arith.constant 0 : index
    %c0_184 = arith.constant 0 : index
    %244 = vector.load %arg12[%c1_182, %c0_183, %c0_184] : memref<10x10x32xf32, #tpu.memory_space<vmem>>, vector<8x8x32xf32>
    %c3_185 = arith.constant 3 : index
    %c0_186 = arith.constant 0 : index
    %245 = vector.load %arg9[%c3_185, %c0_186] : memref<18x32xf32, #tpu.memory_space<vmem>>, vector<1x32xf32>
    %246 = vector.shape_cast %245 : vector<1x32xf32> to vector<1x1x32xf32>
    %247 = vector.broadcast %246 : vector<1x1x32xf32> to vector<8x8x32xf32>
    %248 = arith.mulf %244, %247 : vector<8x8x32xf32>
    %249 = arith.addf %243, %248 : vector<8x8x32xf32>
    %c1_187 = arith.constant 1 : index
    %c1_188 = arith.constant 1 : index
    %c0_189 = arith.constant 0 : index
    %250 = vector.load %arg12[%c1_187, %c1_188, %c0_189] : memref<10x10x32xf32, #tpu.memory_space<vmem>>, vector<8x8x32xf32>
    %c4 = arith.constant 4 : index
    %c0_190 = arith.constant 0 : index
    %251 = vector.load %arg9[%c4, %c0_190] : memref<18x32xf32, #tpu.memory_space<vmem>>, vector<1x32xf32>
    %252 = vector.shape_cast %251 : vector<1x32xf32> to vector<1x1x32xf32>
    %253 = vector.broadcast %252 : vector<1x1x32xf32> to vector<8x8x32xf32>
    %254 = arith.mulf %250, %253 : vector<8x8x32xf32>
    %255 = arith.addf %249, %254 : vector<8x8x32xf32>
    %c1_191 = arith.constant 1 : index
    %c2_192 = arith.constant 2 : index
    %c0_193 = arith.constant 0 : index
    %256 = vector.load %arg12[%c1_191, %c2_192, %c0_193] : memref<10x10x32xf32, #tpu.memory_space<vmem>>, vector<8x8x32xf32>
    %c5 = arith.constant 5 : index
    %c0_194 = arith.constant 0 : index
    %257 = vector.load %arg9[%c5, %c0_194] : memref<18x32xf32, #tpu.memory_space<vmem>>, vector<1x32xf32>
    %258 = vector.shape_cast %257 : vector<1x32xf32> to vector<1x1x32xf32>
    %259 = vector.broadcast %258 : vector<1x1x32xf32> to vector<8x8x32xf32>
    %260 = arith.mulf %256, %259 : vector<8x8x32xf32>
    %261 = arith.addf %255, %260 : vector<8x8x32xf32>
    %c2_195 = arith.constant 2 : index
    %c0_196 = arith.constant 0 : index
    %c0_197 = arith.constant 0 : index
    %262 = vector.load %arg12[%c2_195, %c0_196, %c0_197] : memref<10x10x32xf32, #tpu.memory_space<vmem>>, vector<8x8x32xf32>
    %c6 = arith.constant 6 : index
    %c0_198 = arith.constant 0 : index
    %263 = vector.load %arg9[%c6, %c0_198] : memref<18x32xf32, #tpu.memory_space<vmem>>, vector<1x32xf32>
    %264 = vector.shape_cast %263 : vector<1x32xf32> to vector<1x1x32xf32>
    %265 = vector.broadcast %264 : vector<1x1x32xf32> to vector<8x8x32xf32>
    %266 = arith.mulf %262, %265 : vector<8x8x32xf32>
    %267 = arith.addf %261, %266 : vector<8x8x32xf32>
    %c2_199 = arith.constant 2 : index
    %c1_200 = arith.constant 1 : index
    %c0_201 = arith.constant 0 : index
    %268 = vector.load %arg12[%c2_199, %c1_200, %c0_201] : memref<10x10x32xf32, #tpu.memory_space<vmem>>, vector<8x8x32xf32>
    %c7 = arith.constant 7 : index
    %c0_202 = arith.constant 0 : index
    %269 = vector.load %arg9[%c7, %c0_202] : memref<18x32xf32, #tpu.memory_space<vmem>>, vector<1x32xf32>
    %270 = vector.shape_cast %269 : vector<1x32xf32> to vector<1x1x32xf32>
    %271 = vector.broadcast %270 : vector<1x1x32xf32> to vector<8x8x32xf32>
    %272 = arith.mulf %268, %271 : vector<8x8x32xf32>
    %273 = arith.addf %267, %272 : vector<8x8x32xf32>
    %c2_203 = arith.constant 2 : index
    %c2_204 = arith.constant 2 : index
    %c0_205 = arith.constant 0 : index
    %274 = vector.load %arg12[%c2_203, %c2_204, %c0_205] : memref<10x10x32xf32, #tpu.memory_space<vmem>>, vector<8x8x32xf32>
    %c8 = arith.constant 8 : index
    %c0_206 = arith.constant 0 : index
    %275 = vector.load %arg9[%c8, %c0_206] : memref<18x32xf32, #tpu.memory_space<vmem>>, vector<1x32xf32>
    %276 = vector.shape_cast %275 : vector<1x32xf32> to vector<1x1x32xf32>
    %277 = vector.broadcast %276 : vector<1x1x32xf32> to vector<8x8x32xf32>
    %278 = arith.mulf %274, %277 : vector<8x8x32xf32>
    %279 = arith.addf %273, %278 : vector<8x8x32xf32>
    %280 = vector.shape_cast %279 : vector<8x8x32xf32> to vector<64x32xf32>
    %c11 = arith.constant 11 : index
    %c0_207 = arith.constant 0 : index
    %281 = vector.load %arg9[%c11, %c0_207] : memref<18x32xf32, #tpu.memory_space<vmem>>, vector<1x32xf32>
    %c12 = arith.constant 12 : index
    %c0_208 = arith.constant 0 : index
    %282 = vector.load %arg9[%c12, %c0_208] : memref<18x32xf32, #tpu.memory_space<vmem>>, vector<1x32xf32>
    %cst_209 = arith.constant dense<0.000000e+00> : vector<64xf32>
    %283 = vector.multi_reduction <add>, %280, %cst_209 [1] : vector<64x32xf32> to vector<64xf32>
    %284 = vector.shape_cast %283 : vector<64xf32> to vector<64x1xf32>
    %cst_210 = arith.constant 3.200000e+01 : f32
    %285 = vector.broadcast %cst_210 : f32 to vector<64x1xf32>
    %286 = arith.divf %284, %285 : vector<64x1xf32>
    %287 = vector.broadcast %286 : vector<64x1xf32> to vector<64x32xf32>
    %288 = arith.subf %280, %287 : vector<64x32xf32>
    %289 = arith.mulf %288, %288 : vector<64x32xf32>
    %cst_211 = arith.constant dense<0.000000e+00> : vector<64xf32>
    %290 = vector.multi_reduction <add>, %289, %cst_211 [1] : vector<64x32xf32> to vector<64xf32>
    %291 = vector.shape_cast %290 : vector<64xf32> to vector<64x1xf32>
    %cst_212 = arith.constant 3.200000e+01 : f32
    %292 = vector.broadcast %cst_212 : f32 to vector<64x1xf32>
    %293 = arith.divf %291, %292 : vector<64x1xf32>
    %cst_213 = arith.constant 9.99999997E-7 : f32
    %294 = vector.broadcast %cst_213 : f32 to vector<64x1xf32>
    %295 = arith.addf %293, %294 : vector<64x1xf32>
    %296 = math.rsqrt %295 : vector<64x1xf32>
    %297 = vector.broadcast %296 : vector<64x1xf32> to vector<64x32xf32>
    %298 = arith.mulf %288, %297 : vector<64x32xf32>
    %299 = vector.broadcast %281 : vector<1x32xf32> to vector<64x32xf32>
    %300 = arith.mulf %298, %299 : vector<64x32xf32>
    %301 = vector.broadcast %282 : vector<1x32xf32> to vector<64x32xf32>
    %302 = arith.addf %300, %301 : vector<64x32xf32>
    %303 = arith.truncf %302 : vector<64x32xf32> to vector<64x32xbf16>
    %c0_214 = arith.constant 0 : index
    %c0_215 = arith.constant 0 : index
    %304 = vector.load %arg5[%c0_214, %c0_215] : memref<32x32xbf16, #tpu.memory_space<vmem>>, vector<32x32xbf16>
    %cst_216 = arith.constant dense<0.000000e+00> : vector<64x32xf32>
    %305 = tpu.matmul %303, %304, %cst_216 {dimension_numbers = #tpu.dot_dimension_numbers<[1], [0], [0], [1], [0, 0, 1, 1], [], []>} : vector<64x32xbf16>, vector<32x32xbf16>, vector<64x32xf32> -> vector<64x32xf32>
    %306 = arith.addf %217, %305 : vector<64x32xf32>
    %c15 = arith.constant 15 : index
    %c0_217 = arith.constant 0 : index
    %307 = vector.load %arg9[%c15, %c0_217] : memref<18x32xf32, #tpu.memory_space<vmem>>, vector<1x32xf32>
    %308 = vector.broadcast %307 : vector<1x32xf32> to vector<64x32xf32>
    %309 = arith.addf %306, %308 : vector<64x32xf32>
    %310 = arith.addf %1, %309 : vector<64x32xf32>
    %c13 = arith.constant 13 : index
    %c0_218 = arith.constant 0 : index
    %311 = vector.load %arg9[%c13, %c0_218] : memref<18x32xf32, #tpu.memory_space<vmem>>, vector<1x32xf32>
    %c14 = arith.constant 14 : index
    %c0_219 = arith.constant 0 : index
    %312 = vector.load %arg9[%c14, %c0_219] : memref<18x32xf32, #tpu.memory_space<vmem>>, vector<1x32xf32>
    %cst_220 = arith.constant dense<0.000000e+00> : vector<64xf32>
    %313 = vector.multi_reduction <add>, %310, %cst_220 [1] : vector<64x32xf32> to vector<64xf32>
    %314 = vector.shape_cast %313 : vector<64xf32> to vector<64x1xf32>
    %cst_221 = arith.constant 3.200000e+01 : f32
    %315 = vector.broadcast %cst_221 : f32 to vector<64x1xf32>
    %316 = arith.divf %314, %315 : vector<64x1xf32>
    %317 = vector.broadcast %316 : vector<64x1xf32> to vector<64x32xf32>
    %318 = arith.subf %310, %317 : vector<64x32xf32>
    %319 = arith.mulf %318, %318 : vector<64x32xf32>
    %cst_222 = arith.constant dense<0.000000e+00> : vector<64xf32>
    %320 = vector.multi_reduction <add>, %319, %cst_222 [1] : vector<64x32xf32> to vector<64xf32>
    %321 = vector.shape_cast %320 : vector<64xf32> to vector<64x1xf32>
    %cst_223 = arith.constant 3.200000e+01 : f32
    %322 = vector.broadcast %cst_223 : f32 to vector<64x1xf32>
    %323 = arith.divf %321, %322 : vector<64x1xf32>
    %cst_224 = arith.constant 9.99999997E-7 : f32
    %324 = vector.broadcast %cst_224 : f32 to vector<64x1xf32>
    %325 = arith.addf %323, %324 : vector<64x1xf32>
    %326 = math.rsqrt %325 : vector<64x1xf32>
    %327 = vector.broadcast %326 : vector<64x1xf32> to vector<64x32xf32>
    %328 = arith.mulf %318, %327 : vector<64x32xf32>
    %329 = vector.broadcast %311 : vector<1x32xf32> to vector<64x32xf32>
    %330 = arith.mulf %328, %329 : vector<64x32xf32>
    %331 = vector.broadcast %312 : vector<1x32xf32> to vector<64x32xf32>
    %332 = arith.addf %330, %331 : vector<64x32xf32>
    %333 = arith.truncf %332 : vector<64x32xf32> to vector<64x32xbf16>
    %c0_225 = arith.constant 0 : index
    %c0_226 = arith.constant 0 : index
    %334 = vector.load %arg6[%c0_225, %c0_226] : memref<32x128xbf16, #tpu.memory_space<vmem>>, vector<32x128xbf16>
    %cst_227 = arith.constant dense<0.000000e+00> : vector<64x128xf32>
    %335 = tpu.matmul %333, %334, %cst_227 {dimension_numbers = #tpu.dot_dimension_numbers<[1], [0], [0], [1], [0, 0, 1, 1], [], []>} : vector<64x32xbf16>, vector<32x128xbf16>, vector<64x128xf32> -> vector<64x128xf32>
    %c0_228 = arith.constant 0 : index
    %c0_229 = arith.constant 0 : index
    %336 = vector.load %arg7[%c0_228, %c0_229] : memref<1x128xf32, #tpu.memory_space<vmem>>, vector<1x128xf32>
    %337 = vector.broadcast %336 : vector<1x128xf32> to vector<64x128xf32>
    %338 = arith.addf %335, %337 : vector<64x128xf32>
    %cst_230 = arith.constant 5.000000e-01 : f32
    %339 = vector.broadcast %cst_230 : f32 to vector<64x128xf32>
    %340 = arith.mulf %339, %338 : vector<64x128xf32>
    %cst_231 = arith.constant 0.707106769 : f32
    %341 = vector.broadcast %cst_231 : f32 to vector<64x128xf32>
    %342 = arith.mulf %338, %341 : vector<64x128xf32>
    %343 = math.erf %342 : vector<64x128xf32>
    %cst_232 = arith.constant 1.000000e+00 : f32
    %344 = vector.broadcast %cst_232 : f32 to vector<64x128xf32>
    %345 = arith.addf %344, %343 : vector<64x128xf32>
    %346 = arith.mulf %340, %345 : vector<64x128xf32>
    %347 = arith.truncf %346 : vector<64x128xf32> to vector<64x128xbf16>
    %c0_233 = arith.constant 0 : index
    %c0_234 = arith.constant 0 : index
    %348 = vector.load %arg8[%c0_233, %c0_234] : memref<128x32xbf16, #tpu.memory_space<vmem>>, vector<128x32xbf16>
    %cst_235 = arith.constant dense<0.000000e+00> : vector<64x32xf32>
    %349 = tpu.matmul %347, %348, %cst_235 {dimension_numbers = #tpu.dot_dimension_numbers<[1], [0], [0], [1], [0, 0, 1, 1], [], []>} : vector<64x128xbf16>, vector<128x32xbf16>, vector<64x32xf32> -> vector<64x32xf32>
    %c17 = arith.constant 17 : index
    %c0_236 = arith.constant 0 : index
    %350 = vector.load %arg9[%c17, %c0_236] : memref<18x32xf32, #tpu.memory_space<vmem>>, vector<1x32xf32>
    %351 = vector.broadcast %350 : vector<1x32xf32> to vector<64x32xf32>
    %352 = arith.addf %349, %351 : vector<64x32xf32>
    %353 = arith.addf %310, %352 : vector<64x32xf32>
    %c0_237 = arith.constant 0 : index
    %c0_238 = arith.constant 0 : index
    %c0_239 = arith.constant 0 : index
    %354 = vector.load %arg10[%c0_237, %c0_238, %c0_239] : memref<1x64x32xf32, #tpu.memory_space<vmem>>, vector<1x64x32xf32>
    %355 = vector.shape_cast %354 : vector<1x64x32xf32> to vector<64x32xf32>
    %356 = vector.shape_cast %353 : vector<64x32xf32> to vector<1x64x32xf32>
    tpu.vector_store %arg10[%c0_237, %c0_238, %c0_239], %356 {strides = array<i32>} : memref<1x64x32xf32, #tpu.memory_space<vmem>>, vector<1x64x32xf32>,
    return
  }
  func.func @transform_0(%arg0: i32) -> (i32, i32, i32) {
    %c0_i32 = arith.constant 0 : i32
    %c0_i32_0 = arith.constant 0 : i32
    %c0_i32_1 = arith.constant 0 : i32
    return %arg0, %c0_i32, %c0_i32_0 : i32, i32, i32
  }
  func.func @transform_1(%arg0: i32) -> (i32, i32, i32, i32) {
    %c0_i32 = arith.constant 0 : i32
    %c0_i32_0 = arith.constant 0 : i32
    %c0_i32_1 = arith.constant 0 : i32
    %c0_i32_2 = arith.constant 0 : i32
    %c0_i32_3 = arith.constant 0 : i32
    return %c0_i32, %c0_i32_0, %c0_i32_1, %c0_i32_2 : i32, i32, i32, i32
  }
  func.func @transform_2(%arg0: i32) -> (i32, i32, i32, i32) {
    %c0_i32 = arith.constant 0 : i32
    %c0_i32_0 = arith.constant 0 : i32
    %c0_i32_1 = arith.constant 0 : i32
    %c0_i32_2 = arith.constant 0 : i32
    %c0_i32_3 = arith.constant 0 : i32
    return %c0_i32, %c0_i32_0, %c0_i32_1, %c0_i32_2 : i32, i32, i32, i32
  }
  func.func @transform_3(%arg0: i32) -> (i32, i32, i32) {
    %c0_i32 = arith.constant 0 : i32
    %c0_i32_0 = arith.constant 0 : i32
    %c0_i32_1 = arith.constant 0 : i32
    %c0_i32_2 = arith.constant 0 : i32
    return %c0_i32, %c0_i32_0, %c0_i32_1 : i32, i32, i32
  }
  func.func @transform_4(%arg0: i32) -> (i32, i32) {
    %c0_i32 = arith.constant 0 : i32
    %c0_i32_0 = arith.constant 0 : i32
    %c0_i32_1 = arith.constant 0 : i32
    return %c0_i32, %c0_i32_0 : i32, i32
  }
  func.func @transform_5(%arg0: i32) -> (i32, i32) {
    %c0_i32 = arith.constant 0 : i32
    %c0_i32_0 = arith.constant 0 : i32
    %c0_i32_1 = arith.constant 0 : i32
    return %c0_i32, %c0_i32_0 : i32, i32
  }
  func.func @transform_6(%arg0: i32) -> (i32, i32) {
    %c0_i32 = arith.constant 0 : i32
    %c0_i32_0 = arith.constant 0 : i32
    %c0_i32_1 = arith.constant 0 : i32
    return %c0_i32, %c0_i32_0 : i32, i32
  }
  func.func @transform_7(%arg0: i32) -> (i32, i32) {
    %c0_i32 = arith.constant 0 : i32
    %c0_i32_0 = arith.constant 0 : i32
    %c0_i32_1 = arith.constant 0 : i32
    return %c0_i32, %c0_i32_0 : i32, i32
  }
  func.func @transform_8(%arg0: i32) -> (i32, i32) {
    %c0_i32 = arith.constant 0 : i32
    %c0_i32_0 = arith.constant 0 : i32
    %c0_i32_1 = arith.constant 0 : i32
    return %c0_i32, %c0_i32_0 : i32, i32
  }
  func.func @transform_9(%arg0: i32) -> (i32, i32, i32) {
    %c0_i32 = arith.constant 0 : i32
    %c0_i32_0 = arith.constant 0 : i32
    %c0_i32_1 = arith.constant 0 : i32
    return %arg0, %c0_i32, %c0_i32_0 : i32, i32, i32
  }
  func.func @transform_10(%arg0: i32) -> (i32, i32, i32) {
    %c0_i32 = arith.constant 0 : i32
    %c0_i32_0 = arith.constant 0 : i32
    %c0_i32_1 = arith.constant 0 : i32
    return %arg0, %c0_i32, %c0_i32_0 : i32, i32, i32
  }
}

</mosaic_0001>

<llo_original>
// kernel: tpu_custom_call.1
$region0: #{tpu_custom_call.1}
  #allocation0 [shape = 'u32[]', space=smem, size = 0x4, offset = 0x4, fixed_abs, tag = 'smem constant byte address 0x4 - core index']
  #allocation1 [shape = 'u32[72,128]{1,0:T(1,128)}', space=vmem, size = 0x9000, scoped, tag = 'internal scratch']
  #allocation2 [shape = 'f32[10,10,32]{2,1,0:T(8,128)}', space=vmem, size = 0x14000, scoped, tag = 'scratch operand']
  %s0 = inlined_call_operand.vmem [shape: f32[2,64,32], index: 0, kind: input, shape index: {}]
  %s1 = inlined_call_operand.vmem [shape: bf16[3,4,32,8], index: 1, kind: input, shape index: {}]
  %s2 = inlined_call_operand.vmem [shape: f32[3,4,1,8], index: 2, kind: input, shape index: {}]
  %s3 = inlined_call_operand.vmem [shape: bf16[4,8,32], index: 3, kind: input, shape index: {}]
  %s4 = inlined_call_operand.vmem [shape: bf16[32,32], index: 4, kind: input, shape index: {}]
  %s5 = inlined_call_operand.vmem [shape: bf16[32,128], index: 5, kind: input, shape index: {}]
  %s6 = inlined_call_operand.vmem [shape: f32[1,128], index: 6, kind: input, shape index: {}]
  %s7 = inlined_call_operand.vmem [shape: bf16[128,32], index: 7, kind: input, shape index: {}]
  %s8 = inlined_call_operand.vmem [shape: f32[18,32], index: 8, kind: input, shape index: {}]
  %s9 = inlined_call_operand.vmem [shape: f32[2,64,32], index: 9, kind: output, shape index: {0}]
  %s10 = inlined_call_operand.hbm [shape: bf16[2,64,256], index: 10, kind: output, shape index: {1}]
  %11 = xla_tuple %s9, %s10
  %s12 = sld [smem:[#allocation0]]
  $region77: #{tpu_custom_call.1} parent=0
    _
  %s14 = ssub.s32 1, %s12
  %s15 = scalar_select 0, %s14, %s12
  $region1: #{tpu_custom_call.1} parent=0
    #allocation3 [shape = 'u8[65536]{0}', space=vmem, size = 0x10000, scoped, tag = 'output window, operand 1']
    #allocation4 [shape = 's32[2]{0}', space=sflag, size = 0x8, scoped, tag = 'scoped memory for tpu_custom_call.1']
    %16 = vsyncpa [#allocation4], 0
    %s17 = scalar_lea.sflag [#allocation4], 1
    %18 = vsyncpa %s17, 0
    loop: start=0, step=1, limit=4
    $region2: #{tpu_custom_call.1} parent=1 // loop_pre_header
      _
    $region3: #{tpu_custom_call.1} parent=1 // loop_header
      %s20 = sphi 0, %s24
      %p21 = scmp.ge.s32.totalorder %s20, 4
      %s30 = sphi 0, %s32
      %s33 = sphi 0, %s30
      %s34 = sphi 0, %s33
      %s50 = sphi 0, %s34
      %s54 = sphi 0, %s54
      %s56 = sphi 0, %s54
      %s57 = sphi 0, %s56
      %s71 = sphi 0, %s57
      %s75 = sphi 0, %s75
      %s77 = sphi 0, %s75
      %s78 = sphi 0, %s77
      %s92 = sphi 0, %s78
      %s96 = sphi 0, %s96
      %s98 = sphi 0, %s96
      %s99 = sphi 0, %s98
      %s113 = sphi 0, %s99
      %s117 = sphi 0, %s117
      %s119 = sphi 0, %s117
      %s120 = sphi 0, %s119
      %s134 = sphi 0, %s120
      %s138 = sphi 0, %s138
      %s140 = sphi 0, %s138
      %s141 = sphi 0, %s140
      %s155 = sphi 0, %s141
      %s159 = sphi 0, %s159
      %s161 = sphi 0, %s159
      %s162 = sphi 0, %s161
      %s176 = sphi 0, %s162
      %s180 = sphi 0, %s180
      %s182 = sphi 0, %s180
      %s183 = sphi 0, %s182
      %s197 = sphi 0, %s183
      %s201 = sphi 0, %s201
      %s203 = sphi 0, %s201
      %s204 = sphi 0, %s203
      %s218 = sphi 0, %s204
      %s224 = sphi 0, %s226
      %s227 = sphi 0, %s224
      %s228 = sphi 0, %s227
      %s244 = sphi 0, %s228
      %s250 = sphi 0, %s252
      %s253 = sphi 0, %s250
      %s254 = sphi 0, %s253
      %s270 = sphi 0, %s254
    $region4: #{tpu_custom_call.1} parent=1 // loop_header_branch
      %23 = sbr.rel (%p21) target = $region8
    $region5: #{tpu_custom_call.1} parent=1 // loop_body
      %s25 = ssub.s32 %s20, 1
      %s26 = ssub.s32 %s20, 2
      %s27 = sadd.s32 %s20, 1
      %s28 = ssub.s32 %s20, %s27
      %p29 = scmp.eq.s32.totalorder %s28, 0
      %s31 = sadd.s32 %s30, 1
      %s32 = scalar_select %p29, %s30, %s31
      %p35 = pneg %p29
      %p36 = scmp.eq.s32.totalorder %s20, 1
      %p37 = por %p35, %p36
      %p38 = scmp.ne.s32.totalorder %s30, %s33
      %p39 = scmp.eq.s32.totalorder %s20, 0
      %p40 = por %p38, %p39
      %p41 = scmp.ne.s32.totalorder %s30, %s33
      %p42 = scmp.eq.s32.totalorder %s25, 1
      %p43 = por %p41, %p42
      %p44 = scmp.ne.s32.totalorder %s33, %s34
      %p45 = scmp.eq.s32.totalorder %s25, 0
      %p46 = por %p44, %p45
      %p47 = scmp.ne.s32.totalorder %s33, %s34
      %p48 = scmp.eq.s32.totalorder %s26, 1
      %p49 = por %p47, %p48
      %p51 = scmp.ne.s32.totalorder %s34, %s50
      %p52 = scmp.eq.s32.totalorder %s26, 0
      %p53 = por %p51, %p52
      %s55 = sadd.s32 %s54, 1
      %p58 = scmp.eq.s32.totalorder %s20, 1
      %p59 = scmp.ne.s32.totalorder %s54, %s56
      %p60 = scmp.eq.s32.totalorder %s20, 0
      %p61 = por %p59, %p60
      %p62 = scmp.ne.s32.totalorder %s54, %s56
      %p63 = scmp.eq.s32.totalorder %s25, 1
      %p64 = por %p62, %p63
      %p65 = scmp.ne.s32.totalorder %s56, %s57
      %p66 = scmp.eq.s32.totalorder %s25, 0
      %p67 = por %p65, %p66
      %p68 = scmp.ne.s32.totalorder %s56, %s57
      %p69 = scmp.eq.s32.totalorder %s26, 1
      %p70 = por %p68, %p69
      %p72 = scmp.ne.s32.totalorder %s57, %s71
      %p73 = scmp.eq.s32.totalorder %s26, 0
      %p74 = por %p72, %p73
      %s76 = sadd.s32 %s75, 1
      %p79 = scmp.eq.s32.totalorder %s20, 1
      %p80 = scmp.ne.s32.totalorder %s75, %s77
      %p81 = scmp.eq.s32.totalorder %s20, 0
      %p82 = por %p80, %p81
      %p83 = scmp.ne.s32.totalorder %s75, %s77
      %p84 = scmp.eq.s32.totalorder %s25, 1
      %p85 = por %p83, %p84
      %p86 = scmp.ne.s32.totalorder %s77, %s78
      %p87 = scmp.eq.s32.totalorder %s25, 0
      %p88 = por %p86, %p87
      %p89 = scmp.ne.s32.totalorder %s77, %s78
      %p90 = scmp.eq.s32.totalorder %s26, 1
      %p91 = por %p89, %p90
      %p93 = scmp.ne.s32.totalorder %s78, %s92
      %p94 = scmp.eq.s32.totalorder %s26, 0
      %p95 = por %p93, %p94
      %s97 = sadd.s32 %s96, 1
      %p100 = scmp.eq.s32.totalorder %s20, 1
      %p101 = scmp.ne.s32.totalorder %s96, %s98
      %p102 = scmp.eq.s32.totalorder %s20, 0
      %p103 = por %p101, %p102
      %p104 = scmp.ne.s32.totalorder %s96, %s98
      %p105 = scmp.eq.s32.totalorder %s25, 1
      %p106 = por %p104, %p105
      %p107 = scmp.ne.s32.totalorder %s98, %s99
      %p108 = scmp.eq.s32.totalorder %s25, 0
      %p109 = por %p107, %p108
      %p110 = scmp.ne.s32.totalorder %s98, %s99
      %p111 = scmp.eq.s32.totalorder %s26, 1
      %p112 = por %p110, %p111
      %p114 = scmp.ne.s32.totalorder %s99, %s113
      %p115 = scmp.eq.s32.totalorder %s26, 0
      %p116 = por %p114, %p115
      %s118 = sadd.s32 %s117, 1
      %p121 = scmp.eq.s32.totalorder %s20, 1
      %p122 = scmp.ne.s32.totalorder %s117, %s119
      %p123 = scmp.eq.s32.totalorder %s20, 0
      %p124 = por %p122, %p123
      %p125 = scmp.ne.s32.totalorder %s117, %s119
      %p126 = scmp.eq.s32.totalorder %s25, 1
      %p127 = por %p125, %p126
      %p128 = scmp.ne.s32.totalorder %s119, %s120
      %p129 = scmp.eq.s32.totalorder %s25, 0
      %p130 = por %p128, %p129
      %p131 = scmp.ne.s32.totalorder %s119, %s120
      %p132 = scmp.eq.s32.totalorder %s26, 1
      %p133 = por %p131, %p132
      %p135 = scmp.ne.s32.totalorder %s120, %s134
      %p136 = scmp.eq.s32.totalorder %s26, 0
      %p137 = por %p135, %p136
      %s139 = sadd.s32 %s138, 1
      %p142 = scmp.eq.s32.totalorder %s20, 1
      %p143 = scmp.ne.s32.totalorder %s138, %s140
      %p144 = scmp.eq.s32.totalorder %s20, 0
      %p145 = por %p143, %p144
      %p146 = scmp.ne.s32.totalorder %s138, %s140
      %p147 = scmp.eq.s32.totalorder %s25, 1
      %p148 = por %p146, %p147
      %p149 = scmp.ne.s32.totalorder %s140, %s141
      %p150 = scmp.eq.s32.totalorder %s25, 0
      %p151 = por %p149, %p150
      %p152 = scmp.ne.s32.totalorder %s140, %s141
      %p153 = scmp.eq.s32.totalorder %s26, 1
      %p154 = por %p152, %p153
      %p156 = scmp.ne.s32.totalorder %s141, %s155
      %p157 = scmp.eq.s32.totalorder %s26, 0
      %p158 = por %p156, %p157
      %s160 = sadd.s32 %s159, 1
      %p163 = scmp.eq.s32.totalorder %s20, 1
      %p164 = scmp.ne.s32.totalorder %s159, %s161
      %p165 = scmp.eq.s32.totalorder %s20, 0
      %p166 = por %p164, %p165
      %p167 = scmp.ne.s32.totalorder %s159, %s161
      %p168 = scmp.eq.s32.totalorder %s25, 1
      %p169 = por %p167, %p168
      %p170 = scmp.ne.s32.totalorder %s161, %s162
      %p171 = scmp.eq.s32.totalorder %s25, 0
      %p172 = por %p170, %p171
      %p173 = scmp.ne.s32.totalorder %s161, %s162
      %p174 = scmp.eq.s32.totalorder %s26, 1
      %p175 = por %p173, %p174
      %p177 = scmp.ne.s32.totalorder %s162, %s176
      %p178 = scmp.eq.s32.totalorder %s26, 0
      %p179 = por %p177, %p178
      %s181 = sadd.s32 %s180, 1
      %p184 = scmp.eq.s32.totalorder %s20, 1
      %p185 = scmp.ne.s32.totalorder %s180, %s182
      %p186 = scmp.eq.s32.totalorder %s20, 0
      %p187 = por %p185, %p186
      %p188 = scmp.ne.s32.totalorder %s180, %s182
      %p189 = scmp.eq.s32.totalorder %s25, 1
      %p190 = por %p188, %p189
      %p191 = scmp.ne.s32.totalorder %s182, %s183
      %p192 = scmp.eq.s32.totalorder %s25, 0
      %p193 = por %p191, %p192
      %p194 = scmp.ne.s32.totalorder %s182, %s183
      %p195 = scmp.eq.s32.totalorder %s26, 1
      %p196 = por %p194, %p195
      %p198 = scmp.ne.s32.totalorder %s183, %s197
      %p199 = scmp.eq.s32.totalorder %s26, 0
      %p200 = por %p198, %p199
      %s202 = sadd.s32 %s201, 1
      %p205 = scmp.eq.s32.totalorder %s20, 1
      %p206 = scmp.ne.s32.totalorder %s201, %s203
      %p207 = scmp.eq.s32.totalorder %s20, 0
      %p208 = por %p206, %p207
      %p209 = scmp.ne.s32.totalorder %s201, %s203
      %p210 = scmp.eq.s32.totalorder %s25, 1
      %p211 = por %p209, %p210
      %p212 = scmp.ne.s32.totalorder %s203, %s204
      %p213 = scmp.eq.s32.totalorder %s25, 0
      %p214 = por %p212, %p213
      %p215 = scmp.ne.s32.totalorder %s203, %s204
      %p216 = scmp.eq.s32.totalorder %s26, 1
      %p217 = por %p215, %p216
      %p219 = scmp.ne.s32.totalorder %s204, %s218
      %p220 = scmp.eq.s32.totalorder %s26, 0
      %p221 = por %p219, %p220
      %s222 = ssub.s32 %s20, %s27
      %p223 = scmp.eq.s32.totalorder %s222, 0
      %s225 = sadd.s32 %s224, 1
      %s226 = scalar_select %p223, %s224, %s225
      %p229 = pneg %p223
      %p230 = scmp.eq.s32.totalorder %s20, 1
      %p231 = por %p229, %p230
      %p232 = scmp.ne.s32.totalorder %s224, %s227
      %p233 = scmp.eq.s32.totalorder %s20, 0
      %p234 = por %p232, %p233
      %p235 = scmp.ne.s32.totalorder %s224, %s227
      %p236 = scmp.eq.s32.totalorder %s25, 1
      %p237 = por %p235, %p236
      %p238 = scmp.ne.s32.totalorder %s227, %s228
      %p239 = scmp.eq.s32.totalorder %s25, 0
      %p240 = por %p238, %p239
      %p241 = scmp.ne.s32.totalorder %s227, %s228
      %p242 = scmp.eq.s32.totalorder %s26, 1
      %p243 = por %p241, %p242
      %p245 = scmp.ne.s32.totalorder %s228, %s244
      %p246 = scmp.eq.s32.totalorder %s26, 0
      %p247 = por %p245, %p246
      %s248 = ssub.s32 %s20, %s27
      %p249 = scmp.eq.s32.totalorder %s248, 0
      %s251 = sadd.s32 %s250, 1
      %s252 = scalar_select %p249, %s250, %s251
      %p255 = pneg %p249
      %p256 = scmp.eq.s32.totalorder %s20, 1
      %p257 = por %p255, %p256
      %p258 = scmp.ne.s32.totalorder %s250, %s253
      %p259 = scmp.eq.s32.totalorder %s20, 0
      %p260 = por %p258, %p259
      %p261 = scmp.ne.s32.totalorder %s250, %s253
      %p262 = scmp.eq.s32.totalorder %s25, 1
      %p263 = por %p261, %p262
      %p264 = scmp.ne.s32.totalorder %s253, %s254
      %p265 = scmp.eq.s32.totalorder %s25, 0
      %p266 = por %p264, %p265
      %p267 = scmp.ne.s32.totalorder %s253, %s254
      %p268 = scmp.eq.s32.totalorder %s26, 1
      %p269 = por %p267, %p268
      %p271 = scmp.ne.s32.totalorder %s254, %s270
      %p272 = scmp.eq.s32.totalorder %s26, 0
      %p273 = por %p271, %p272
      %p274 = scmp.le.s32.totalorder 1, %s20
      %p275 = scmp.lt.s32.totalorder %s20, 3
      %p276 = pnand %p274, %p275
      %p277 = pneg %p276
      // Predicated region
      $region9: #{tpu_custom_call.1} parent=5 // pred_check
        _
      $region10: #{tpu_custom_call.1} parent=5 // pred_check_branch
        %279 = sbr.rel (%p276) target = $region12
      $region11: #{tpu_custom_call.1} parent=5 // pred_region
        %s280 = ssub.s32 %s20, 1
        // Predicated region
        $region13: #{tpu_custom_call.1} parent=11 // pred_check
          %p281 = pneg %p67
        $region14: #{tpu_custom_call.1} parent=11 // pred_check_branch
          %283 = sbr.rel (%p281) target = $region16
        $region15: #{tpu_custom_call.1} parent=11 // pred_region
          _
        $region16: #{tpu_custom_call.1} parent=11 // pred_fallthru
          _
        // Predicated region
        $region17: #{tpu_custom_call.1} parent=11 // pred_check
          %p284 = pneg %p88
        $region18: #{tpu_custom_call.1} parent=11 // pred_check_branch
          %286 = sbr.rel (%p284) target = $region20
        $region19: #{tpu_custom_call.1} parent=11 // pred_region
          _
        $region20: #{tpu_custom_call.1} parent=11 // pred_fallthru
          _
        // Predicated region
        $region21: #{tpu_custom_call.1} parent=11 // pred_check
          %p287 = pneg %p109
        $region22: #{tpu_custom_call.1} parent=11 // pred_check_branch
          %289 = sbr.rel (%p287) target = $region24
        $region23: #{tpu_custom_call.1} parent=11 // pred_region
          _
        $region24: #{tpu_custom_call.1} parent=11 // pred_fallthru
          _
        // Predicated region
        $region25: #{tpu_custom_call.1} parent=11 // pred_check
          %p290 = pneg %p130
        $region26: #{tpu_custom_call.1} parent=11 // pred_check_branch
          %292 = sbr.rel (%p290) target = $region28
        $region27: #{tpu_custom_call.1} parent=11 // pred_region
          _
        $region28: #{tpu_custom_call.1} parent=11 // pred_fallthru
          _
        // Predicated region
        $region29: #{tpu_custom_call.1} parent=11 // pred_check
          %p293 = pneg %p151
        $region30: #{tpu_custom_call.1} parent=11 // pred_check_branch
          %295 = sbr.rel (%p293) target = $region32
        $region31: #{tpu_custom_call.1} parent=11 // pred_region
          _
        $region32: #{tpu_custom_call.1} parent=11 // pred_fallthru
          _
        // Predicated region
        $region33: #{tpu_custom_call.1} parent=11 // pred_check
          %p296 = pneg %p172
        $region34: #{tpu_custom_call.1} parent=11 // pred_check_branch
          %298 = sbr.rel (%p296) target = $region36
        $region35: #{tpu_custom_call.1} parent=11 // pred_region
          _
        $region36: #{tpu_custom_call.1} parent=11 // pred_fallthru
          _
        // Predicated region
        $region37: #{tpu_custom_call.1} parent=11 // pred_check
          %p299 = pneg %p193
        $region38: #{tpu_custom_call.1} parent=11 // pred_check_branch
          %301 = sbr.rel (%p299) target = $region40
        $region39: #{tpu_custom_call.1} parent=11 // pred_region
          _
        $region40: #{tpu_custom_call.1} parent=11 // pred_fallthru
          _
        // Predicated region
        $region41: #{tpu_custom_call.1} parent=11 // pred_check
          %p302 = pneg %p214
        $region42: #{tpu_custom_call.1} parent=11 // pred_check_branch
          %304 = sbr.rel (%p302) target = $region44
        $region43: #{tpu_custom_call.1} parent=11 // pred_region
          _
        $region44: #{tpu_custom_call.1} parent=11 // pred_fallthru
          _
      $region12: #{tpu_custom_call.1} parent=5 // pred_fallthru
        _
      %p305 = scmp.lt.s32.totalorder %s20, 2
      // Predicated region
      $region45: #{tpu_custom_call.1} parent=5 // pred_check
        %p306 = pneg %p305
      $region46: #{tpu_custom_call.1} parent=5 // pred_check_branch
        %308 = sbr.rel (%p306) target = $region48
      $region47: #{tpu_custom_call.1} parent=5 // pred_region
        // Predicated region
        $region49: #{tpu_custom_call.1} parent=47 // pred_check
          %p309 = pneg %p40
        $region50: #{tpu_custom_call.1} parent=47 // pred_check_branch
          %311 = sbr.rel (%p309) target = $region52
        $region51: #{tpu_custom_call.1} parent=47 // pred_region
          %p312 = scmp.lt.s32.totalorder %s20, 1
          %s313 = scalar_select %p312, %s20, 1
          %s314 = smul.addr %s313, 8
          %s315 = smul.addr %s314, 8
          %s316 = scalar_lea.vmem %s0, %s315
        $region52: #{tpu_custom_call.1} parent=47 // pred_fallthru
          _
      $region48: #{tpu_custom_call.1} parent=5 // pred_fallthru
        _
      %p317 = scmp.le.s32.totalorder 1, %s20
      %p318 = scmp.lt.s32.totalorder %s20, 3
      %p319 = pnand %p317, %p318
      %p320 = pneg %p319
      // Predicated region
      $region53: #{tpu_custom_call.1} parent=5 // pred_check
        _
      $region54: #{tpu_custom_call.1} parent=5 // pred_check_branch
        %322 = sbr.rel (%p319) target = $region56
      $region55: #{tpu_custom_call.1} parent=5 // pred_region
        %s323 = ssub.s32 %s20, 1
        %p324 = scmp.lt.s32.totalorder %s25, 1
        %s325 = scalar_select %p324, %s25, 1
        %s326 = smul.addr %s325, 8
        %s327 = smul.addr %s326, 8
        %s328 = scalar_lea.vmem %s0, %s327
        %p329 = pneg %p46
        %p330 = pneg %p43
        %p331 = pneg %p67
        %p332 = pneg %p64
        %p333 = pneg %p88
        %p334 = pneg %p85
        %p335 = pneg %p109
        %p336 = pneg %p106
        %p337 = pneg %p130
        %p338 = pneg %p127
        %p339 = pneg %p151
        %p340 = pneg %p148
        %p341 = pneg %p172
        %p342 = pneg %p169
        %p343 = pneg %p193
        %p344 = pneg %p190
        %p345 = pneg %p214
        %p346 = pneg %p211
        %p347 = pneg %p240
        %p348 = pneg %p237
        %p349 = scmp.lt.s32.totalorder %s25, 1
        %s350 = scalar_select %p349, %s25, 1
        %s351 = smul.addr %s350, 8
        %s352 = smul.addr %s351, 8
        %s353 = scalar_lea.vmem %s9, %s352
        %p354 = pneg %p266
        %p355 = pneg %p263
        %s356 = sand.u32 %s253, 1
        %s357 = scalar_lea.sflag [#allocation4], %s356
        %s358 = sand.u32 %s253, 1
        %s359 = smul.addr %s358, 64
        %s360 = scalar_lea.vmem [#allocation3], %s359
        %p361 = scmp.lt.s32.totalorder %s25, 1
        %s362 = scalar_select %p361, %s25, 1
        %s363 = smul.addr %s362, 8
        %s364 = smul.addr %s363, 8
        %s365 = scalar_lea.vmem %s0, %s364
        %p366 = scmp.lt.s32.totalorder %s25, 1
        %s367 = scalar_select %p366, %s25, 1
        %s368 = smul.addr %s367, 8
        %s369 = smul.addr %s368, 8
        %s370 = scalar_lea.vmem %s9, %s369
        %v372 = vld [vmem:[%s365] sm:$0xff]
        %v373 = vld [vmem:[%s365 + $0x8] sm:$0xff]
        %v374 = vld [vmem:[%s365 + $0x10] sm:$0xff]
        %v375 = vld [vmem:[%s365 + $0x18] sm:$0xff]
        %v376 = vld [vmem:[%s365 + $0x20] sm:$0xff]
        %v377 = vld [vmem:[%s365 + $0x28] sm:$0xff]
        %v378 = vld [vmem:[%s365 + $0x30] sm:$0xff]
        %v379 = vld [vmem:[%s365 + $0x38] sm:$0xff]
        %v380 = vld [vmem:[%s8 + $0x9] sm:$0x1]
        %v381 = vld [vmem:[%s8 + $0xa] sm:$0x1]
        %vm382 = vcmask 261120
        %v383 = vsel %vm382, %v372, 0.0
        %384 = vadd.xlane.f32.xlu0 %v383
        %v385 = vpop.xlane.xlu0 %384
        %v386 = vsel %vm382, %v373, 0.0
        %387 = vadd.xlane.f32.xlu0 %v386
        %v388 = vpop.xlane.xlu0 %387
        %v389 = vsel %vm382, %v374, 0.0
        %390 = vadd.xlane.f32.xlu0 %v389
        %v391 = vpop.xlane.xlu0 %390
        %v392 = vsel %vm382, %v375, 0.0
        %393 = vadd.xlane.f32.xlu0 %v392
        %v394 = vpop.xlane.xlu0 %393
        %v395 = vsel %vm382, %v376, 0.0
        %396 = vadd.xlane.f32.xlu0 %v395
        %v397 = vpop.xlane.xlu0 %396
        %v398 = vsel %vm382, %v377, 0.0
        %399 = vadd.xlane.f32.xlu0 %v398
        %v400 = vpop.xlane.xlu0 %399
        %v401 = vsel %vm382, %v378, 0.0
        %402 = vadd.xlane.f32.xlu0 %v401
        %v403 = vpop.xlane.xlu0 %402
        %v404 = vsel %vm382, %v379, 0.0
        %405 = vadd.xlane.f32.xlu0 %v404
        %v406 = vpop.xlane.xlu0 %405
        %v407 = vrcp.pop 32.0
        %v408 = vmul.f32 32.0, %v407
        %v409 = vsub.f32 1.0, %v408
        %v410 = vmul.f32 %v407, %v409
        %v411 = vadd.f32 %v407, %v410
        %vm412 = vweird.f32 %v407
        %v413 = vsel %vm412, %v407, %v411
        %v414 = vmul.f32 %v385, %v413
        %v415 = vmul.f32 %v388, %v413
        %v416 = vmul.f32 %v391, %v413
        %v417 = vmul.f32 %v394, %v413
        %v418 = vmul.f32 %v397, %v413
        %v419 = vmul.f32 %v400, %v413
        %v420 = vmul.f32 %v403, %v413
        %v421 = vmul.f32 %v406, %v413
        %v422 = vsub.f32 %v372, %v414
        %v423 = vsub.f32 %v373, %v415
        %v424 = vsub.f32 %v374, %v416
        %v425 = vsub.f32 %v375, %v417
        %v426 = vsub.f32 %v376, %v418
        %v427 = vsub.f32 %v377, %v419
        %v428 = vsub.f32 %v378, %v420
        %v429 = vsub.f32 %v379, %v421
        %v430 = vmul.f32 %v422, %v422
        %v431 = vmul.f32 %v423, %v423
        %v432 = vmul.f32 %v424, %v424
        %v433 = vmul.f32 %v425, %v425
        %v434 = vmul.f32 %v426, %v426
        %v435 = vmul.f32 %v427, %v427
        %v436 = vmul.f32 %v428, %v428
        %v437 = vmul.f32 %v429, %v429
        %v438 = vsel %vm382, %v430, 0.0
        %439 = vadd.xlane.f32.xlu0 %v438
        %v440 = vpop.xlane.xlu0 %439
        %v441 = vsel %vm382, %v431, 0.0
        %442 = vadd.xlane.f32.xlu0 %v441
        %v443 = vpop.xlane.xlu0 %442
        %v444 = vsel %vm382, %v432, 0.0
        %445 = vadd.xlane.f32.xlu0 %v444
        %v446 = vpop.xlane.xlu0 %445
        %v447 = vsel %vm382, %v433, 0.0
        %448 = vadd.xlane.f32.xlu0 %v447
        %v449 = vpop.xlane.xlu0 %448
        %v450 = vsel %vm382, %v434, 0.0
        %451 = vadd.xlane.f32.xlu0 %v450
        %v452 = vpop.xlane.xlu0 %451
        %v453 = vsel %vm382, %v435, 0.0
        %454 = vadd.xlane.f32.xlu0 %v453
        %v455 = vpop.xlane.xlu0 %454
        %v456 = vsel %vm382, %v436, 0.0
        %457 = vadd.xlane.f32.xlu0 %v456
        %v458 = vpop.xlane.xlu0 %457
        %v459 = vsel %vm382, %v437, 0.0
        %460 = vadd.xlane.f32.xlu0 %v459
        %v461 = vpop.xlane.xlu0 %460
        %v462 = vmul.f32 %v440, %v413
        %v463 = vmul.f32 %v443, %v413
        %v464 = vmul.f32 %v446, %v413
        %v465 = vmul.f32 %v449, %v413
        %v466 = vmul.f32 %v452, %v413
        %v467 = vmul.f32 %v455, %v413
        %v468 = vmul.f32 %v458, %v413
        %v469 = vmul.f32 %v461, %v413
        %v470 = vadd.f32 %v462, 1e-06
        %v471 = vadd.f32 %v463, 1e-06
        %v472 = vadd.f32 %v464, 1e-06
        %v473 = vadd.f32 %v465, 1e-06
        %v474 = vadd.f32 %v466, 1e-06
        %v475 = vadd.f32 %v467, 1e-06
        %v476 = vadd.f32 %v468, 1e-06
        %v477 = vadd.f32 %v469, 1e-06
        %v478 = vrsqrt.pop %v470
        %v479 = vmul.f32 %v478, %v470
        %v480 = vmul.f32 %v479, %v478
        %v481 = vmul.f32 0.5, %v480
        %v482 = vsub.f32 1.5, %v481
        %v483 = vmul.f32 %v478, %v482
        %vm484 = vweird.f32 %v470
        %vm485 = vweird.f32 %v478
        %vm486 = vmor %vm484, %vm485
        %v487 = vsel %vm486, %v478, %v483
        %v488 = vrsqrt.pop %v471
        %v489 = vmul.f32 %v488, %v471
        %v490 = vmul.f32 %v489, %v488
        %v491 = vmul.f32 0.5, %v490
        %v492 = vsub.f32 1.5, %v491
        %v493 = vmul.f32 %v488, %v492
        %vm494 = vweird.f32 %v471
        %vm495 = vweird.f32 %v488
        %vm496 = vmor %vm494, %vm495
        %v497 = vsel %vm496, %v488, %v493
        %v498 = vrsqrt.pop %v472
        %v499 = vmul.f32 %v498, %v472
        %v500 = vmul.f32 %v499, %v498
        %v501 = vmul.f32 0.5, %v500
        %v502 = vsub.f32 1.5, %v501
        %v503 = vmul.f32 %v498, %v502
        %vm504 = vweird.f32 %v472
        %vm505 = vweird.f32 %v498
        %vm506 = vmor %vm504, %vm505
        %v507 = vsel %vm506, %v498, %v503
        %v508 = vrsqrt.pop %v473
        %v509 = vmul.f32 %v508, %v473
        %v510 = vmul.f32 %v509, %v508
        %v511 = vmul.f32 0.5, %v510
        %v512 = vsub.f32 1.5, %v511
        %v513 = vmul.f32 %v508, %v512
        %vm514 = vweird.f32 %v473
        %vm515 = vweird.f32 %v508
        %vm516 = vmor %vm514, %vm515
        %v517 = vsel %vm516, %v508, %v513
        %v518 = vrsqrt.pop %v474
        %v519 = vmul.f32 %v518, %v474
        %v520 = vmul.f32 %v519, %v518
        %v521 = vmul.f32 0.5, %v520
        %v522 = vsub.f32 1.5, %v521
        %v523 = vmul.f32 %v518, %v522
        %vm524 = vweird.f32 %v474
        %vm525 = vweird.f32 %v518
        %vm526 = vmor %vm524, %vm525
        %v527 = vsel %vm526, %v518, %v523
        %v528 = vrsqrt.pop %v475
        %v529 = vmul.f32 %v528, %v475
        %v530 = vmul.f32 %v529, %v528
        %v531 = vmul.f32 0.5, %v530
        %v532 = vsub.f32 1.5, %v531
        %v533 = vmul.f32 %v528, %v532
        %vm534 = vweird.f32 %v475
        %vm535 = vweird.f32 %v528
        %vm536 = vmor %vm534, %vm535
        %v537 = vsel %vm536, %v528, %v533
        %v538 = vrsqrt.pop %v476
        %v539 = vmul.f32 %v538, %v476
        %v540 = vmul.f32 %v539, %v538
        %v541 = vmul.f32 0.5, %v540
        %v542 = vsub.f32 1.5, %v541
        %v543 = vmul.f32 %v538, %v542
        %vm544 = vweird.f32 %v476
        %vm545 = vweird.f32 %v538
        %vm546 = vmor %vm544, %vm545
        %v547 = vsel %vm546, %v538, %v543
        %v548 = vrsqrt.pop %v477
        %v549 = vmul.f32 %v548, %v477
        %v550 = vmul.f32 %v549, %v548
        %v551 = vmul.f32 0.5, %v550
        %v552 = vsub.f32 1.5, %v551
        %v553 = vmul.f32 %v548, %v552
        %vm554 = vweird.f32 %v477
        %vm555 = vweird.f32 %v548
        %vm556 = vmor %vm554, %vm555
        %v557 = vsel %vm556, %v548, %v553
        %v558 = vmul.f32 %v422, %v487
        %v559 = vmul.f32 %v423, %v497
        %v560 = vmul.f32 %v424, %v507
        %v561 = vmul.f32 %v425, %v517
        %v562 = vmul.f32 %v426, %v527
        %v563 = vmul.f32 %v427, %v537
        %v564 = vmul.f32 %v428, %v547
        %v565 = vmul.f32 %v429, %v557
        %v566 = vperm.slane %v380, 0
        %v567 = vmul.f32 %v558, %v566
        %v568 = vmul.f32 %v559, %v566
        %v569 = vmul.f32 %v560, %v566
        %v570 = vmul.f32 %v561, %v566
        %v571 = vmul.f32 %v562, %v566
        %v572 = vmul.f32 %v563, %v566
        %v573 = vmul.f32 %v564, %v566
        %v574 = vmul.f32 %v565, %v566
        %v575 = vperm.slane %v381, 0
        %v576 = vadd.f32 %v567, %v575
        %v577 = vadd.f32 %v568, %v575
        %v578 = vadd.f32 %v569, %v575
        %v579 = vadd.f32 %v570, %v575
        %v580 = vadd.f32 %v571, %v575
        %v581 = vadd.f32 %v572, %v575
        %v582 = vadd.f32 %v573, %v575
        %v583 = vadd.f32 %v574, %v575
        %v584 = vpack.c.bf16 %v577, %v576
        %v585 = vpack.c.bf16 %v579, %v578
        %v586 = vpack.c.bf16 %v581, %v580
        %v587 = vpack.c.bf16 %v583, %v582
        %v588 = vld [vmem:[%s1] sm:$0xf]
        %v589 = vld [vmem:[%s1 + $0x4] sm:$0xf]
        %v590 = vld [vmem:[%s1 + $0x8] sm:$0xf]
        %v591 = vld [vmem:[%s1 + $0xc] sm:$0xf]
        %v592 = vld [vmem:[%s2] sm:$0x1]
        %v594 = vperm.slane %v592, 0
        %v600 = vunpack.c.l.b16 %v588
        %v601 = vunpack.c.l.b16 %v589
        %v602 = vunpack.c.l.b16 %v590
        %v603 = vunpack.c.l.b16 %v591
        %v604 = vpack.c.b16 %v601, %v600
        %v605 = vpack.c.b16 %v603, %v602
        %v609 = vsel %vm382, %v584, 0
        %v612 = vsel %vm382, %v585, 0
        %v615 = vsel %vm382, %v586, 0
        %v618 = vsel %vm382, %v587, 0
        %620 = vmatpush.bf16.msra.mxu0 0
        %621 = vmatpush.bf16.msra.mxu0 0
        %622 = vmatpush.bf16.msra.mxu0 0
        %623 = vmatpush.bf16.msra.mxu0 0
        %624 = vmatpush.bf16.msra.mxu0 0
        %625 = vmatpush.bf16.msra.mxu0 0
        %626 = vmatpush.bf16.msra.mxu0 %v605
        %627 = vmatpush.bf16.msra.mxu0 %v604
        %628 = vmatmul.bf16.gmra.mxu0 %v609
        %v629 = vpop.f32.mrf.mxu0
        %v630 = vadd.f32 %v594, %v629
        %v631 = vpop.f32.mrf.mxu0
        %v632 = vadd.f32 %v594, %v631
        %633 = vmatmul.bf16.gmra.mxu0 %v612
        %v634 = vpop.f32.mrf.mxu0
        %v635 = vadd.f32 %v594, %v634
        %v636 = vpop.f32.mrf.mxu0
        %v637 = vadd.f32 %v594, %v636
        %638 = vmatmul.bf16.gmra.mxu0 %v615
        %v639 = vpop.f32.mrf.mxu0
        %v640 = vadd.f32 %v594, %v639
        %v641 = vpop.f32.mrf.mxu0
        %v642 = vadd.f32 %v594, %v641
        %643 = vmatmul.bf16.gmra.mxu0 %v618
        %v644 = vpop.f32.mrf.mxu0
        %v645 = vadd.f32 %v594, %v644
        %v646 = vpop.f32.mrf.mxu0
        %v647 = vadd.f32 %v594, %v646
        %648 = vdwg.mxu0
        %s649 = scalar_lea.vmem %s1, 64
        %v650 = vld [vmem:[%s649] sm:$0xf]
        %v651 = vld [vmem:[%s649 + $0x4] sm:$0xf]
        %v652 = vld [vmem:[%s649 + $0x8] sm:$0xf]
        %v653 = vld [vmem:[%s649 + $0xc] sm:$0xf]
        %s654 = scalar_lea.vmem %s2, 4
        %v655 = vld [vmem:[%s654] sm:$0x1]
        %v657 = vperm.slane %v655, 0
        %v663 = vunpack.c.l.b16 %v650
        %v664 = vunpack.c.l.b16 %v651
        %v665 = vunpack.c.l.b16 %v652
        %v666 = vunpack.c.l.b16 %v653
        %v667 = vpack.c.b16 %v664, %v663
        %v668 = vpack.c.b16 %v666, %v665
        %671 = vmatpush.bf16.msra.mxu0 0
        %672 = vmatpush.bf16.msra.mxu0 0
        %673 = vmatpush.bf16.msra.mxu0 0
        %674 = vmatpush.bf16.msra.mxu0 0
        %675 = vmatpush.bf16.msra.mxu0 0
        %676 = vmatpush.bf16.msra.mxu0 0
        %677 = vmatpush.bf16.msra.mxu0 %v668
        %678 = vmatpush.bf16.msra.mxu0 %v667
        %679 = vmatmul.bf16.gmra.mxu0 %v609
        %v680 = vpop.f32.mrf.mxu0
        %v681 = vadd.f32 %v657, %v680
        %v682 = vpop.f32.mrf.mxu0
        %v683 = vadd.f32 %v657, %v682
        %684 = vmatmul.bf16.gmra.mxu0 %v612
        %v685 = vpop.f32.mrf.mxu0
        %v686 = vadd.f32 %v657, %v685
        %v687 = vpop.f32.mrf.mxu0
        %v688 = vadd.f32 %v657, %v687
        %689 = vmatmul.bf16.gmra.mxu0 %v615
        %v690 = vpop.f32.mrf.mxu0
        %v691 = vadd.f32 %v657, %v690
        %v692 = vpop.f32.mrf.mxu0
        %v693 = vadd.f32 %v657, %v692
        %694 = vmatmul.bf16.gmra.mxu0 %v618
        %v695 = vpop.f32.mrf.mxu0
        %v696 = vadd.f32 %v657, %v695
        %v697 = vpop.f32.mrf.mxu0
        %v698 = vadd.f32 %v657, %v697
        %699 = vdwg.mxu0
        %s700 = scalar_lea.vmem %s1, 128
        %v701 = vld [vmem:[%s700] sm:$0xf]
        %v702 = vld [vmem:[%s700 + $0x4] sm:$0xf]
        %v703 = vld [vmem:[%s700 + $0x8] sm:$0xf]
        %v704 = vld [vmem:[%s700 + $0xc] sm:$0xf]
        %s705 = scalar_lea.vmem %s2, 8
        %v706 = vld [vmem:[%s705] sm:$0x1]
        %v708 = vperm.slane %v706, 0
        %v714 = vunpack.c.l.b16 %v701
        %v715 = vunpack.c.l.b16 %v702
        %v716 = vunpack.c.l.b16 %v703
        %v717 = vunpack.c.l.b16 %v704
        %v718 = vpack.c.b16 %v715, %v714
        %v719 = vpack.c.b16 %v717, %v716
        %722 = vmatpush.bf16.msra.mxu0 0
        %723 = vmatpush.bf16.msra.mxu0 0
        %724 = vmatpush.bf16.msra.mxu0 0
        %725 = vmatpush.bf16.msra.mxu0 0
        %726 = vmatpush.bf16.msra.mxu0 0
        %727 = vmatpush.bf16.msra.mxu0 0
        %728 = vmatpush.bf16.msra.mxu0 %v719
        %729 = vmatpush.bf16.msra.mxu0 %v718
        %730 = vmatmul.bf16.gmra.mxu0 %v609
        %v731 = vpop.f32.mrf.mxu0
        %v732 = vadd.f32 %v708, %v731
        %v733 = vpop.f32.mrf.mxu0
        %v734 = vadd.f32 %v708, %v733
        %735 = vmatmul.bf16.gmra.mxu0 %v612
        %v736 = vpop.f32.mrf.mxu0
        %v737 = vadd.f32 %v708, %v736
        %v738 = vpop.f32.mrf.mxu0
        %v739 = vadd.f32 %v708, %v738
        %740 = vmatmul.bf16.gmra.mxu0 %v615
        %v741 = vpop.f32.mrf.mxu0
        %v742 = vadd.f32 %v708, %v741
        %v743 = vpop.f32.mrf.mxu0
        %v744 = vadd.f32 %v708, %v743
        %745 = vmatmul.bf16.gmra.mxu0 %v618
        %v746 = vpop.f32.mrf.mxu0
        %v747 = vadd.f32 %v708, %v746
        %v748 = vpop.f32.mrf.mxu0
        %v749 = vadd.f32 %v708, %v748
        %750 = vdwg.mxu0
        %v751 = vpack.c.bf16 %v632, %v630
        %v752 = vpack.c.bf16 %v637, %v635
        %v753 = vpack.c.bf16 %v642, %v640
        %v754 = vpack.c.bf16 %v647, %v645
        %v755 = vpack.c.bf16 %v683, %v681
        %v756 = vpack.c.bf16 %v688, %v686
        %v757 = vpack.c.bf16 %v693, %v691
        %v758 = vpack.c.bf16 %v698, %v696
        %vm759 = vcmask 64512
        %v761 = vsel %vm759, %v751, 0
        %v764 = vsel %vm759, %v752, 0
        %v767 = vsel %vm759, %v753, 0
        %v770 = vsel %vm759, %v754, 0
        %v773 = vsel %vm759, %v755, 0
        %v776 = vsel %vm759, %v756, 0
        %v779 = vsel %vm759, %v757, 0
        %v782 = vsel %vm759, %v758, 0
        %784 = vmatpush.bf16.xpose.msra.mxu0 0
        %785 = vmatpush.bf16.xpose.msra.mxu0 0
        %786 = vmatpush.bf16.xpose.msra.mxu0 0
        %787 = vmatpush.bf16.xpose.msra.mxu0 0
        %788 = vmatpush.bf16.xpose.msra.mxu0 %v782
        %789 = vmatpush.bf16.xpose.msra.mxu0 %v779
        %790 = vmatpush.bf16.xpose.msra.mxu0 %v776
        %791 = vmatpush.bf16.xpose.msra.mxu0 %v773
        %792 = vmatmul.bf16.gmra.mxu0 %v761
        %v793 = vpop.f32.mrf.mxu0
        %v794 = vadd.f32 0.0, %v793
        %v795 = vpop.f32.mrf.mxu0
        %v796 = vadd.f32 0.0, %v795
        %797 = vmatmul.bf16.gmra.mxu0 %v764
        %v798 = vpop.f32.mrf.mxu0
        %v799 = vadd.f32 0.0, %v798
        %v800 = vpop.f32.mrf.mxu0
        %v801 = vadd.f32 0.0, %v800
        %802 = vmatmul.bf16.gmra.mxu0 %v767
        %v803 = vpop.f32.mrf.mxu0
        %v804 = vadd.f32 0.0, %v803
        %v805 = vpop.f32.mrf.mxu0
        %v806 = vadd.f32 0.0, %v805
        %807 = vmatmul.bf16.gmra.mxu0 %v770
        %v808 = vpop.f32.mrf.mxu0
        %v809 = vadd.f32 0.0, %v808
        %v810 = vpop.f32.mrf.mxu0
        %v811 = vadd.f32 0.0, %v810
        %812 = vdwg.mxu0
        %v813 = vmul.f32 %v794, 0.35355338
        %v814 = vmul.f32 %v796, 0.35355338
        %v815 = vmul.f32 %v799, 0.35355338
        %v816 = vmul.f32 %v801, 0.35355338
        %v817 = vmul.f32 %v804, 0.35355338
        %v818 = vmul.f32 %v806, 0.35355338
        %v819 = vmul.f32 %v809, 0.35355338
        %v820 = vmul.f32 %v811, 0.35355338
        %vm821 = vcmask 523264
        %v822 = vsel %vm821, %v813, -inf
        %823 = vmax.xlane.f32.xlu0 %v822
        %v824 = vpop.xlane.xlu0 %823
        %v825 = vsel %vm821, %v814, -inf
        %826 = vmax.xlane.f32.xlu0 %v825
        %v827 = vpop.xlane.xlu0 %826
        %v828 = vsel %vm821, %v815, -inf
        %829 = vmax.xlane.f32.xlu0 %v828
        %v830 = vpop.xlane.xlu0 %829
        %v831 = vsel %vm821, %v816, -inf
        %832 = vmax.xlane.f32.xlu0 %v831
        %v833 = vpop.xlane.xlu0 %832
        %v834 = vsel %vm821, %v817, -inf
        %835 = vmax.xlane.f32.xlu0 %v834
        %v836 = vpop.xlane.xlu0 %835
        %v837 = vsel %vm821, %v818, -inf
        %838 = vmax.xlane.f32.xlu0 %v837
        %v839 = vpop.xlane.xlu0 %838
        %v840 = vsel %vm821, %v819, -inf
        %841 = vmax.xlane.f32.xlu0 %v840
        %v842 = vpop.xlane.xlu0 %841
        %v843 = vsel %vm821, %v820, -inf
        %844 = vmax.xlane.f32.xlu0 %v843
        %v845 = vpop.xlane.xlu0 %844
        %v846 = vsub.f32 %v813, %v824
        %v847 = vsub.f32 %v814, %v827
        %v848 = vsub.f32 %v815, %v830
        %v849 = vsub.f32 %v816, %v833
        %v850 = vsub.f32 %v817, %v836
        %v851 = vsub.f32 %v818, %v839
        %v852 = vsub.f32 %v819, %v842
        %v853 = vsub.f32 %v820, %v845
        %v854 = vmul.f32 %v846, 1.442695
        %v855 = vpow.pop %v854
        %v856 = vmul.f32 %v847, 1.442695
        %v857 = vpow.pop %v856
        %v858 = vmul.f32 %v848, 1.442695
        %v859 = vpow.pop %v858
        %v860 = vmul.f32 %v849, 1.442695
        %v861 = vpow.pop %v860
        %v862 = vmul.f32 %v850, 1.442695
        %v863 = vpow.pop %v862
        %v864 = vmul.f32 %v851, 1.442695
        %v865 = vpow.pop %v864
        %v866 = vmul.f32 %v852, 1.442695
        %v867 = vpow.pop %v866
        %v868 = vmul.f32 %v853, 1.442695
        %v869 = vpow.pop %v868
        %v870 = vsel %vm821, %v855, 0.0
        %871 = vadd.xlane.f32.xlu0 %v870
        %v872 = vpop.xlane.xlu0 %871
        %v873 = vsel %vm821, %v857, 0.0
        %874 = vadd.xlane.f32.xlu0 %v873
        %v875 = vpop.xlane.xlu0 %874
        %v876 = vsel %vm821, %v859, 0.0
        %877 = vadd.xlane.f32.xlu0 %v876
        %v878 = vpop.xlane.xlu0 %877
        %v879 = vsel %vm821, %v861, 0.0
        %880 = vadd.xlane.f32.xlu0 %v879
        %v881 = vpop.xlane.xlu0 %880
        %v882 = vsel %vm821, %v863, 0.0
        %883 = vadd.xlane.f32.xlu0 %v882
        %v884 = vpop.xlane.xlu0 %883
        %v885 = vsel %vm821, %v865, 0.0
        %886 = vadd.xlane.f32.xlu0 %v885
        %v887 = vpop.xlane.xlu0 %886
        %v888 = vsel %vm821, %v867, 0.0
        %889 = vadd.xlane.f32.xlu0 %v888
        %v890 = vpop.xlane.xlu0 %889
        %v891 = vsel %vm821, %v869, 0.0
        %892 = vadd.xlane.f32.xlu0 %v891
        %v893 = vpop.xlane.xlu0 %892
        %v894 = vrcp.pop %v872
        %v895 = vrcp.pop %v875
        %v896 = vrcp.pop %v878
        %v897 = vrcp.pop %v881
        %v898 = vrcp.pop %v884
        %v899 = vrcp.pop %v887
        %v900 = vrcp.pop %v890
        %v901 = vrcp.pop %v893
        %v902 = vmul.f32 %v855, %v894
        %v903 = vmul.f32 %v857, %v895
        %v904 = vmul.f32 %v859, %v896
        %v905 = vmul.f32 %v861, %v897
        %v906 = vmul.f32 %v863, %v898
        %v907 = vmul.f32 %v865, %v899
        %v908 = vmul.f32 %v867, %v900
        %v909 = vmul.f32 %v869, %v901
        %v910 = vpack.c.bf16 %v902, %v902
        %v911 = vpack.c.bf16 %v903, %v903
        %v912 = vpack.c.bf16 %v904, %v904
        %v913 = vpack.c.bf16 %v905, %v905
        %v914 = vpack.c.bf16 %v906, %v906
        %v915 = vpack.c.bf16 %v907, %v907
        %v916 = vpack.c.bf16 %v908, %v908
        %v917 = vpack.c.bf16 %v909, %v909
        %vm918 = vcmask 519168
        %919 = vst.msk [vmem:[%s360] sm:$0xf] %vm918, %v910
        %920 = vst.msk [vmem:[%s360 + $0x8] sm:$0xf] %vm918, %v911
        %921 = vst.msk [vmem:[%s360 + $0x10] sm:$0xf] %vm918, %v912
        %922 = vst.msk [vmem:[%s360 + $0x18] sm:$0xf] %vm918, %v913
        %923 = vst.msk [vmem:[%s360 + $0x20] sm:$0xf] %vm918, %v914
        %924 = vst.msk [vmem:[%s360 + $0x28] sm:$0xf] %vm918, %v915
        %925 = vst.msk [vmem:[%s360 + $0x30] sm:$0xf] %vm918, %v916
        %926 = vst.msk [vmem:[%s360 + $0x38] sm:$0xf] %vm918, %v917
        %v927 = vpack.c.bf16 %v734, %v732
        %v928 = vpack.c.bf16 %v739, %v737
        %v929 = vpack.c.bf16 %v744, %v742
        %v930 = vpack.c.bf16 %v749, %v747
        %v939 = vunpack.c.l.b16 %v910
        %v940 = vunpack.c.l.b16 %v911
        %v941 = vunpack.c.l.b16 %v912
        %v942 = vunpack.c.l.b16 %v913
        %v943 = vunpack.c.l.b16 %v914
        %v944 = vunpack.c.l.b16 %v915
        %v945 = vunpack.c.l.b16 %v916
        %v946 = vunpack.c.l.b16 %v917
        %v947 = vpack.c.b16 %v940, %v939
        %v948 = vpack.c.b16 %v942, %v941
        %v949 = vpack.c.b16 %v944, %v943
        %v950 = vpack.c.b16 %v946, %v945
        %v952 = vsel %vm821, %v947, 0
        %v955 = vsel %vm821, %v948, 0
        %v958 = vsel %vm821, %v949, 0
        %v961 = vsel %vm821, %v950, 0
        %963 = vmatpush.bf16.msra.mxu0 0
        %964 = vmatpush.bf16.msra.mxu0 0
        %965 = vmatpush.bf16.msra.mxu0 0
        %966 = vmatpush.bf16.msra.mxu0 0
        %967 = vmatpush.bf16.msra.mxu0 %v930
        %968 = vmatpush.bf16.msra.mxu0 %v929
        %969 = vmatpush.bf16.msra.mxu0 %v928
        %970 = vmatpush.bf16.msra.mxu0 %v927
        %971 = vmatmul.bf16.gmra.mxu0 %v952
        %v972 = vpop.f32.mrf.mxu0
        %v973 = vadd.f32 0.0, %v972
        %v974 = vpop.f32.mrf.mxu0
        %v975 = vadd.f32 0.0, %v974
        %976 = vmatmul.bf16.gmra.mxu0 %v955
        %v977 = vpop.f32.mrf.mxu0
        %v978 = vadd.f32 0.0, %v977
        %v979 = vpop.f32.mrf.mxu0
        %v980 = vadd.f32 0.0, %v979
        %981 = vmatmul.bf16.gmra.mxu0 %v958
        %v982 = vpop.f32.mrf.mxu0
        %v983 = vadd.f32 0.0, %v982
        %v984 = vpop.f32.mrf.mxu0
        %v985 = vadd.f32 0.0, %v984
        %986 = vmatmul.bf16.gmra.mxu0 %v961
        %v987 = vpop.f32.mrf.mxu0
        %v988 = vadd.f32 0.0, %v987
        %v989 = vpop.f32.mrf.mxu0
        %v990 = vadd.f32 0.0, %v989
        %991 = vdwg.mxu0
        %v992 = vpack.c.bf16 %v975, %v973
        %v993 = vpack.c.bf16 %v980, %v978
        %v994 = vpack.c.bf16 %v985, %v983
        %v995 = vpack.c.bf16 %v990, %v988
        %v996 = vld [vmem:[%s3] sm:$0xf]
        %s997 = scalar_lea.vmem %s1, 16
        %v998 = vld [vmem:[%s997] sm:$0xf]
        %v999 = vld [vmem:[%s997 + $0x4] sm:$0xf]
        %v1000 = vld [vmem:[%s997 + $0x8] sm:$0xf]
        %v1001 = vld [vmem:[%s997 + $0xc] sm:$0xf]
        %s1002 = scalar_lea.vmem %s2, 1
        %v1003 = vld [vmem:[%s1002] sm:$0x1]
        %v1005 = vperm.slane %v1003, 0
        %v1011 = vunpack.c.l.b16 %v998
        %v1012 = vunpack.c.l.b16 %v999
        %v1013 = vunpack.c.l.b16 %v1000
        %v1014 = vunpack.c.l.b16 %v1001
        %v1015 = vpack.c.b16 %v1012, %v1011
        %v1016 = vpack.c.b16 %v1014, %v1013
        %1019 = vmatpush.bf16.msra.mxu0 0
        %1020 = vmatpush.bf16.msra.mxu0 0
        %1021 = vmatpush.bf16.msra.mxu0 0
        %1022 = vmatpush.bf16.msra.mxu0 0
        %1023 = vmatpush.bf16.msra.mxu0 0
        %1024 = vmatpush.bf16.msra.mxu0 0
        %1025 = vmatpush.bf16.msra.mxu0 %v1016
        %1026 = vmatpush.bf16.msra.mxu0 %v1015
        %1027 = vmatmul.bf16.gmra.mxu0 %v609
        %v1028 = vpop.f32.mrf.mxu0
        %v1029 = vadd.f32 %v1005, %v1028
        %v1030 = vpop.f32.mrf.mxu0
        %v1031 = vadd.f32 %v1005, %v1030
        %1032 = vmatmul.bf16.gmra.mxu0 %v612
        %v1033 = vpop.f32.mrf.mxu0
        %v1034 = vadd.f32 %v1005, %v1033
        %v1035 = vpop.f32.mrf.mxu0
        %v1036 = vadd.f32 %v1005, %v1035
        %1037 = vmatmul.bf16.gmra.mxu0 %v615
        %v1038 = vpop.f32.mrf.mxu0
        %v1039 = vadd.f32 %v1005, %v1038
        %v1040 = vpop.f32.mrf.mxu0
        %v1041 = vadd.f32 %v1005, %v1040
        %1042 = vmatmul.bf16.gmra.mxu0 %v618
        %v1043 = vpop.f32.mrf.mxu0
        %v1044 = vadd.f32 %v1005, %v1043
        %v1045 = vpop.f32.mrf.mxu0
        %v1046 = vadd.f32 %v1005, %v1045
        %1047 = vdwg.mxu0
        %s1048 = scalar_lea.vmem %s1, 80
        %v1049 = vld [vmem:[%s1048] sm:$0xf]
        %v1050 = vld [vmem:[%s1048 + $0x4] sm:$0xf]
        %v1051 = vld [vmem:[%s1048 + $0x8] sm:$0xf]
        %v1052 = vld [vmem:[%s1048 + $0xc] sm:$0xf]
        %s1053 = scalar_lea.vmem %s2, 5
        %v1054 = vld [vmem:[%s1053] sm:$0x1]
        %v1056 = vperm.slane %v1054, 0
        %v1062 = vunpack.c.l.b16 %v1049
        %v1063 = vunpack.c.l.b16 %v1050
        %v1064 = vunpack.c.l.b16 %v1051
        %v1065 = vunpack.c.l.b16 %v1052
        %v1066 = vpack.c.b16 %v1063, %v1062
        %v1067 = vpack.c.b16 %v1065, %v1064
        %1070 = vmatpush.bf16.msra.mxu0 0
        %1071 = vmatpush.bf16.msra.mxu0 0
        %1072 = vmatpush.bf16.msra.mxu0 0
        %1073 = vmatpush.bf16.msra.mxu0 0
        %1074 = vmatpush.bf16.msra.mxu0 0
        %1075 = vmatpush.bf16.msra.mxu0 0
        %1076 = vmatpush.bf16.msra.mxu0 %v1067
        %1077 = vmatpush.bf16.msra.mxu0 %v1066
        %1078 = vmatmul.bf16.gmra.mxu0 %v609
        %v1079 = vpop.f32.mrf.mxu0
        %v1080 = vadd.f32 %v1056, %v1079
        %v1081 = vpop.f32.mrf.mxu0
        %v1082 = vadd.f32 %v1056, %v1081
        %1083 = vmatmul.bf16.gmra.mxu0 %v612
        %v1084 = vpop.f32.mrf.mxu0
        %v1085 = vadd.f32 %v1056, %v1084
        %v1086 = vpop.f32.mrf.mxu0
        %v1087 = vadd.f32 %v1056, %v1086
        %1088 = vmatmul.bf16.gmra.mxu0 %v615
        %v1089 = vpop.f32.mrf.mxu0
        %v1090 = vadd.f32 %v1056, %v1089
        %v1091 = vpop.f32.mrf.mxu0
        %v1092 = vadd.f32 %v1056, %v1091
        %1093 = vmatmul.bf16.gmra.mxu0 %v618
        %v1094 = vpop.f32.mrf.mxu0
        %v1095 = vadd.f32 %v1056, %v1094
        %v1096 = vpop.f32.mrf.mxu0
        %v1097 = vadd.f32 %v1056, %v1096
        %1098 = vdwg.mxu0
        %s1099 = scalar_lea.vmem %s1, 144
        %v1100 = vld [vmem:[%s1099] sm:$0xf]
        %v1101 = vld [vmem:[%s1099 + $0x4] sm:$0xf]
        %v1102 = vld [vmem:[%s1099 + $0x8] sm:$0xf]
        %v1103 = vld [vmem:[%s1099 + $0xc] sm:$0xf]
        %s1104 = scalar_lea.vmem %s2, 9
        %v1105 = vld [vmem:[%s1104] sm:$0x1]
        %v1107 = vperm.slane %v1105, 0
        %v1113 = vunpack.c.l.b16 %v1100
        %v1114 = vunpack.c.l.b16 %v1101
        %v1115 = vunpack.c.l.b16 %v1102
        %v1116 = vunpack.c.l.b16 %v1103
        %v1117 = vpack.c.b16 %v1114, %v1113
        %v1118 = vpack.c.b16 %v1116, %v1115
        %1121 = vmatpush.bf16.msra.mxu0 0
        %1122 = vmatpush.bf16.msra.mxu0 0
        %1123 = vmatpush.bf16.msra.mxu0 0
        %1124 = vmatpush.bf16.msra.mxu0 0
        %1125 = vmatpush.bf16.msra.mxu0 0
        %1126 = vmatpush.bf16.msra.mxu0 0
        %1127 = vmatpush.bf16.msra.mxu0 %v1118
        %1128 = vmatpush.bf16.msra.mxu0 %v1117
        %1129 = vmatmul.bf16.gmra.mxu0 %v609
        %v1130 = vpop.f32.mrf.mxu0
        %v1131 = vadd.f32 %v1107, %v1130
        %v1132 = vpop.f32.mrf.mxu0
        %v1133 = vadd.f32 %v1107, %v1132
        %1134 = vmatmul.bf16.gmra.mxu0 %v612
        %v1135 = vpop.f32.mrf.mxu0
        %v1136 = vadd.f32 %v1107, %v1135
        %v1137 = vpop.f32.mrf.mxu0
        %v1138 = vadd.f32 %v1107, %v1137
        %1139 = vmatmul.bf16.gmra.mxu0 %v615
        %v1140 = vpop.f32.mrf.mxu0
        %v1141 = vadd.f32 %v1107, %v1140
        %v1142 = vpop.f32.mrf.mxu0
        %v1143 = vadd.f32 %v1107, %v1142
        %1144 = vmatmul.bf16.gmra.mxu0 %v618
        %v1145 = vpop.f32.mrf.mxu0
        %v1146 = vadd.f32 %v1107, %v1145
        %v1147 = vpop.f32.mrf.mxu0
        %v1148 = vadd.f32 %v1107, %v1147
        %1149 = vdwg.mxu0
        %v1150 = vpack.c.bf16 %v1031, %v1029
        %v1151 = vpack.c.bf16 %v1036, %v1034
        %v1152 = vpack.c.bf16 %v1041, %v1039
        %v1153 = vpack.c.bf16 %v1046, %v1044
        %v1154 = vpack.c.bf16 %v1082, %v1080
        %v1155 = vpack.c.bf16 %v1087, %v1085
        %v1156 = vpack.c.bf16 %v1092, %v1090
        %v1157 = vpack.c.bf16 %v1097, %v1095
        %v1159 = vsel %vm759, %v1150, 0
        %v1162 = vsel %vm759, %v1151, 0
        %v1165 = vsel %vm759, %v1152, 0
        %v1168 = vsel %vm759, %v1153, 0
        %v1171 = vsel %vm759, %v1154, 0
        %v1174 = vsel %vm759, %v1155, 0
        %v1177 = vsel %vm759, %v1156, 0
        %v1180 = vsel %vm759, %v1157, 0
        %1182 = vmatpush.bf16.xpose.msra.mxu0 0
        %1183 = vmatpush.bf16.xpose.msra.mxu0 0
        %1184 = vmatpush.bf16.xpose.msra.mxu0 0
        %1185 = vmatpush.bf16.xpose.msra.mxu0 0
        %1186 = vmatpush.bf16.xpose.msra.mxu0 %v1180
        %1187 = vmatpush.bf16.xpose.msra.mxu0 %v1177
        %1188 = vmatpush.bf16.xpose.msra.mxu0 %v1174
        %1189 = vmatpush.bf16.xpose.msra.mxu0 %v1171
        %1190 = vmatmul.bf16.gmra.mxu0 %v1159
        %v1191 = vpop.f32.mrf.mxu0
        %v1192 = vadd.f32 0.0, %v1191
        %v1193 = vpop.f32.mrf.mxu0
        %v1194 = vadd.f32 0.0, %v1193
        %1195 = vmatmul.bf16.gmra.mxu0 %v1162
        %v1196 = vpop.f32.mrf.mxu0
        %v1197 = vadd.f32 0.0, %v1196
        %v1198 = vpop.f32.mrf.mxu0
        %v1199 = vadd.f32 0.0, %v1198
        %1200 = vmatmul.bf16.gmra.mxu0 %v1165
        %v1201 = vpop.f32.mrf.mxu0
        %v1202 = vadd.f32 0.0, %v1201
        %v1203 = vpop.f32.mrf.mxu0
        %v1204 = vadd.f32 0.0, %v1203
        %1205 = vmatmul.bf16.gmra.mxu0 %v1168
        %v1206 = vpop.f32.mrf.mxu0
        %v1207 = vadd.f32 0.0, %v1206
        %v1208 = vpop.f32.mrf.mxu0
        %v1209 = vadd.f32 0.0, %v1208
        %1210 = vdwg.mxu0
        %v1211 = vmul.f32 %v1192, 0.35355338
        %v1212 = vmul.f32 %v1194, 0.35355338
        %v1213 = vmul.f32 %v1197, 0.35355338
        %v1214 = vmul.f32 %v1199, 0.35355338
        %v1215 = vmul.f32 %v1202, 0.35355338
        %v1216 = vmul.f32 %v1204, 0.35355338
        %v1217 = vmul.f32 %v1207, 0.35355338
        %v1218 = vmul.f32 %v1209, 0.35355338
        %v1219 = vsel %vm821, %v1211, -inf
        %1220 = vmax.xlane.f32.xlu0 %v1219
        %v1221 = vpop.xlane.xlu0 %1220
        %v1222 = vsel %vm821, %v1212, -inf
        %1223 = vmax.xlane.f32.xlu0 %v1222
        %v1224 = vpop.xlane.xlu0 %1223
        %v1225 = vsel %vm821, %v1213, -inf
        %1226 = vmax.xlane.f32.xlu0 %v1225
        %v1227 = vpop.xlane.xlu0 %1226
        %v1228 = vsel %vm821, %v1214, -inf
        %1229 = vmax.xlane.f32.xlu0 %v1228
        %v1230 = vpop.xlane.xlu0 %1229
        %v1231 = vsel %vm821, %v1215, -inf
        %1232 = vmax.xlane.f32.xlu0 %v1231
        %v1233 = vpop.xlane.xlu0 %1232
        %v1234 = vsel %vm821, %v1216, -inf
        %1235 = vmax.xlane.f32.xlu0 %v1234
        %v1236 = vpop.xlane.xlu0 %1235
        %v1237 = vsel %vm821, %v1217, -inf
        %1238 = vmax.xlane.f32.xlu0 %v1237
        %v1239 = vpop.xlane.xlu0 %1238
        %v1240 = vsel %vm821, %v1218, -inf
        %1241 = vmax.xlane.f32.xlu0 %v1240
        %v1242 = vpop.xlane.xlu0 %1241
        %v1243 = vsub.f32 %v1211, %v1221
        %v1244 = vsub.f32 %v1212, %v1224
        %v1245 = vsub.f32 %v1213, %v1227
        %v1246 = vsub.f32 %v1214, %v1230
        %v1247 = vsub.f32 %v1215, %v1233
        %v1248 = vsub.f32 %v1216, %v1236
        %v1249 = vsub.f32 %v1217, %v1239
        %v1250 = vsub.f32 %v1218, %v1242
        %v1251 = vmul.f32 %v1243, 1.442695
        %v1252 = vpow.pop %v1251
        %v1253 = vmul.f32 %v1244, 1.442695
        %v1254 = vpow.pop %v1253
        %v1255 = vmul.f32 %v1245, 1.442695
        %v1256 = vpow.pop %v1255
        %v1257 = vmul.f32 %v1246, 1.442695
        %v1258 = vpow.pop %v1257
        %v1259 = vmul.f32 %v1247, 1.442695
        %v1260 = vpow.pop %v1259
        %v1261 = vmul.f32 %v1248, 1.442695
        %v1262 = vpow.pop %v1261
        %v1263 = vmul.f32 %v1249, 1.442695
        %v1264 = vpow.pop %v1263
        %v1265 = vmul.f32 %v1250, 1.442695
        %v1266 = vpow.pop %v1265
        %v1267 = vsel %vm821, %v1252, 0.0
        %1268 = vadd.xlane.f32.xlu0 %v1267
        %v1269 = vpop.xlane.xlu0 %1268
        %v1270 = vsel %vm821, %v1254, 0.0
        %1271 = vadd.xlane.f32.xlu0 %v1270
        %v1272 = vpop.xlane.xlu0 %1271
        %v1273 = vsel %vm821, %v1256, 0.0
        %1274 = vadd.xlane.f32.xlu0 %v1273
        %v1275 = vpop.xlane.xlu0 %1274
        %v1276 = vsel %vm821, %v1258, 0.0
        %1277 = vadd.xlane.f32.xlu0 %v1276
        %v1278 = vpop.xlane.xlu0 %1277
        %v1279 = vsel %vm821, %v1260, 0.0
        %1280 = vadd.xlane.f32.xlu0 %v1279
        %v1281 = vpop.xlane.xlu0 %1280
        %v1282 = vsel %vm821, %v1262, 0.0
        %1283 = vadd.xlane.f32.xlu0 %v1282
        %v1284 = vpop.xlane.xlu0 %1283
        %v1285 = vsel %vm821, %v1264, 0.0
        %1286 = vadd.xlane.f32.xlu0 %v1285
        %v1287 = vpop.xlane.xlu0 %1286
        %v1288 = vsel %vm821, %v1266, 0.0
        %1289 = vadd.xlane.f32.xlu0 %v1288
        %v1290 = vpop.xlane.xlu0 %1289
        %v1291 = vrcp.pop %v1269
        %v1292 = vrcp.pop %v1272
        %v1293 = vrcp.pop %v1275
        %v1294 = vrcp.pop %v1278
        %v1295 = vrcp.pop %v1281
        %v1296 = vrcp.pop %v1284
        %v1297 = vrcp.pop %v1287
        %v1298 = vrcp.pop %v1290
        %v1299 = vmul.f32 %v1252, %v1291
        %v1300 = vmul.f32 %v1254, %v1292
        %v1301 = vmul.f32 %v1256, %v1293
        %v1302 = vmul.f32 %v1258, %v1294
        %v1303 = vmul.f32 %v1260, %v1295
        %v1304 = vmul.f32 %v1262, %v1296
        %v1305 = vmul.f32 %v1264, %v1297
        %v1306 = vmul.f32 %v1266, %v1298
        %v1307 = vpack.c.bf16 %v1299, %v1299
        %v1308 = vpack.c.bf16 %v1300, %v1300
        %v1309 = vpack.c.bf16 %v1301, %v1301
        %v1310 = vpack.c.bf16 %v1302, %v1302
        %v1311 = vpack.c.bf16 %v1303, %v1303
        %v1312 = vpack.c.bf16 %v1304, %v1304
        %v1313 = vpack.c.bf16 %v1305, %v1305
        %v1314 = vpack.c.bf16 %v1306, %v1306
        %1323 = vrot.lane.b32.xlu0 %v1307, 64
        %v1324 = vpop.permute.xlu0 %1323
        %1325 = vrot.lane.b32.xlu0 %v1308, 64
        %v1326 = vpop.permute.xlu0 %1325
        %1327 = vrot.lane.b32.xlu0 %v1309, 64
        %v1328 = vpop.permute.xlu0 %1327
        %1329 = vrot.lane.b32.xlu0 %v1310, 64
        %v1330 = vpop.permute.xlu0 %1329
        %1331 = vrot.lane.b32.xlu0 %v1311, 64
        %v1332 = vpop.permute.xlu0 %1331
        %1333 = vrot.lane.b32.xlu0 %v1312, 64
        %v1334 = vpop.permute.xlu0 %1333
        %1335 = vrot.lane.b32.xlu0 %v1313, 64
        %v1336 = vpop.permute.xlu0 %1335
        %1337 = vrot.lane.b32.xlu0 %v1314, 64
        %v1338 = vpop.permute.xlu0 %1337
        %vm1347 = vcmask 1043968
        %1348 = vst.msk [vmem:[%s360] sm:$0xf] %vm1347, %v1324
        %1349 = vst.msk [vmem:[%s360 + $0x8] sm:$0xf] %vm1347, %v1326
        %1350 = vst.msk [vmem:[%s360 + $0x10] sm:$0xf] %vm1347, %v1328
        %1351 = vst.msk [vmem:[%s360 + $0x18] sm:$0xf] %vm1347, %v1330
        %1352 = vst.msk [vmem:[%s360 + $0x20] sm:$0xf] %vm1347, %v1332
        %1353 = vst.msk [vmem:[%s360 + $0x28] sm:$0xf] %vm1347, %v1334
        %1354 = vst.msk [vmem:[%s360 + $0x30] sm:$0xf] %vm1347, %v1336
        %1355 = vst.msk [vmem:[%s360 + $0x38] sm:$0xf] %vm1347, %v1338
        %v1356 = vpack.c.bf16 %v1133, %v1131
        %v1357 = vpack.c.bf16 %v1138, %v1136
        %v1358 = vpack.c.bf16 %v1143, %v1141
        %v1359 = vpack.c.bf16 %v1148, %v1146
        %v1360 = vunpack.c.l.b16 %v1307
        %v1361 = vunpack.c.l.b16 %v1308
        %v1362 = vunpack.c.l.b16 %v1309
        %v1363 = vunpack.c.l.b16 %v1310
        %v1364 = vunpack.c.l.b16 %v1311
        %v1365 = vunpack.c.l.b16 %v1312
        %v1366 = vunpack.c.l.b16 %v1313
        %v1367 = vunpack.c.l.b16 %v1314
        %v1368 = vpack.c.b16 %v1361, %v1360
        %v1369 = vpack.c.b16 %v1363, %v1362
        %v1370 = vpack.c.b16 %v1365, %v1364
        %v1371 = vpack.c.b16 %v1367, %v1366
        %v1373 = vsel %vm821, %v1368, 0
        %v1376 = vsel %vm821, %v1369, 0
        %v1379 = vsel %vm821, %v1370, 0
        %v1382 = vsel %vm821, %v1371, 0
        %1384 = vmatpush.bf16.msra.mxu0 0
        %1385 = vmatpush.bf16.msra.mxu0 0
        %1386 = vmatpush.bf16.msra.mxu0 0
        %1387 = vmatpush.bf16.msra.mxu0 0
        %1388 = vmatpush.bf16.msra.mxu0 %v1359
        %1389 = vmatpush.bf16.msra.mxu0 %v1358
        %1390 = vmatpush.bf16.msra.mxu0 %v1357
        %1391 = vmatpush.bf16.msra.mxu0 %v1356
        %1392 = vmatmul.bf16.gmra.mxu0 %v1373
        %v1393 = vpop.f32.mrf.mxu0
        %v1394 = vadd.f32 0.0, %v1393
        %v1395 = vpop.f32.mrf.mxu0
        %v1396 = vadd.f32 0.0, %v1395
        %1397 = vmatmul.bf16.gmra.mxu0 %v1376
        %v1398 = vpop.f32.mrf.mxu0
        %v1399 = vadd.f32 0.0, %v1398
        %v1400 = vpop.f32.mrf.mxu0
        %v1401 = vadd.f32 0.0, %v1400
        %1402 = vmatmul.bf16.gmra.mxu0 %v1379
        %v1403 = vpop.f32.mrf.mxu0
        %v1404 = vadd.f32 0.0, %v1403
        %v1405 = vpop.f32.mrf.mxu0
        %v1406 = vadd.f32 0.0, %v1405
        %1407 = vmatmul.bf16.gmra.mxu0 %v1382
        %v1408 = vpop.f32.mrf.mxu0
        %v1409 = vadd.f32 0.0, %v1408
        %v1410 = vpop.f32.mrf.mxu0
        %v1411 = vadd.f32 0.0, %v1410
        %1412 = vdwg.mxu0
        %v1413 = vpack.c.bf16 %v1396, %v1394
        %v1414 = vpack.c.bf16 %v1401, %v1399
        %v1415 = vpack.c.bf16 %v1406, %v1404
        %v1416 = vpack.c.bf16 %v1411, %v1409
        %s1417 = scalar_lea.vmem %s3, 4
        %v1418 = vld [vmem:[%s1417] sm:$0xf]
        %v1420 = vsel %vm759, %v1413, 0
        %v1423 = vsel %vm759, %v1414, 0
        %v1426 = vsel %vm759, %v1415, 0
        %v1429 = vsel %vm759, %v1416, 0
        %vm1431 = vcmask 1043456
        %v1433 = vsel %vm1431, %v1418, 0
        %1435 = vmatpush.bf16.msra.mxu0 0
        %1436 = vmatpush.bf16.msra.mxu0 0
        %1437 = vmatpush.bf16.msra.mxu0 0
        %1438 = vmatpush.bf16.msra.mxu0 0
        %1439 = vmatpush.bf16.msra.mxu0 0
        %1440 = vmatpush.bf16.msra.mxu0 0
        %1441 = vmatpush.bf16.msra.mxu0 0
        %1442 = vmatpush.bf16.msra.mxu0 %v1433
        %1443 = vmatmul.bf16.gmra.mxu0 %v1420
        %v1444 = vpop.f32.mrf.mxu0
        %v1445 = vadd.f32 0.0, %v1444
        %v1446 = vpop.f32.mrf.mxu0
        %v1447 = vadd.f32 0.0, %v1446
        %1448 = vmatmul.bf16.gmra.mxu0 %v1423
        %v1449 = vpop.f32.mrf.mxu0
        %v1450 = vadd.f32 0.0, %v1449
        %v1451 = vpop.f32.mrf.mxu0
        %v1452 = vadd.f32 0.0, %v1451
        %1453 = vmatmul.bf16.gmra.mxu0 %v1426
        %v1454 = vpop.f32.mrf.mxu0
        %v1455 = vadd.f32 0.0, %v1454
        %v1456 = vpop.f32.mrf.mxu0
        %v1457 = vadd.f32 0.0, %v1456
        %1458 = vmatmul.bf16.gmra.mxu0 %v1429
        %v1459 = vpop.f32.mrf.mxu0
        %v1460 = vadd.f32 0.0, %v1459
        %v1461 = vpop.f32.mrf.mxu0
        %v1462 = vadd.f32 0.0, %v1461
        %1463 = vdwg.mxu0
        %v1465 = vsel %vm759, %v992, 0
        %v1468 = vsel %vm759, %v993, 0
        %v1471 = vsel %vm759, %v994, 0
        %v1474 = vsel %vm759, %v995, 0
        %v1477 = vsel %vm1431, %v996, 0
        %1479 = vmatpush.bf16.msra.mxu0 0
        %1480 = vmatpush.bf16.msra.mxu0 0
        %1481 = vmatpush.bf16.msra.mxu0 0
        %1482 = vmatpush.bf16.msra.mxu0 0
        %1483 = vmatpush.bf16.msra.mxu0 0
        %1484 = vmatpush.bf16.msra.mxu0 0
        %1485 = vmatpush.bf16.msra.mxu0 0
        %1486 = vmatpush.bf16.msra.mxu0 %v1477
        %1487 = vmatmul.bf16.gmra.mxu0 %v1465
        %v1488 = vpop.f32.mrf.mxu0
        %v1489 = vadd.f32 %v1445, %v1488
        %v1490 = vpop.f32.mrf.mxu0
        %v1491 = vadd.f32 %v1447, %v1490
        %1492 = vmatmul.bf16.gmra.mxu0 %v1468
        %v1493 = vpop.f32.mrf.mxu0
        %v1494 = vadd.f32 %v1450, %v1493
        %v1495 = vpop.f32.mrf.mxu0
        %v1496 = vadd.f32 %v1452, %v1495
        %1497 = vmatmul.bf16.gmra.mxu0 %v1471
        %v1498 = vpop.f32.mrf.mxu0
        %v1499 = vadd.f32 %v1455, %v1498
        %v1500 = vpop.f32.mrf.mxu0
        %v1501 = vadd.f32 %v1457, %v1500
        %1502 = vmatmul.bf16.gmra.mxu0 %v1474
        %v1503 = vpop.f32.mrf.mxu0
        %v1504 = vadd.f32 %v1460, %v1503
        %v1505 = vpop.f32.mrf.mxu0
        %v1506 = vadd.f32 %v1462, %v1505
        %1507 = vdwg.mxu0
        %s1508 = scalar_lea.vmem %s1, 32
        %v1509 = vld [vmem:[%s1508] sm:$0xf]
        %v1510 = vld [vmem:[%s1508 + $0x4] sm:$0xf]
        %v1511 = vld [vmem:[%s1508 + $0x8] sm:$0xf]
        %v1512 = vld [vmem:[%s1508 + $0xc] sm:$0xf]
        %s1513 = scalar_lea.vmem %s2, 2
        %v1514 = vld [vmem:[%s1513] sm:$0x1]
        %v1516 = vperm.slane %v1514, 0
        %v1522 = vunpack.c.l.b16 %v1509
        %v1523 = vunpack.c.l.b16 %v1510
        %v1524 = vunpack.c.l.b16 %v1511
        %v1525 = vunpack.c.l.b16 %v1512
        %v1526 = vpack.c.b16 %v1523, %v1522
        %v1527 = vpack.c.b16 %v1525, %v1524
        %1530 = vmatpush.bf16.msra.mxu0 0
        %1531 = vmatpush.bf16.msra.mxu0 0
        %1532 = vmatpush.bf16.msra.mxu0 0
        %1533 = vmatpush.bf16.msra.mxu0 0
        %1534 = vmatpush.bf16.msra.mxu0 0
        %1535 = vmatpush.bf16.msra.mxu0 0
        %1536 = vmatpush.bf16.msra.mxu0 %v1527
        %1537 = vmatpush.bf16.msra.mxu0 %v1526
        %1538 = vmatmul.bf16.gmra.mxu0 %v609
        %v1539 = vpop.f32.mrf.mxu0
        %v1540 = vadd.f32 %v1516, %v1539
        %v1541 = vpop.f32.mrf.mxu0
        %v1542 = vadd.f32 %v1516, %v1541
        %1543 = vmatmul.bf16.gmra.mxu0 %v612
        %v1544 = vpop.f32.mrf.mxu0
        %v1545 = vadd.f32 %v1516, %v1544
        %v1546 = vpop.f32.mrf.mxu0
        %v1547 = vadd.f32 %v1516, %v1546
        %1548 = vmatmul.bf16.gmra.mxu0 %v615
        %v1549 = vpop.f32.mrf.mxu0
        %v1550 = vadd.f32 %v1516, %v1549
        %v1551 = vpop.f32.mrf.mxu0
        %v1552 = vadd.f32 %v1516, %v1551
        %1553 = vmatmul.bf16.gmra.mxu0 %v618
        %v1554 = vpop.f32.mrf.mxu0
        %v1555 = vadd.f32 %v1516, %v1554
        %v1556 = vpop.f32.mrf.mxu0
        %v1557 = vadd.f32 %v1516, %v1556
        %1558 = vdwg.mxu0
        %s1559 = scalar_lea.vmem %s1, 96
        %v1560 = vld [vmem:[%s1559] sm:$0xf]
        %v1561 = vld [vmem:[%s1559 + $0x4] sm:$0xf]
        %v1562 = vld [vmem:[%s1559 + $0x8] sm:$0xf]
        %v1563 = vld [vmem:[%s1559 + $0xc] sm:$0xf]
        %s1564 = scalar_lea.vmem %s2, 6
        %v1565 = vld [vmem:[%s1564] sm:$0x1]
        %v1567 = vperm.slane %v1565, 0
        %v1573 = vunpack.c.l.b16 %v1560
        %v1574 = vunpack.c.l.b16 %v1561
        %v1575 = vunpack.c.l.b16 %v1562
        %v1576 = vunpack.c.l.b16 %v1563
        %v1577 = vpack.c.b16 %v1574, %v1573
        %v1578 = vpack.c.b16 %v1576, %v1575
        %1581 = vmatpush.bf16.msra.mxu0 0
        %1582 = vmatpush.bf16.msra.mxu0 0
        %1583 = vmatpush.bf16.msra.mxu0 0
        %1584 = vmatpush.bf16.msra.mxu0 0
        %1585 = vmatpush.bf16.msra.mxu0 0
        %1586 = vmatpush.bf16.msra.mxu0 0
        %1587 = vmatpush.bf16.msra.mxu0 %v1578
        %1588 = vmatpush.bf16.msra.mxu0 %v1577
        %1589 = vmatmul.bf16.gmra.mxu0 %v609
        %v1590 = vpop.f32.mrf.mxu0
        %v1591 = vadd.f32 %v1567, %v1590
        %v1592 = vpop.f32.mrf.mxu0
        %v1593 = vadd.f32 %v1567, %v1592
        %1594 = vmatmul.bf16.gmra.mxu0 %v612
        %v1595 = vpop.f32.mrf.mxu0
        %v1596 = vadd.f32 %v1567, %v1595
        %v1597 = vpop.f32.mrf.mxu0
        %v1598 = vadd.f32 %v1567, %v1597
        %1599 = vmatmul.bf16.gmra.mxu0 %v615
        %v1600 = vpop.f32.mrf.mxu0
        %v1601 = vadd.f32 %v1567, %v1600
        %v1602 = vpop.f32.mrf.mxu0
        %v1603 = vadd.f32 %v1567, %v1602
        %1604 = vmatmul.bf16.gmra.mxu0 %v618
        %v1605 = vpop.f32.mrf.mxu0
        %v1606 = vadd.f32 %v1567, %v1605
        %v1607 = vpop.f32.mrf.mxu0
        %v1608 = vadd.f32 %v1567, %v1607
        %1609 = vdwg.mxu0
        %s1610 = scalar_lea.vmem %s1, 160
        %v1611 = vld [vmem:[%s1610] sm:$0xf]
        %v1612 = vld [vmem:[%s1610 + $0x4] sm:$0xf]
        %v1613 = vld [vmem:[%s1610 + $0x8] sm:$0xf]
        %v1614 = vld [vmem:[%s1610 + $0xc] sm:$0xf]
        %s1615 = scalar_lea.vmem %s2, 10
        %v1616 = vld [vmem:[%s1615] sm:$0x1]
        %v1618 = vperm.slane %v1616, 0
        %v1624 = vunpack.c.l.b16 %v1611
        %v1625 = vunpack.c.l.b16 %v1612
        %v1626 = vunpack.c.l.b16 %v1613
        %v1627 = vunpack.c.l.b16 %v1614
        %v1628 = vpack.c.b16 %v1625, %v1624
        %v1629 = vpack.c.b16 %v1627, %v1626
        %1632 = vmatpush.bf16.msra.mxu0 0
        %1633 = vmatpush.bf16.msra.mxu0 0
        %1634 = vmatpush.bf16.msra.mxu0 0
        %1635 = vmatpush.bf16.msra.mxu0 0
        %1636 = vmatpush.bf16.msra.mxu0 0
        %1637 = vmatpush.bf16.msra.mxu0 0
        %1638 = vmatpush.bf16.msra.mxu0 %v1629
        %1639 = vmatpush.bf16.msra.mxu0 %v1628
        %1640 = vmatmul.bf16.gmra.mxu0 %v609
        %v1641 = vpop.f32.mrf.mxu0
        %v1642 = vadd.f32 %v1618, %v1641
        %v1643 = vpop.f32.mrf.mxu0
        %v1644 = vadd.f32 %v1618, %v1643
        %1645 = vmatmul.bf16.gmra.mxu0 %v612
        %v1646 = vpop.f32.mrf.mxu0
        %v1647 = vadd.f32 %v1618, %v1646
        %v1648 = vpop.f32.mrf.mxu0
        %v1649 = vadd.f32 %v1618, %v1648
        %1650 = vmatmul.bf16.gmra.mxu0 %v615
        %v1651 = vpop.f32.mrf.mxu0
        %v1652 = vadd.f32 %v1618, %v1651
        %v1653 = vpop.f32.mrf.mxu0
        %v1654 = vadd.f32 %v1618, %v1653
        %1655 = vmatmul.bf16.gmra.mxu0 %v618
        %v1656 = vpop.f32.mrf.mxu0
        %v1657 = vadd.f32 %v1618, %v1656
        %v1658 = vpop.f32.mrf.mxu0
        %v1659 = vadd.f32 %v1618, %v1658
        %1660 = vdwg.mxu0
        %v1661 = vpack.c.bf16 %v1542, %v1540
        %v1662 = vpack.c.bf16 %v1547, %v1545
        %v1663 = vpack.c.bf16 %v1552, %v1550
        %v1664 = vpack.c.bf16 %v1557, %v1555
        %v1665 = vpack.c.bf16 %v1593, %v1591
        %v1666 = vpack.c.bf16 %v1598, %v1596
        %v1667 = vpack.c.bf16 %v1603, %v1601
        %v1668 = vpack.c.bf16 %v1608, %v1606
        %v1670 = vsel %vm759, %v1661, 0
        %v1673 = vsel %vm759, %v1662, 0
        %v1676 = vsel %vm759, %v1663, 0
        %v1679 = vsel %vm759, %v1664, 0
        %v1682 = vsel %vm759, %v1665, 0
        %v1685 = vsel %vm759, %v1666, 0
        %v1688 = vsel %vm759, %v1667, 0
        %v1691 = vsel %vm759, %v1668, 0
        %1693 = vmatpush.bf16.xpose.msra.mxu0 0
        %1694 = vmatpush.bf16.xpose.msra.mxu0 0
        %1695 = vmatpush.bf16.xpose.msra.mxu0 0
        %1696 = vmatpush.bf16.xpose.msra.mxu0 0
        %1697 = vmatpush.bf16.xpose.msra.mxu0 %v1691
        %1698 = vmatpush.bf16.xpose.msra.mxu0 %v1688
        %1699 = vmatpush.bf16.xpose.msra.mxu0 %v1685
        %1700 = vmatpush.bf16.xpose.msra.mxu0 %v1682
        %1701 = vmatmul.bf16.gmra.mxu0 %v1670
        %v1702 = vpop.f32.mrf.mxu0
        %v1703 = vadd.f32 0.0, %v1702
        %v1704 = vpop.f32.mrf.mxu0
        %v1705 = vadd.f32 0.0, %v1704
        %1706 = vmatmul.bf16.gmra.mxu0 %v1673
        %v1707 = vpop.f32.mrf.mxu0
        %v1708 = vadd.f32 0.0, %v1707
        %v1709 = vpop.f32.mrf.mxu0
        %v1710 = vadd.f32 0.0, %v1709
        %1711 = vmatmul.bf16.gmra.mxu0 %v1676
        %v1712 = vpop.f32.mrf.mxu0
        %v1713 = vadd.f32 0.0, %v1712
        %v1714 = vpop.f32.mrf.mxu0
        %v1715 = vadd.f32 0.0, %v1714
        %1716 = vmatmul.bf16.gmra.mxu0 %v1679
        %v1717 = vpop.f32.mrf.mxu0
        %v1718 = vadd.f32 0.0, %v1717
        %v1719 = vpop.f32.mrf.mxu0
        %v1720 = vadd.f32 0.0, %v1719
        %1721 = vdwg.mxu0
        %v1722 = vmul.f32 %v1703, 0.35355338
        %v1723 = vmul.f32 %v1705, 0.35355338
        %v1724 = vmul.f32 %v1708, 0.35355338
        %v1725 = vmul.f32 %v1710, 0.35355338
        %v1726 = vmul.f32 %v1713, 0.35355338
        %v1727 = vmul.f32 %v1715, 0.35355338
        %v1728 = vmul.f32 %v1718, 0.35355338
        %v1729 = vmul.f32 %v1720, 0.35355338
        %v1730 = vsel %vm821, %v1722, -inf
        %1731 = vmax.xlane.f32.xlu0 %v1730
        %v1732 = vpop.xlane.xlu0 %1731
        %v1733 = vsel %vm821, %v1723, -inf
        %1734 = vmax.xlane.f32.xlu0 %v1733
        %v1735 = vpop.xlane.xlu0 %1734
        %v1736 = vsel %vm821, %v1724, -inf
        %1737 = vmax.xlane.f32.xlu0 %v1736
        %v1738 = vpop.xlane.xlu0 %1737
        %v1739 = vsel %vm821, %v1725, -inf
        %1740 = vmax.xlane.f32.xlu0 %v1739
        %v1741 = vpop.xlane.xlu0 %1740
        %v1742 = vsel %vm821, %v1726, -inf
        %1743 = vmax.xlane.f32.xlu0 %v1742
        %v1744 = vpop.xlane.xlu0 %1743
        %v1745 = vsel %vm821, %v1727, -inf
        %1746 = vmax.xlane.f32.xlu0 %v1745
        %v1747 = vpop.xlane.xlu0 %1746
        %v1748 = vsel %vm821, %v1728, -inf
        %1749 = vmax.xlane.f32.xlu0 %v1748
        %v1750 = vpop.xlane.xlu0 %1749
        %v1751 = vsel %vm821, %v1729, -inf
        %1752 = vmax.xlane.f32.xlu0 %v1751
        %v1753 = vpop.xlane.xlu0 %1752
        %v1754 = vsub.f32 %v1722, %v1732
        %v1755 = vsub.f32 %v1723, %v1735
        %v1756 = vsub.f32 %v1724, %v1738
        %v1757 = vsub.f32 %v1725, %v1741
        %v1758 = vsub.f32 %v1726, %v1744
        %v1759 = vsub.f32 %v1727, %v1747
        %v1760 = vsub.f32 %v1728, %v1750
        %v1761 = vsub.f32 %v1729, %v1753
        %v1762 = vmul.f32 %v1754, 1.442695
        %v1763 = vpow.pop %v1762
        %v1764 = vmul.f32 %v1755, 1.442695
        %v1765 = vpow.pop %v1764
        %v1766 = vmul.f32 %v1756, 1.442695
        %v1767 = vpow.pop %v1766
        %v1768 = vmul.f32 %v1757, 1.442695
        %v1769 = vpow.pop %v1768
        %v1770 = vmul.f32 %v1758, 1.442695
        %v1771 = vpow.pop %v1770
        %v1772 = vmul.f32 %v1759, 1.442695
        %v1773 = vpow.pop %v1772
        %v1774 = vmul.f32 %v1760, 1.442695
        %v1775 = vpow.pop %v1774
        %v1776 = vmul.f32 %v1761, 1.442695
        %v1777 = vpow.pop %v1776
        %v1778 = vsel %vm821, %v1763, 0.0
        %1779 = vadd.xlane.f32.xlu0 %v1778
        %v1780 = vpop.xlane.xlu0 %1779
        %v1781 = vsel %vm821, %v1765, 0.0
        %1782 = vadd.xlane.f32.xlu0 %v1781
        %v1783 = vpop.xlane.xlu0 %1782
        %v1784 = vsel %vm821, %v1767, 0.0
        %1785 = vadd.xlane.f32.xlu0 %v1784
        %v1786 = vpop.xlane.xlu0 %1785
        %v1787 = vsel %vm821, %v1769, 0.0
        %1788 = vadd.xlane.f32.xlu0 %v1787
        %v1789 = vpop.xlane.xlu0 %1788
        %v1790 = vsel %vm821, %v1771, 0.0
        %1791 = vadd.xlane.f32.xlu0 %v1790
        %v1792 = vpop.xlane.xlu0 %1791
        %v1793 = vsel %vm821, %v1773, 0.0
        %1794 = vadd.xlane.f32.xlu0 %v1793
        %v1795 = vpop.xlane.xlu0 %1794
        %v1796 = vsel %vm821, %v1775, 0.0
        %1797 = vadd.xlane.f32.xlu0 %v1796
        %v1798 = vpop.xlane.xlu0 %1797
        %v1799 = vsel %vm821, %v1777, 0.0
        %1800 = vadd.xlane.f32.xlu0 %v1799
        %v1801 = vpop.xlane.xlu0 %1800
        %v1802 = vrcp.pop %v1780
        %v1803 = vrcp.pop %v1783
        %v1804 = vrcp.pop %v1786
        %v1805 = vrcp.pop %v1789
        %v1806 = vrcp.pop %v1792
        %v1807 = vrcp.pop %v1795
        %v1808 = vrcp.pop %v1798
        %v1809 = vrcp.pop %v1801
        %v1810 = vmul.f32 %v1763, %v1802
        %v1811 = vmul.f32 %v1765, %v1803
        %v1812 = vmul.f32 %v1767, %v1804
        %v1813 = vmul.f32 %v1769, %v1805
        %v1814 = vmul.f32 %v1771, %v1806
        %v1815 = vmul.f32 %v1773, %v1807
        %v1816 = vmul.f32 %v1775, %v1808
        %v1817 = vmul.f32 %v1777, %v1809
        %v1818 = vpack.c.bf16 %v1810, %v1810
        %v1819 = vpack.c.bf16 %v1811, %v1811
        %v1820 = vpack.c.bf16 %v1812, %v1812
        %v1821 = vpack.c.bf16 %v1813, %v1813
        %v1822 = vpack.c.bf16 %v1814, %v1814
        %v1823 = vpack.c.bf16 %v1815, %v1815
        %v1824 = vpack.c.bf16 %v1816, %v1816
        %v1825 = vpack.c.bf16 %v1817, %v1817
        %1826 = vst.msk [vmem:[%s360 + $0x4] sm:$0xf] %vm918, %v1818
        %1827 = vst.msk [vmem:[%s360 + $0xc] sm:$0xf] %vm918, %v1819
        %1828 = vst.msk [vmem:[%s360 + $0x14] sm:$0xf] %vm918, %v1820
        %1829 = vst.msk [vmem:[%s360 + $0x1c] sm:$0xf] %vm918, %v1821
        %1830 = vst.msk [vmem:[%s360 + $0x24] sm:$0xf] %vm918, %v1822
        %1831 = vst.msk [vmem:[%s360 + $0x2c] sm:$0xf] %vm918, %v1823
        %1832 = vst.msk [vmem:[%s360 + $0x34] sm:$0xf] %vm918, %v1824
        %1833 = vst.msk [vmem:[%s360 + $0x3c] sm:$0xf] %vm918, %v1825
        %v1834 = vpack.c.bf16 %v1644, %v1642
        %v1835 = vpack.c.bf16 %v1649, %v1647
        %v1836 = vpack.c.bf16 %v1654, %v1652
        %v1837 = vpack.c.bf16 %v1659, %v1657
        %v1846 = vunpack.c.l.b16 %v1818
        %v1847 = vunpack.c.l.b16 %v1819
        %v1848 = vunpack.c.l.b16 %v1820
        %v1849 = vunpack.c.l.b16 %v1821
        %v1850 = vunpack.c.l.b16 %v1822
        %v1851 = vunpack.c.l.b16 %v1823
        %v1852 = vunpack.c.l.b16 %v1824
        %v1853 = vunpack.c.l.b16 %v1825
        %v1854 = vpack.c.b16 %v1847, %v1846
        %v1855 = vpack.c.b16 %v1849, %v1848
        %v1856 = vpack.c.b16 %v1851, %v1850
        %v1857 = vpack.c.b16 %v1853, %v1852
        %v1859 = vsel %vm821, %v1854, 0
        %v1862 = vsel %vm821, %v1855, 0
        %v1865 = vsel %vm821, %v1856, 0
        %v1868 = vsel %vm821, %v1857, 0
        %1870 = vmatpush.bf16.msra.mxu0 0
        %1871 = vmatpush.bf16.msra.mxu0 0
        %1872 = vmatpush.bf16.msra.mxu0 0
        %1873 = vmatpush.bf16.msra.mxu0 0
        %1874 = vmatpush.bf16.msra.mxu0 %v1837
        %1875 = vmatpush.bf16.msra.mxu0 %v1836
        %1876 = vmatpush.bf16.msra.mxu0 %v1835
        %1877 = vmatpush.bf16.msra.mxu0 %v1834
        %1878 = vmatmul.bf16.gmra.mxu0 %v1859
        %v1879 = vpop.f32.mrf.mxu0
        %v1880 = vadd.f32 0.0, %v1879
        %v1881 = vpop.f32.mrf.mxu0
        %v1882 = vadd.f32 0.0, %v1881
        %1883 = vmatmul.bf16.gmra.mxu0 %v1862
        %v1884 = vpop.f32.mrf.mxu0
        %v1885 = vadd.f32 0.0, %v1884
        %v1886 = vpop.f32.mrf.mxu0
        %v1887 = vadd.f32 0.0, %v1886
        %1888 = vmatmul.bf16.gmra.mxu0 %v1865
        %v1889 = vpop.f32.mrf.mxu0
        %v1890 = vadd.f32 0.0, %v1889
        %v1891 = vpop.f32.mrf.mxu0
        %v1892 = vadd.f32 0.0, %v1891
        %1893 = vmatmul.bf16.gmra.mxu0 %v1868
        %v1894 = vpop.f32.mrf.mxu0
        %v1895 = vadd.f32 0.0, %v1894
        %v1896 = vpop.f32.mrf.mxu0
        %v1897 = vadd.f32 0.0, %v1896
        %1898 = vdwg.mxu0
        %v1899 = vpack.c.bf16 %v1882, %v1880
        %v1900 = vpack.c.bf16 %v1887, %v1885
        %v1901 = vpack.c.bf16 %v1892, %v1890
        %v1902 = vpack.c.bf16 %v1897, %v1895
        %s1903 = scalar_lea.vmem %s3, 8
        %v1904 = vld [vmem:[%s1903] sm:$0xf]
        %v1906 = vsel %vm759, %v1899, 0
        %v1909 = vsel %vm759, %v1900, 0
        %v1912 = vsel %vm759, %v1901, 0
        %v1915 = vsel %vm759, %v1902, 0
        %v1918 = vsel %vm1431, %v1904, 0
        %1920 = vmatpush.bf16.msra.mxu0 0
        %1921 = vmatpush.bf16.msra.mxu0 0
        %1922 = vmatpush.bf16.msra.mxu0 0
        %1923 = vmatpush.bf16.msra.mxu0 0
        %1924 = vmatpush.bf16.msra.mxu0 0
        %1925 = vmatpush.bf16.msra.mxu0 0
        %1926 = vmatpush.bf16.msra.mxu0 0
        %1927 = vmatpush.bf16.msra.mxu0 %v1918
        %1928 = vmatmul.bf16.gmra.mxu0 %v1906
        %v1929 = vpop.f32.mrf.mxu0
        %v1930 = vadd.f32 0.0, %v1929
        %v1931 = vpop.f32.mrf.mxu0
        %v1932 = vadd.f32 0.0, %v1931
        %1933 = vmatmul.bf16.gmra.mxu0 %v1909
        %v1934 = vpop.f32.mrf.mxu0
        %v1935 = vadd.f32 0.0, %v1934
        %v1936 = vpop.f32.mrf.mxu0
        %v1937 = vadd.f32 0.0, %v1936
        %1938 = vmatmul.bf16.gmra.mxu0 %v1912
        %v1939 = vpop.f32.mrf.mxu0
        %v1940 = vadd.f32 0.0, %v1939
        %v1941 = vpop.f32.mrf.mxu0
        %v1942 = vadd.f32 0.0, %v1941
        %1943 = vmatmul.bf16.gmra.mxu0 %v1915
        %v1944 = vpop.f32.mrf.mxu0
        %v1945 = vadd.f32 0.0, %v1944
        %v1946 = vpop.f32.mrf.mxu0
        %v1947 = vadd.f32 0.0, %v1946
        %1948 = vdwg.mxu0
        %v1949 = vadd.f32 %v1489, %v1930
        %v1950 = vadd.f32 %v1491, %v1932
        %v1951 = vadd.f32 %v1494, %v1935
        %v1952 = vadd.f32 %v1496, %v1937
        %v1953 = vadd.f32 %v1499, %v1940
        %v1954 = vadd.f32 %v1501, %v1942
        %v1955 = vadd.f32 %v1504, %v1945
        %v1956 = vadd.f32 %v1506, %v1947
        %s1957 = scalar_lea.vmem %s1, 48
        %v1958 = vld [vmem:[%s1957] sm:$0xf]
        %v1959 = vld [vmem:[%s1957 + $0x4] sm:$0xf]
        %v1960 = vld [vmem:[%s1957 + $0x8] sm:$0xf]
        %v1961 = vld [vmem:[%s1957 + $0xc] sm:$0xf]
        %s1962 = scalar_lea.vmem %s2, 3
        %v1963 = vld [vmem:[%s1962] sm:$0x1]
        %v1965 = vperm.slane %v1963, 0
        %v1971 = vunpack.c.l.b16 %v1958
        %v1972 = vunpack.c.l.b16 %v1959
        %v1973 = vunpack.c.l.b16 %v1960
        %v1974 = vunpack.c.l.b16 %v1961
        %v1975 = vpack.c.b16 %v1972, %v1971
        %v1976 = vpack.c.b16 %v1974, %v1973
        %1979 = vmatpush.bf16.msra.mxu0 0
        %1980 = vmatpush.bf16.msra.mxu0 0
        %1981 = vmatpush.bf16.msra.mxu0 0
        %1982 = vmatpush.bf16.msra.mxu0 0
        %1983 = vmatpush.bf16.msra.mxu0 0
        %1984 = vmatpush.bf16.msra.mxu0 0
        %1985 = vmatpush.bf16.msra.mxu0 %v1976
        %1986 = vmatpush.bf16.msra.mxu0 %v1975
        %1987 = vmatmul.bf16.gmra.mxu0 %v609
        %v1988 = vpop.f32.mrf.mxu0
        %v1989 = vadd.f32 %v1965, %v1988
        %v1990 = vpop.f32.mrf.mxu0
        %v1991 = vadd.f32 %v1965, %v1990
        %1992 = vmatmul.bf16.gmra.mxu0 %v612
        %v1993 = vpop.f32.mrf.mxu0
        %v1994 = vadd.f32 %v1965, %v1993
        %v1995 = vpop.f32.mrf.mxu0
        %v1996 = vadd.f32 %v1965, %v1995
        %1997 = vmatmul.bf16.gmra.mxu0 %v615
        %v1998 = vpop.f32.mrf.mxu0
        %v1999 = vadd.f32 %v1965, %v1998
        %v2000 = vpop.f32.mrf.mxu0
        %v2001 = vadd.f32 %v1965, %v2000
        %2002 = vmatmul.bf16.gmra.mxu0 %v618
        %v2003 = vpop.f32.mrf.mxu0
        %v2004 = vadd.f32 %v1965, %v2003
        %v2005 = vpop.f32.mrf.mxu0
        %v2006 = vadd.f32 %v1965, %v2005
        %2007 = vdwg.mxu0
        %s2008 = scalar_lea.vmem %s1, 112
        %v2009 = vld [vmem:[%s2008] sm:$0xf]
        %v2010 = vld [vmem:[%s2008 + $0x4] sm:$0xf]
        %v2011 = vld [vmem:[%s2008 + $0x8] sm:$0xf]
        %v2012 = vld [vmem:[%s2008 + $0xc] sm:$0xf]
        %s2013 = scalar_lea.vmem %s2, 7
        %v2014 = vld [vmem:[%s2013] sm:$0x1]
        %v2016 = vperm.slane %v2014, 0
        %v2022 = vunpack.c.l.b16 %v2009
        %v2023 = vunpack.c.l.b16 %v2010
        %v2024 = vunpack.c.l.b16 %v2011
        %v2025 = vunpack.c.l.b16 %v2012
        %v2026 = vpack.c.b16 %v2023, %v2022
        %v2027 = vpack.c.b16 %v2025, %v2024
        %2030 = vmatpush.bf16.msra.mxu0 0
        %2031 = vmatpush.bf16.msra.mxu0 0
        %2032 = vmatpush.bf16.msra.mxu0 0
        %2033 = vmatpush.bf16.msra.mxu0 0
        %2034 = vmatpush.bf16.msra.mxu0 0
        %2035 = vmatpush.bf16.msra.mxu0 0
        %2036 = vmatpush.bf16.msra.mxu0 %v2027
        %2037 = vmatpush.bf16.msra.mxu0 %v2026
        %2038 = vmatmul.bf16.gmra.mxu0 %v609
        %v2039 = vpop.f32.mrf.mxu0
        %v2040 = vadd.f32 %v2016, %v2039
        %v2041 = vpop.f32.mrf.mxu0
        %v2042 = vadd.f32 %v2016, %v2041
        %2043 = vmatmul.bf16.gmra.mxu0 %v612
        %v2044 = vpop.f32.mrf.mxu0
        %v2045 = vadd.f32 %v2016, %v2044
        %v2046 = vpop.f32.mrf.mxu0
        %v2047 = vadd.f32 %v2016, %v2046
        %2048 = vmatmul.bf16.gmra.mxu0 %v615
        %v2049 = vpop.f32.mrf.mxu0
        %v2050 = vadd.f32 %v2016, %v2049
        %v2051 = vpop.f32.mrf.mxu0
        %v2052 = vadd.f32 %v2016, %v2051
        %2053 = vmatmul.bf16.gmra.mxu0 %v618
        %v2054 = vpop.f32.mrf.mxu0
        %v2055 = vadd.f32 %v2016, %v2054
        %v2056 = vpop.f32.mrf.mxu0
        %v2057 = vadd.f32 %v2016, %v2056
        %2058 = vdwg.mxu0
        %s2059 = scalar_lea.vmem %s1, 176
        %v2060 = vld [vmem:[%s2059] sm:$0xf]
        %v2061 = vld [vmem:[%s2059 + $0x4] sm:$0xf]
        %v2062 = vld [vmem:[%s2059 + $0x8] sm:$0xf]
        %v2063 = vld [vmem:[%s2059 + $0xc] sm:$0xf]
        %s2064 = scalar_lea.vmem %s2, 11
        %v2065 = vld [vmem:[%s2064] sm:$0x1]
        %v2067 = vperm.slane %v2065, 0
        %v2073 = vunpack.c.l.b16 %v2060
        %v2074 = vunpack.c.l.b16 %v2061
        %v2075 = vunpack.c.l.b16 %v2062
        %v2076 = vunpack.c.l.b16 %v2063
        %v2077 = vpack.c.b16 %v2074, %v2073
        %v2078 = vpack.c.b16 %v2076, %v2075
        %2081 = vmatpush.bf16.msra.mxu0 0
        %2082 = vmatpush.bf16.msra.mxu0 0
        %2083 = vmatpush.bf16.msra.mxu0 0
        %2084 = vmatpush.bf16.msra.mxu0 0
        %2085 = vmatpush.bf16.msra.mxu0 0
        %2086 = vmatpush.bf16.msra.mxu0 0
        %2087 = vmatpush.bf16.msra.mxu0 %v2078
        %2088 = vmatpush.bf16.msra.mxu0 %v2077
        %2089 = vmatmul.bf16.gmra.mxu0 %v609
        %v2090 = vpop.f32.mrf.mxu0
        %v2091 = vadd.f32 %v2067, %v2090
        %v2092 = vpop.f32.mrf.mxu0
        %v2093 = vadd.f32 %v2067, %v2092
        %2094 = vmatmul.bf16.gmra.mxu0 %v612
        %v2095 = vpop.f32.mrf.mxu0
        %v2096 = vadd.f32 %v2067, %v2095
        %v2097 = vpop.f32.mrf.mxu0
        %v2098 = vadd.f32 %v2067, %v2097
        %2099 = vmatmul.bf16.gmra.mxu0 %v615
        %v2100 = vpop.f32.mrf.mxu0
        %v2101 = vadd.f32 %v2067, %v2100
        %v2102 = vpop.f32.mrf.mxu0
        %v2103 = vadd.f32 %v2067, %v2102
        %2104 = vmatmul.bf16.gmra.mxu0 %v618
        %v2105 = vpop.f32.mrf.mxu0
        %v2106 = vadd.f32 %v2067, %v2105
        %v2107 = vpop.f32.mrf.mxu0
        %v2108 = vadd.f32 %v2067, %v2107
        %2109 = vdwg.mxu0
        %v2110 = vpack.c.bf16 %v1991, %v1989
        %v2111 = vpack.c.bf16 %v1996, %v1994
        %v2112 = vpack.c.bf16 %v2001, %v1999
        %v2113 = vpack.c.bf16 %v2006, %v2004
        %v2114 = vpack.c.bf16 %v2042, %v2040
        %v2115 = vpack.c.bf16 %v2047, %v2045
        %v2116 = vpack.c.bf16 %v2052, %v2050
        %v2117 = vpack.c.bf16 %v2057, %v2055
        %v2119 = vsel %vm759, %v2110, 0
        %v2122 = vsel %vm759, %v2111, 0
        %v2125 = vsel %vm759, %v2112, 0
        %v2128 = vsel %vm759, %v2113, 0
        %v2131 = vsel %vm759, %v2114, 0
        %v2134 = vsel %vm759, %v2115, 0
        %v2137 = vsel %vm759, %v2116, 0
        %v2140 = vsel %vm759, %v2117, 0
        %2142 = vmatpush.bf16.xpose.msra.mxu0 0
        %2143 = vmatpush.bf16.xpose.msra.mxu0 0
        %2144 = vmatpush.bf16.xpose.msra.mxu0 0
        %2145 = vmatpush.bf16.xpose.msra.mxu0 0
        %2146 = vmatpush.bf16.xpose.msra.mxu0 %v2140
        %2147 = vmatpush.bf16.xpose.msra.mxu0 %v2137
        %2148 = vmatpush.bf16.xpose.msra.mxu0 %v2134
        %2149 = vmatpush.bf16.xpose.msra.mxu0 %v2131
        %2150 = vmatmul.bf16.gmra.mxu0 %v2119
        %v2151 = vpop.f32.mrf.mxu0
        %v2152 = vadd.f32 0.0, %v2151
        %v2153 = vpop.f32.mrf.mxu0
        %v2154 = vadd.f32 0.0, %v2153
        %2155 = vmatmul.bf16.gmra.mxu0 %v2122
        %v2156 = vpop.f32.mrf.mxu0
        %v2157 = vadd.f32 0.0, %v2156
        %v2158 = vpop.f32.mrf.mxu0
        %v2159 = vadd.f32 0.0, %v2158
        %2160 = vmatmul.bf16.gmra.mxu0 %v2125
        %v2161 = vpop.f32.mrf.mxu0
        %v2162 = vadd.f32 0.0, %v2161
        %v2163 = vpop.f32.mrf.mxu0
        %v2164 = vadd.f32 0.0, %v2163
        %2165 = vmatmul.bf16.gmra.mxu0 %v2128
        %v2166 = vpop.f32.mrf.mxu0
        %v2167 = vadd.f32 0.0, %v2166
        %v2168 = vpop.f32.mrf.mxu0
        %v2169 = vadd.f32 0.0, %v2168
        %2170 = vdwg.mxu0
        %v2171 = vmul.f32 %v2152, 0.35355338
        %v2172 = vmul.f32 %v2154, 0.35355338
        %v2173 = vmul.f32 %v2157, 0.35355338
        %v2174 = vmul.f32 %v2159, 0.35355338
        %v2175 = vmul.f32 %v2162, 0.35355338
        %v2176 = vmul.f32 %v2164, 0.35355338
        %v2177 = vmul.f32 %v2167, 0.35355338
        %v2178 = vmul.f32 %v2169, 0.35355338
        %v2179 = vsel %vm821, %v2171, -inf
        %2180 = vmax.xlane.f32.xlu0 %v2179
        %v2181 = vpop.xlane.xlu0 %2180
        %v2182 = vsel %vm821, %v2172, -inf
        %2183 = vmax.xlane.f32.xlu0 %v2182
        %v2184 = vpop.xlane.xlu0 %2183
        %v2185 = vsel %vm821, %v2173, -inf
        %2186 = vmax.xlane.f32.xlu0 %v2185
        %v2187 = vpop.xlane.xlu0 %2186
        %v2188 = vsel %vm821, %v2174, -inf
        %2189 = vmax.xlane.f32.xlu0 %v2188
        %v2190 = vpop.xlane.xlu0 %2189
        %v2191 = vsel %vm821, %v2175, -inf
        %2192 = vmax.xlane.f32.xlu0 %v2191
        %v2193 = vpop.xlane.xlu0 %2192
        %v2194 = vsel %vm821, %v2176, -inf
        %2195 = vmax.xlane.f32.xlu0 %v2194
        %v2196 = vpop.xlane.xlu0 %2195
        %v2197 = vsel %vm821, %v2177, -inf
        %2198 = vmax.xlane.f32.xlu0 %v2197
        %v2199 = vpop.xlane.xlu0 %2198
        %v2200 = vsel %vm821, %v2178, -inf
        %2201 = vmax.xlane.f32.xlu0 %v2200
        %v2202 = vpop.xlane.xlu0 %2201
        %v2203 = vsub.f32 %v2171, %v2181
        %v2204 = vsub.f32 %v2172, %v2184
        %v2205 = vsub.f32 %v2173, %v2187
        %v2206 = vsub.f32 %v2174, %v2190
        %v2207 = vsub.f32 %v2175, %v2193
        %v2208 = vsub.f32 %v2176, %v2196
        %v2209 = vsub.f32 %v2177, %v2199
        %v2210 = vsub.f32 %v2178, %v2202
        %v2211 = vmul.f32 %v2203, 1.442695
        %v2212 = vpow.pop %v2211
        %v2213 = vmul.f32 %v2204, 1.442695
        %v2214 = vpow.pop %v2213
        %v2215 = vmul.f32 %v2205, 1.442695
        %v2216 = vpow.pop %v2215
        %v2217 = vmul.f32 %v2206, 1.442695
        %v2218 = vpow.pop %v2217
        %v2219 = vmul.f32 %v2207, 1.442695
        %v2220 = vpow.pop %v2219
        %v2221 = vmul.f32 %v2208, 1.442695
        %v2222 = vpow.pop %v2221
        %v2223 = vmul.f32 %v2209, 1.442695
        %v2224 = vpow.pop %v2223
        %v2225 = vmul.f32 %v2210, 1.442695
        %v2226 = vpow.pop %v2225
        %v2227 = vsel %vm821, %v2212, 0.0
        %2228 = vadd.xlane.f32.xlu0 %v2227
        %v2229 = vpop.xlane.xlu0 %2228
        %v2230 = vsel %vm821, %v2214, 0.0
        %2231 = vadd.xlane.f32.xlu0 %v2230
        %v2232 = vpop.xlane.xlu0 %2231
        %v2233 = vsel %vm821, %v2216, 0.0
        %2234 = vadd.xlane.f32.xlu0 %v2233
        %v2235 = vpop.xlane.xlu0 %2234
        %v2236 = vsel %vm821, %v2218, 0.0
        %2237 = vadd.xlane.f32.xlu0 %v2236
        %v2238 = vpop.xlane.xlu0 %2237
        %v2239 = vsel %vm821, %v2220, 0.0
        %2240 = vadd.xlane.f32.xlu0 %v2239
        %v2241 = vpop.xlane.xlu0 %2240
        %v2242 = vsel %vm821, %v2222, 0.0
        %2243 = vadd.xlane.f32.xlu0 %v2242
        %v2244 = vpop.xlane.xlu0 %2243
        %v2245 = vsel %vm821, %v2224, 0.0
        %2246 = vadd.xlane.f32.xlu0 %v2245
        %v2247 = vpop.xlane.xlu0 %2246
        %v2248 = vsel %vm821, %v2226, 0.0
        %2249 = vadd.xlane.f32.xlu0 %v2248
        %v2250 = vpop.xlane.xlu0 %2249
        %v2251 = vrcp.pop %v2229
        %v2252 = vrcp.pop %v2232
        %v2253 = vrcp.pop %v2235
        %v2254 = vrcp.pop %v2238
        %v2255 = vrcp.pop %v2241
        %v2256 = vrcp.pop %v2244
        %v2257 = vrcp.pop %v2247
        %v2258 = vrcp.pop %v2250
        %v2259 = vmul.f32 %v2212, %v2251
        %v2260 = vmul.f32 %v2214, %v2252
        %v2261 = vmul.f32 %v2216, %v2253
        %v2262 = vmul.f32 %v2218, %v2254
        %v2263 = vmul.f32 %v2220, %v2255
        %v2264 = vmul.f32 %v2222, %v2256
        %v2265 = vmul.f32 %v2224, %v2257
        %v2266 = vmul.f32 %v2226, %v2258
        %v2267 = vpack.c.bf16 %v2259, %v2259
        %v2268 = vpack.c.bf16 %v2260, %v2260
        %v2269 = vpack.c.bf16 %v2261, %v2261
        %v2270 = vpack.c.bf16 %v2262, %v2262
        %v2271 = vpack.c.bf16 %v2263, %v2263
        %v2272 = vpack.c.bf16 %v2264, %v2264
        %v2273 = vpack.c.bf16 %v2265, %v2265
        %v2274 = vpack.c.bf16 %v2266, %v2266
        %2283 = vrot.lane.b32.xlu0 %v2267, 64
        %v2284 = vpop.permute.xlu0 %2283
        %2285 = vrot.lane.b32.xlu0 %v2268, 64
        %v2286 = vpop.permute.xlu0 %2285
        %2287 = vrot.lane.b32.xlu0 %v2269, 64
        %v2288 = vpop.permute.xlu0 %2287
        %2289 = vrot.lane.b32.xlu0 %v2270, 64
        %v2290 = vpop.permute.xlu0 %2289
        %2291 = vrot.lane.b32.xlu0 %v2271, 64
        %v2292 = vpop.permute.xlu0 %2291
        %2293 = vrot.lane.b32.xlu0 %v2272, 64
        %v2294 = vpop.permute.xlu0 %2293
        %2295 = vrot.lane.b32.xlu0 %v2273, 64
        %v2296 = vpop.permute.xlu0 %2295
        %2297 = vrot.lane.b32.xlu0 %v2274, 64
        %v2298 = vpop.permute.xlu0 %2297
        %2307 = vst.msk [vmem:[%s360 + $0x4] sm:$0xf] %vm1347, %v2284
        %2308 = vst.msk [vmem:[%s360 + $0xc] sm:$0xf] %vm1347, %v2286
        %2309 = vst.msk [vmem:[%s360 + $0x14] sm:$0xf] %vm1347, %v2288
        %2310 = vst.msk [vmem:[%s360 + $0x1c] sm:$0xf] %vm1347, %v2290
        %2311 = vst.msk [vmem:[%s360 + $0x24] sm:$0xf] %vm1347, %v2292
        %2312 = vst.msk [vmem:[%s360 + $0x2c] sm:$0xf] %vm1347, %v2294
        %2313 = vst.msk [vmem:[%s360 + $0x34] sm:$0xf] %vm1347, %v2296
        %2314 = vst.msk [vmem:[%s360 + $0x3c] sm:$0xf] %vm1347, %v2298
        %v2315 = vpack.c.bf16 %v2093, %v2091
        %v2316 = vpack.c.bf16 %v2098, %v2096
        %v2317 = vpack.c.bf16 %v2103, %v2101
        %v2318 = vpack.c.bf16 %v2108, %v2106
        %v2319 = vunpack.c.l.b16 %v2267
        %v2320 = vunpack.c.l.b16 %v2268
        %v2321 = vunpack.c.l.b16 %v2269
        %v2322 = vunpack.c.l.b16 %v2270
        %v2323 = vunpack.c.l.b16 %v2271
        %v2324 = vunpack.c.l.b16 %v2272
        %v2325 = vunpack.c.l.b16 %v2273
        %v2326 = vunpack.c.l.b16 %v2274
        %v2327 = vpack.c.b16 %v2320, %v2319
        %v2328 = vpack.c.b16 %v2322, %v2321
        %v2329 = vpack.c.b16 %v2324, %v2323
        %v2330 = vpack.c.b16 %v2326, %v2325
        %v2332 = vsel %vm821, %v2327, 0
        %v2335 = vsel %vm821, %v2328, 0
        %v2338 = vsel %vm821, %v2329, 0
        %v2341 = vsel %vm821, %v2330, 0
        %2343 = vmatpush.bf16.msra.mxu0 0
        %2344 = vmatpush.bf16.msra.mxu0 0
        %2345 = vmatpush.bf16.msra.mxu0 0
        %2346 = vmatpush.bf16.msra.mxu0 0
        %2347 = vmatpush.bf16.msra.mxu0 %v2318
        %2348 = vmatpush.bf16.msra.mxu0 %v2317
        %2349 = vmatpush.bf16.msra.mxu0 %v2316
        %2350 = vmatpush.bf16.msra.mxu0 %v2315
        %2351 = vmatmul.bf16.gmra.mxu0 %v2332
        %v2352 = vpop.f32.mrf.mxu0
        %v2353 = vadd.f32 0.0, %v2352
        %v2354 = vpop.f32.mrf.mxu0
        %v2355 = vadd.f32 0.0, %v2354
        %2356 = vmatmul.bf16.gmra.mxu0 %v2335
        %v2357 = vpop.f32.mrf.mxu0
        %v2358 = vadd.f32 0.0, %v2357
        %v2359 = vpop.f32.mrf.mxu0
        %v2360 = vadd.f32 0.0, %v2359
        %2361 = vmatmul.bf16.gmra.mxu0 %v2338
        %v2362 = vpop.f32.mrf.mxu0
        %v2363 = vadd.f32 0.0, %v2362
        %v2364 = vpop.f32.mrf.mxu0
        %v2365 = vadd.f32 0.0, %v2364
        %2366 = vmatmul.bf16.gmra.mxu0 %v2341
        %v2367 = vpop.f32.mrf.mxu0
        %v2368 = vadd.f32 0.0, %v2367
        %v2369 = vpop.f32.mrf.mxu0
        %v2370 = vadd.f32 0.0, %v2369
        %2371 = vdwg.mxu0
        %v2372 = vpack.c.bf16 %v2355, %v2353
        %v2373 = vpack.c.bf16 %v2360, %v2358
        %v2374 = vpack.c.bf16 %v2365, %v2363
        %v2375 = vpack.c.bf16 %v2370, %v2368
        %s2376 = scalar_lea.vmem %s3, 12
        %v2377 = vld [vmem:[%s2376] sm:$0xf]
        %v2379 = vsel %vm759, %v2372, 0
        %v2382 = vsel %vm759, %v2373, 0
        %v2385 = vsel %vm759, %v2374, 0
        %v2388 = vsel %vm759, %v2375, 0
        %v2391 = vsel %vm1431, %v2377, 0
        %2393 = vmatpush.bf16.msra.mxu0 0
        %2394 = vmatpush.bf16.msra.mxu0 0
        %2395 = vmatpush.bf16.msra.mxu0 0
        %2396 = vmatpush.bf16.msra.mxu0 0
        %2397 = vmatpush.bf16.msra.mxu0 0
        %2398 = vmatpush.bf16.msra.mxu0 0
        %2399 = vmatpush.bf16.msra.mxu0 0
        %2400 = vmatpush.bf16.msra.mxu0 %v2391
        %2401 = vmatmul.bf16.gmra.mxu0 %v2379
        %v2402 = vpop.f32.mrf.mxu0
        %v2403 = vadd.f32 0.0, %v2402
        %v2404 = vpop.f32.mrf.mxu0
        %v2405 = vadd.f32 0.0, %v2404
        %2406 = vmatmul.bf16.gmra.mxu0 %v2382
        %v2407 = vpop.f32.mrf.mxu0
        %v2408 = vadd.f32 0.0, %v2407
        %v2409 = vpop.f32.mrf.mxu0
        %v2410 = vadd.f32 0.0, %v2409
        %2411 = vmatmul.bf16.gmra.mxu0 %v2385
        %v2412 = vpop.f32.mrf.mxu0
        %v2413 = vadd.f32 0.0, %v2412
        %v2414 = vpop.f32.mrf.mxu0
        %v2415 = vadd.f32 0.0, %v2414
        %2416 = vmatmul.bf16.gmra.mxu0 %v2388
        %v2417 = vpop.f32.mrf.mxu0
        %v2418 = vadd.f32 0.0, %v2417
        %v2419 = vpop.f32.mrf.mxu0
        %v2420 = vadd.f32 0.0, %v2419
        %2421 = vdwg.mxu0
        %v2422 = vadd.f32 %v1949, %v2403
        %v2423 = vadd.f32 %v1950, %v2405
        %v2424 = vadd.f32 %v1951, %v2408
        %v2425 = vadd.f32 %v1952, %v2410
        %v2426 = vadd.f32 %v1953, %v2413
        %v2427 = vadd.f32 %v1954, %v2415
        %v2428 = vadd.f32 %v1955, %v2418
        %v2429 = vadd.f32 %v1956, %v2420
        %2438 = vrot.lane.b32.xlu0 %v1131, 8
        %v2439 = vpop.permute.xlu0 %2438
        %2440 = vrot.lane.b32.xlu0 %v1133, 8
        %v2441 = vpop.permute.xlu0 %2440
        %2442 = vrot.lane.b32.xlu0 %v1136, 8
        %v2443 = vpop.permute.xlu0 %2442
        %2444 = vrot.lane.b32.xlu0 %v1138, 8
        %v2445 = vpop.permute.xlu0 %2444
        %2446 = vrot.lane.b32.xlu0 %v1141, 8
        %v2447 = vpop.permute.xlu0 %2446
        %2448 = vrot.lane.b32.xlu0 %v1143, 8
        %v2449 = vpop.permute.xlu0 %2448
        %2450 = vrot.lane.b32.xlu0 %v1146, 8
        %v2451 = vpop.permute.xlu0 %2450
        %2452 = vrot.lane.b32.xlu0 %v1148, 8
        %v2453 = vpop.permute.xlu0 %2452
        %2470 = vrot.lane.b32.xlu0 %v1642, 16
        %v2471 = vpop.permute.xlu0 %2470
        %2472 = vrot.lane.b32.xlu0 %v1644, 16
        %v2473 = vpop.permute.xlu0 %2472
        %2474 = vrot.lane.b32.xlu0 %v1647, 16
        %v2475 = vpop.permute.xlu0 %2474
        %2476 = vrot.lane.b32.xlu0 %v1649, 16
        %v2477 = vpop.permute.xlu0 %2476
        %2478 = vrot.lane.b32.xlu0 %v1652, 16
        %v2479 = vpop.permute.xlu0 %2478
        %2480 = vrot.lane.b32.xlu0 %v1654, 16
        %v2481 = vpop.permute.xlu0 %2480
        %2482 = vrot.lane.b32.xlu0 %v1657, 16
        %v2483 = vpop.permute.xlu0 %2482
        %2484 = vrot.lane.b32.xlu0 %v1659, 16
        %v2485 = vpop.permute.xlu0 %2484
        %2502 = vrot.lane.b32.xlu0 %v2091, 24
        %v2503 = vpop.permute.xlu0 %2502
        %2504 = vrot.lane.b32.xlu0 %v2093, 24
        %v2505 = vpop.permute.xlu0 %2504
        %2506 = vrot.lane.b32.xlu0 %v2096, 24
        %v2507 = vpop.permute.xlu0 %2506
        %2508 = vrot.lane.b32.xlu0 %v2098, 24
        %v2509 = vpop.permute.xlu0 %2508
        %2510 = vrot.lane.b32.xlu0 %v2101, 24
        %v2511 = vpop.permute.xlu0 %2510
        %2512 = vrot.lane.b32.xlu0 %v2103, 24
        %v2513 = vpop.permute.xlu0 %2512
        %2514 = vrot.lane.b32.xlu0 %v2106, 24
        %v2515 = vpop.permute.xlu0 %2514
        %2516 = vrot.lane.b32.xlu0 %v2108, 24
        %v2517 = vpop.permute.xlu0 %2516
        %v2526 = vsel %vm759, %v732, %v2439
        %v2527 = vsel %vm759, %v734, %v2441
        %v2528 = vsel %vm759, %v737, %v2443
        %v2529 = vsel %vm759, %v739, %v2445
        %v2530 = vsel %vm759, %v742, %v2447
        %v2531 = vsel %vm759, %v744, %v2449
        %v2532 = vsel %vm759, %v747, %v2451
        %v2533 = vsel %vm759, %v749, %v2453
        %vm2534 = vcmask 130048
        %v2535 = vsel %vm2534, %v2526, %v2471
        %v2536 = vsel %vm2534, %v2527, %v2473
        %v2537 = vsel %vm2534, %v2528, %v2475
        %v2538 = vsel %vm2534, %v2529, %v2477
        %v2539 = vsel %vm2534, %v2530, %v2479
        %v2540 = vsel %vm2534, %v2531, %v2481
        %v2541 = vsel %vm2534, %v2532, %v2483
        %v2542 = vsel %vm2534, %v2533, %v2485
        %vm2543 = vcmask 195584
        %v2544 = vsel %vm2543, %v2535, %v2503
        %v2545 = vsel %vm2543, %v2536, %v2505
        %v2546 = vsel %vm2543, %v2537, %v2507
        %v2547 = vsel %vm2543, %v2538, %v2509
        %v2548 = vsel %vm2543, %v2539, %v2511
        %v2549 = vsel %vm2543, %v2540, %v2513
        %v2550 = vsel %vm2543, %v2541, %v2515
        %v2551 = vsel %vm2543, %v2542, %v2517
        %2552 = vst.msk [vmem:[#allocation2] sm:$0xff] %vm382, 0.0
        %vm2553 = vcmask 254976
        %2554 = vst.msk [vmem:[#allocation2 + $0x8] sm:$0x3] %vm2553, 0.0
        %2555 = vst.msk [vmem:[#allocation2 + $0x10] sm:$0xff] %vm382, 0.0
        %2556 = vst.msk [vmem:[#allocation2 + $0x18] sm:$0x3] %vm2553, 0.0
        %2557 = vst.msk [vmem:[#allocation2 + $0x20] sm:$0xff] %vm382, 0.0
        %2558 = vst.msk [vmem:[#allocation2 + $0x28] sm:$0x3] %vm2553, 0.0
        %2559 = vst.msk [vmem:[#allocation2 + $0x30] sm:$0xff] %vm382, 0.0
        %2560 = vst.msk [vmem:[#allocation2 + $0x38] sm:$0x3] %vm2553, 0.0
        %2561 = vst.msk [vmem:[#allocation2 + $0x40] sm:$0xff] %vm382, 0.0
        %2562 = vst.msk [vmem:[#allocation2 + $0x48] sm:$0x3] %vm2553, 0.0
        %2563 = vst.msk [vmem:[#allocation2 + $0x50] sm:$0xff] %vm382, 0.0
        %2564 = vst.msk [vmem:[#allocation2 + $0x58] sm:$0x3] %vm2553, 0.0
        %2565 = vst.msk [vmem:[#allocation2 + $0x60] sm:$0xff] %vm382, 0.0
        %2566 = vst.msk [vmem:[#allocation2 + $0x68] sm:$0x3] %vm2553, 0.0
        %2567 = vst.msk [vmem:[#allocation2 + $0x70] sm:$0xff] %vm382, 0.0
        %2568 = vst.msk [vmem:[#allocation2 + $0x78] sm:$0x3] %vm2553, 0.0
        %2569 = vst.msk [vmem:[#allocation2 + $0x80] sm:$0xff] %vm382, 0.0
        %2570 = vst.msk [vmem:[#allocation2 + $0x88] sm:$0x3] %vm2553, 0.0
        %2571 = vst.msk [vmem:[#allocation2 + $0x90] sm:$0xff] %vm382, 0.0
        %2572 = vst.msk [vmem:[#allocation2 + $0x98] sm:$0x3] %vm2553, 0.0
        %s2573 = scalar_lea.vmem [#allocation2], 16
        %2574 = vst.msk [vmem:[%s2573 + $0x1] sm:$0xff] %vm382, %v2544
        %2575 = vst.msk [vmem:[%s2573 + $0x11] sm:$0xff] %vm382, %v2545
        %2576 = vst.msk [vmem:[%s2573 + $0x21] sm:$0xff] %vm382, %v2546
        %2577 = vst.msk [vmem:[%s2573 + $0x31] sm:$0xff] %vm382, %v2547
        %2578 = vst.msk [vmem:[%s2573 + $0x41] sm:$0xff] %vm382, %v2548
        %2579 = vst.msk [vmem:[%s2573 + $0x51] sm:$0xff] %vm382, %v2549
        %2580 = vst.msk [vmem:[%s2573 + $0x61] sm:$0xff] %vm382, %v2550
        %2581 = vst.msk [vmem:[%s2573 + $0x71] sm:$0xff] %vm382, %v2551
        %v2582 = vld [vmem:[#allocation2] sm:$0xff]
        %v2583 = vld [vmem:[#allocation2 + $0x10] sm:$0xff]
        %v2584 = vld [vmem:[#allocation2 + $0x20] sm:$0xff]
        %v2585 = vld [vmem:[#allocation2 + $0x30] sm:$0xff]
        %v2586 = vld [vmem:[#allocation2 + $0x40] sm:$0xff]
        %v2587 = vld [vmem:[#allocation2 + $0x50] sm:$0xff]
        %v2588 = vld [vmem:[#allocation2 + $0x60] sm:$0xff]
        %v2589 = vld [vmem:[#allocation2 + $0x70] sm:$0xff]
        %v2590 = vld [vmem:[%s8] sm:$0x1]
        %v2591 = vperm.slane %v2590, 0
        %v2592 = vmul.f32 %v2582, %v2591
        %v2593 = vmul.f32 %v2583, %v2591
        %v2594 = vmul.f32 %v2584, %v2591
        %v2595 = vmul.f32 %v2585, %v2591
        %v2596 = vmul.f32 %v2586, %v2591
        %v2597 = vmul.f32 %v2587, %v2591
        %v2598 = vmul.f32 %v2588, %v2591
        %v2599 = vmul.f32 %v2589, %v2591
        %v2600 = vld [vmem:[%s8 + $0x10] sm:$0x1]
        %v2601 = vperm.slane %v2600, 0
        %v2602 = vadd.f32 %v2592, %v2601
        %v2603 = vadd.f32 %v2593, %v2601
        %v2604 = vadd.f32 %v2594, %v2601
        %v2605 = vadd.f32 %v2595, %v2601
        %v2606 = vadd.f32 %v2596, %v2601
        %v2607 = vadd.f32 %v2597, %v2601
        %v2608 = vadd.f32 %v2598, %v2601
        %v2609 = vadd.f32 %v2599, %v2601
        %v2610 = vld [vmem:[#allocation2 + $0x1] sm:$0xff]
        %v2611 = vld [vmem:[#allocation2 + $0x11] sm:$0xff]
        %v2612 = vld [vmem:[#allocation2 + $0x21] sm:$0xff]
        %v2613 = vld [vmem:[#allocation2 + $0x31] sm:$0xff]
        %v2614 = vld [vmem:[#allocation2 + $0x41] sm:$0xff]
        %v2615 = vld [vmem:[#allocation2 + $0x51] sm:$0xff]
        %v2616 = vld [vmem:[#allocation2 + $0x61] sm:$0xff]
        %v2617 = vld [vmem:[#allocation2 + $0x71] sm:$0xff]
        %v2618 = vld [vmem:[%s8 + $0x1] sm:$0x1]
        %v2619 = vperm.slane %v2618, 0
        %v2620 = vmul.f32 %v2610, %v2619
        %v2621 = vmul.f32 %v2611, %v2619
        %v2622 = vmul.f32 %v2612, %v2619
        %v2623 = vmul.f32 %v2613, %v2619
        %v2624 = vmul.f32 %v2614, %v2619
        %v2625 = vmul.f32 %v2615, %v2619
        %v2626 = vmul.f32 %v2616, %v2619
        %v2627 = vmul.f32 %v2617, %v2619
        %v2628 = vadd.f32 %v2602, %v2620
        %v2629 = vadd.f32 %v2603, %v2621
        %v2630 = vadd.f32 %v2604, %v2622
        %v2631 = vadd.f32 %v2605, %v2623
        %v2632 = vadd.f32 %v2606, %v2624
        %v2633 = vadd.f32 %v2607, %v2625
        %v2634 = vadd.f32 %v2608, %v2626
        %v2635 = vadd.f32 %v2609, %v2627
        %v2636 = vld [vmem:[#allocation2 + $0x2] sm:$0xff]
        %v2637 = vld [vmem:[#allocation2 + $0x12] sm:$0xff]
        %v2638 = vld [vmem:[#allocation2 + $0x22] sm:$0xff]
        %v2639 = vld [vmem:[#allocation2 + $0x32] sm:$0xff]
        %v2640 = vld [vmem:[#allocation2 + $0x42] sm:$0xff]
        %v2641 = vld [vmem:[#allocation2 + $0x52] sm:$0xff]
        %v2642 = vld [vmem:[#allocation2 + $0x62] sm:$0xff]
        %v2643 = vld [vmem:[#allocation2 + $0x72] sm:$0xff]
        %v2644 = vld [vmem:[%s8 + $0x2] sm:$0x1]
        %v2645 = vperm.slane %v2644, 0
        %v2646 = vmul.f32 %v2636, %v2645
        %v2647 = vmul.f32 %v2637, %v2645
        %v2648 = vmul.f32 %v2638, %v2645
        %v2649 = vmul.f32 %v2639, %v2645
        %v2650 = vmul.f32 %v2640, %v2645
        %v2651 = vmul.f32 %v2641, %v2645
        %v2652 = vmul.f32 %v2642, %v2645
        %v2653 = vmul.f32 %v2643, %v2645
        %v2654 = vadd.f32 %v2628, %v2646
        %v2655 = vadd.f32 %v2629, %v2647
        %v2656 = vadd.f32 %v2630, %v2648
        %v2657 = vadd.f32 %v2631, %v2649
        %v2658 = vadd.f32 %v2632, %v2650
        %v2659 = vadd.f32 %v2633, %v2651
        %v2660 = vadd.f32 %v2634, %v2652
        %v2661 = vadd.f32 %v2635, %v2653
        %v2662 = vld [vmem:[%s2573] sm:$0xff]
        %v2663 = vld [vmem:[%s2573 + $0x10] sm:$0xff]
        %v2664 = vld [vmem:[%s2573 + $0x20] sm:$0xff]
        %v2665 = vld [vmem:[%s2573 + $0x30] sm:$0xff]
        %v2666 = vld [vmem:[%s2573 + $0x40] sm:$0xff]
        %v2667 = vld [vmem:[%s2573 + $0x50] sm:$0xff]
        %v2668 = vld [vmem:[%s2573 + $0x60] sm:$0xff]
        %v2669 = vld [vmem:[%s2573 + $0x70] sm:$0xff]
        %v2670 = vld [vmem:[%s8 + $0x3] sm:$0x1]
        %v2671 = vperm.slane %v2670, 0
        %v2672 = vmul.f32 %v2662, %v2671
        %v2673 = vmul.f32 %v2663, %v2671
        %v2674 = vmul.f32 %v2664, %v2671
        %v2675 = vmul.f32 %v2665, %v2671
        %v2676 = vmul.f32 %v2666, %v2671
        %v2677 = vmul.f32 %v2667, %v2671
        %v2678 = vmul.f32 %v2668, %v2671
        %v2679 = vmul.f32 %v2669, %v2671
        %v2680 = vadd.f32 %v2654, %v2672
        %v2681 = vadd.f32 %v2655, %v2673
        %v2682 = vadd.f32 %v2656, %v2674
        %v2683 = vadd.f32 %v2657, %v2675
        %v2684 = vadd.f32 %v2658, %v2676
        %v2685 = vadd.f32 %v2659, %v2677
        %v2686 = vadd.f32 %v2660, %v2678
        %v2687 = vadd.f32 %v2661, %v2679
        %v2688 = vld [vmem:[%s2573 + $0x1] sm:$0xff]
        %v2689 = vld [vmem:[%s2573 + $0x11] sm:$0xff]
        %v2690 = vld [vmem:[%s2573 + $0x21] sm:$0xff]
        %v2691 = vld [vmem:[%s2573 + $0x31] sm:$0xff]
        %v2692 = vld [vmem:[%s2573 + $0x41] sm:$0xff]
        %v2693 = vld [vmem:[%s2573 + $0x51] sm:$0xff]
        %v2694 = vld [vmem:[%s2573 + $0x61] sm:$0xff]
        %v2695 = vld [vmem:[%s2573 + $0x71] sm:$0xff]
        %v2696 = vld [vmem:[%s8 + $0x4] sm:$0x1]
        %v2697 = vperm.slane %v2696, 0
        %v2698 = vmul.f32 %v2688, %v2697
        %v2699 = vmul.f32 %v2689, %v2697
        %v2700 = vmul.f32 %v2690, %v2697
        %v2701 = vmul.f32 %v2691, %v2697
        %v2702 = vmul.f32 %v2692, %v2697
        %v2703 = vmul.f32 %v2693, %v2697
        %v2704 = vmul.f32 %v2694, %v2697
        %v2705 = vmul.f32 %v2695, %v2697
        %v2706 = vadd.f32 %v2680, %v2698
        %v2707 = vadd.f32 %v2681, %v2699
        %v2708 = vadd.f32 %v2682, %v2700
        %v2709 = vadd.f32 %v2683, %v2701
        %v2710 = vadd.f32 %v2684, %v2702
        %v2711 = vadd.f32 %v2685, %v2703
        %v2712 = vadd.f32 %v2686, %v2704
        %v2713 = vadd.f32 %v2687, %v2705
        %v2714 = vld [vmem:[%s2573 + $0x2] sm:$0xff]
        %v2715 = vld [vmem:[%s2573 + $0x12] sm:$0xff]
        %v2716 = vld [vmem:[%s2573 + $0x22] sm:$0xff]
        %v2717 = vld [vmem:[%s2573 + $0x32] sm:$0xff]
        %v2718 = vld [vmem:[%s2573 + $0x42] sm:$0xff]
        %v2719 = vld [vmem:[%s2573 + $0x52] sm:$0xff]
        %v2720 = vld [vmem:[%s2573 + $0x62] sm:$0xff]
        %v2721 = vld [vmem:[%s2573 + $0x72] sm:$0xff]
        %v2722 = vld [vmem:[%s8 + $0x5] sm:$0x1]
        %v2723 = vperm.slane %v2722, 0
        %v2724 = vmul.f32 %v2714, %v2723
        %v2725 = vmul.f32 %v2715, %v2723
        %v2726 = vmul.f32 %v2716, %v2723
        %v2727 = vmul.f32 %v2717, %v2723
        %v2728 = vmul.f32 %v2718, %v2723
        %v2729 = vmul.f32 %v2719, %v2723
        %v2730 = vmul.f32 %v2720, %v2723
        %v2731 = vmul.f32 %v2721, %v2723
        %v2732 = vadd.f32 %v2706, %v2724
        %v2733 = vadd.f32 %v2707, %v2725
        %v2734 = vadd.f32 %v2708, %v2726
        %v2735 = vadd.f32 %v2709, %v2727
        %v2736 = vadd.f32 %v2710, %v2728
        %v2737 = vadd.f32 %v2711, %v2729
        %v2738 = vadd.f32 %v2712, %v2730
        %v2739 = vadd.f32 %v2713, %v2731
        %s2740 = scalar_lea.vmem [#allocation2], 32
        %v2741 = vld [vmem:[%s2740] sm:$0xff]
        %v2742 = vld [vmem:[%s2740 + $0x10] sm:$0xff]
        %v2743 = vld [vmem:[%s2740 + $0x20] sm:$0xff]
        %v2744 = vld [vmem:[%s2740 + $0x30] sm:$0xff]
        %v2745 = vld [vmem:[%s2740 + $0x40] sm:$0xff]
        %v2746 = vld [vmem:[%s2740 + $0x50] sm:$0xff]
        %v2747 = vld [vmem:[%s2740 + $0x60] sm:$0xff]
        %v2748 = vld [vmem:[%s2740 + $0x70] sm:$0xff]
        %v2749 = vld [vmem:[%s8 + $0x6] sm:$0x1]
        %v2750 = vperm.slane %v2749, 0
        %v2751 = vmul.f32 %v2741, %v2750
        %v2752 = vmul.f32 %v2742, %v2750
        %v2753 = vmul.f32 %v2743, %v2750
        %v2754 = vmul.f32 %v2744, %v2750
        %v2755 = vmul.f32 %v2745, %v2750
        %v2756 = vmul.f32 %v2746, %v2750
        %v2757 = vmul.f32 %v2747, %v2750
        %v2758 = vmul.f32 %v2748, %v2750
        %v2759 = vadd.f32 %v2732, %v2751
        %v2760 = vadd.f32 %v2733, %v2752
        %v2761 = vadd.f32 %v2734, %v2753
        %v2762 = vadd.f32 %v2735, %v2754
        %v2763 = vadd.f32 %v2736, %v2755
        %v2764 = vadd.f32 %v2737, %v2756
        %v2765 = vadd.f32 %v2738, %v2757
        %v2766 = vadd.f32 %v2739, %v2758
        %v2767 = vld [vmem:[%s2740 + $0x1] sm:$0xff]
        %v2768 = vld [vmem:[%s2740 + $0x11] sm:$0xff]
        %v2769 = vld [vmem:[%s2740 + $0x21] sm:$0xff]
        %v2770 = vld [vmem:[%s2740 + $0x31] sm:$0xff]
        %v2771 = vld [vmem:[%s2740 + $0x41] sm:$0xff]
        %v2772 = vld [vmem:[%s2740 + $0x51] sm:$0xff]
        %v2773 = vld [vmem:[%s2740 + $0x61] sm:$0xff]
        %v2774 = vld [vmem:[%s2740 + $0x71] sm:$0xff]
        %v2775 = vld [vmem:[%s8 + $0x7] sm:$0x1]
        %v2776 = vperm.slane %v2775, 0
        %v2777 = vmul.f32 %v2767, %v2776
        %v2778 = vmul.f32 %v2768, %v2776
        %v2779 = vmul.f32 %v2769, %v2776
        %v2780 = vmul.f32 %v2770, %v2776
        %v2781 = vmul.f32 %v2771, %v2776
        %v2782 = vmul.f32 %v2772, %v2776
        %v2783 = vmul.f32 %v2773, %v2776
        %v2784 = vmul.f32 %v2774, %v2776
        %v2785 = vadd.f32 %v2759, %v2777
        %v2786 = vadd.f32 %v2760, %v2778
        %v2787 = vadd.f32 %v2761, %v2779
        %v2788 = vadd.f32 %v2762, %v2780
        %v2789 = vadd.f32 %v2763, %v2781
        %v2790 = vadd.f32 %v2764, %v2782
        %v2791 = vadd.f32 %v2765, %v2783
        %v2792 = vadd.f32 %v2766, %v2784
        %v2793 = vld [vmem:[%s2740 + $0x2] sm:$0xff]
        %v2794 = vld [vmem:[%s2740 + $0x12] sm:$0xff]
        %v2795 = vld [vmem:[%s2740 + $0x22] sm:$0xff]
        %v2796 = vld [vmem:[%s2740 + $0x32] sm:$0xff]
        %v2797 = vld [vmem:[%s2740 + $0x42] sm:$0xff]
        %v2798 = vld [vmem:[%s2740 + $0x52] sm:$0xff]
        %v2799 = vld [vmem:[%s2740 + $0x62] sm:$0xff]
        %v2800 = vld [vmem:[%s2740 + $0x72] sm:$0xff]
        %v2801 = vld [vmem:[%s8 + $0x8] sm:$0x1]
        %v2802 = vperm.slane %v2801, 0
        %v2803 = vmul.f32 %v2793, %v2802
        %v2804 = vmul.f32 %v2794, %v2802
        %v2805 = vmul.f32 %v2795, %v2802
        %v2806 = vmul.f32 %v2796, %v2802
        %v2807 = vmul.f32 %v2797, %v2802
        %v2808 = vmul.f32 %v2798, %v2802
        %v2809 = vmul.f32 %v2799, %v2802
        %v2810 = vmul.f32 %v2800, %v2802
        %v2811 = vadd.f32 %v2785, %v2803
        %v2812 = vadd.f32 %v2786, %v2804
        %v2813 = vadd.f32 %v2787, %v2805
        %v2814 = vadd.f32 %v2788, %v2806
        %v2815 = vadd.f32 %v2789, %v2807
        %v2816 = vadd.f32 %v2790, %v2808
        %v2817 = vadd.f32 %v2791, %v2809
        %v2818 = vadd.f32 %v2792, %v2810
        %v2819 = vld [vmem:[%s8 + $0xb] sm:$0x1]
        %v2820 = vld [vmem:[%s8 + $0xc] sm:$0x1]
        %v2821 = vsel %vm382, %v2811, 0.0
        %2822 = vadd.xlane.f32.xlu0 %v2821
        %v2823 = vpop.xlane.xlu0 %2822
        %v2824 = vsel %vm382, %v2812, 0.0
        %2825 = vadd.xlane.f32.xlu0 %v2824
        %v2826 = vpop.xlane.xlu0 %2825
        %v2827 = vsel %vm382, %v2813, 0.0
        %2828 = vadd.xlane.f32.xlu0 %v2827
        %v2829 = vpop.xlane.xlu0 %2828
        %v2830 = vsel %vm382, %v2814, 0.0
        %2831 = vadd.xlane.f32.xlu0 %v2830
        %v2832 = vpop.xlane.xlu0 %2831
        %v2833 = vsel %vm382, %v2815, 0.0
        %2834 = vadd.xlane.f32.xlu0 %v2833
        %v2835 = vpop.xlane.xlu0 %2834
        %v2836 = vsel %vm382, %v2816, 0.0
        %2837 = vadd.xlane.f32.xlu0 %v2836
        %v2838 = vpop.xlane.xlu0 %2837
        %v2839 = vsel %vm382, %v2817, 0.0
        %2840 = vadd.xlane.f32.xlu0 %v2839
        %v2841 = vpop.xlane.xlu0 %2840
        %v2842 = vsel %vm382, %v2818, 0.0
        %2843 = vadd.xlane.f32.xlu0 %v2842
        %v2844 = vpop.xlane.xlu0 %2843
        %v2845 = vmul.f32 %v2823, %v413
        %v2846 = vmul.f32 %v2826, %v413
        %v2847 = vmul.f32 %v2829, %v413
        %v2848 = vmul.f32 %v2832, %v413
        %v2849 = vmul.f32 %v2835, %v413
        %v2850 = vmul.f32 %v2838, %v413
        %v2851 = vmul.f32 %v2841, %v413
        %v2852 = vmul.f32 %v2844, %v413
        %v2853 = vsub.f32 %v2811, %v2845
        %v2854 = vsub.f32 %v2812, %v2846
        %v2855 = vsub.f32 %v2813, %v2847
        %v2856 = vsub.f32 %v2814, %v2848
        %v2857 = vsub.f32 %v2815, %v2849
        %v2858 = vsub.f32 %v2816, %v2850
        %v2859 = vsub.f32 %v2817, %v2851
        %v2860 = vsub.f32 %v2818, %v2852
        %v2861 = vmul.f32 %v2853, %v2853
        %v2862 = vmul.f32 %v2854, %v2854
        %v2863 = vmul.f32 %v2855, %v2855
        %v2864 = vmul.f32 %v2856, %v2856
        %v2865 = vmul.f32 %v2857, %v2857
        %v2866 = vmul.f32 %v2858, %v2858
        %v2867 = vmul.f32 %v2859, %v2859
        %v2868 = vmul.f32 %v2860, %v2860
        %v2869 = vsel %vm382, %v2861, 0.0
        %2870 = vadd.xlane.f32.xlu0 %v2869
        %v2871 = vpop.xlane.xlu0 %2870
        %v2872 = vsel %vm382, %v2862, 0.0
        %2873 = vadd.xlane.f32.xlu0 %v2872
        %v2874 = vpop.xlane.xlu0 %2873
        %v2875 = vsel %vm382, %v2863, 0.0
        %2876 = vadd.xlane.f32.xlu0 %v2875
        %v2877 = vpop.xlane.xlu0 %2876
        %v2878 = vsel %vm382, %v2864, 0.0
        %2879 = vadd.xlane.f32.xlu0 %v2878
        %v2880 = vpop.xlane.xlu0 %2879
        %v2881 = vsel %vm382, %v2865, 0.0
        %2882 = vadd.xlane.f32.xlu0 %v2881
        %v2883 = vpop.xlane.xlu0 %2882
        %v2884 = vsel %vm382, %v2866, 0.0
        %2885 = vadd.xlane.f32.xlu0 %v2884
        %v2886 = vpop.xlane.xlu0 %2885
        %v2887 = vsel %vm382, %v2867, 0.0
        %2888 = vadd.xlane.f32.xlu0 %v2887
        %v2889 = vpop.xlane.xlu0 %2888
        %v2890 = vsel %vm382, %v2868, 0.0
        %2891 = vadd.xlane.f32.xlu0 %v2890
        %v2892 = vpop.xlane.xlu0 %2891
        %v2893 = vmul.f32 %v2871, %v413
        %v2894 = vmul.f32 %v2874, %v413
        %v2895 = vmul.f32 %v2877, %v413
        %v2896 = vmul.f32 %v2880, %v413
        %v2897 = vmul.f32 %v2883, %v413
        %v2898 = vmul.f32 %v2886, %v413
        %v2899 = vmul.f32 %v2889, %v413
        %v2900 = vmul.f32 %v2892, %v413
        %v2901 = vadd.f32 %v2893, 1e-06
        %v2902 = vadd.f32 %v2894, 1e-06
        %v2903 = vadd.f32 %v2895, 1e-06
        %v2904 = vadd.f32 %v2896, 1e-06
        %v2905 = vadd.f32 %v2897, 1e-06
        %v2906 = vadd.f32 %v2898, 1e-06
        %v2907 = vadd.f32 %v2899, 1e-06
        %v2908 = vadd.f32 %v2900, 1e-06
        %v2909 = vrsqrt.pop %v2901
        %v2910 = vmul.f32 %v2909, %v2901
        %v2911 = vmul.f32 %v2910, %v2909
        %v2912 = vmul.f32 0.5, %v2911
        %v2913 = vsub.f32 1.5, %v2912
        %v2914 = vmul.f32 %v2909, %v2913
        %vm2915 = vweird.f32 %v2901
        %vm2916 = vweird.f32 %v2909
        %vm2917 = vmor %vm2915, %vm2916
        %v2918 = vsel %vm2917, %v2909, %v2914
        %v2919 = vrsqrt.pop %v2902
        %v2920 = vmul.f32 %v2919, %v2902
        %v2921 = vmul.f32 %v2920, %v2919
        %v2922 = vmul.f32 0.5, %v2921
        %v2923 = vsub.f32 1.5, %v2922
        %v2924 = vmul.f32 %v2919, %v2923
        %vm2925 = vweird.f32 %v2902
        %vm2926 = vweird.f32 %v2919
        %vm2927 = vmor %vm2925, %vm2926
        %v2928 = vsel %vm2927, %v2919, %v2924
        %v2929 = vrsqrt.pop %v2903
        %v2930 = vmul.f32 %v2929, %v2903
        %v2931 = vmul.f32 %v2930, %v2929
        %v2932 = vmul.f32 0.5, %v2931
        %v2933 = vsub.f32 1.5, %v2932
        %v2934 = vmul.f32 %v2929, %v2933
        %vm2935 = vweird.f32 %v2903
        %vm2936 = vweird.f32 %v2929
        %vm2937 = vmor %vm2935, %vm2936
        %v2938 = vsel %vm2937, %v2929, %v2934
        %v2939 = vrsqrt.pop %v2904
        %v2940 = vmul.f32 %v2939, %v2904
        %v2941 = vmul.f32 %v2940, %v2939
        %v2942 = vmul.f32 0.5, %v2941
        %v2943 = vsub.f32 1.5, %v2942
        %v2944 = vmul.f32 %v2939, %v2943
        %vm2945 = vweird.f32 %v2904
        %vm2946 = vweird.f32 %v2939
        %vm2947 = vmor %vm2945, %vm2946
        %v2948 = vsel %vm2947, %v2939, %v2944
        %v2949 = vrsqrt.pop %v2905
        %v2950 = vmul.f32 %v2949, %v2905
        %v2951 = vmul.f32 %v2950, %v2949
        %v2952 = vmul.f32 0.5, %v2951
        %v2953 = vsub.f32 1.5, %v2952
        %v2954 = vmul.f32 %v2949, %v2953
        %vm2955 = vweird.f32 %v2905
        %vm2956 = vweird.f32 %v2949
        %vm2957 = vmor %vm2955, %vm2956
        %v2958 = vsel %vm2957, %v2949, %v2954
        %v2959 = vrsqrt.pop %v2906
        %v2960 = vmul.f32 %v2959, %v2906
        %v2961 = vmul.f32 %v2960, %v2959
        %v2962 = vmul.f32 0.5, %v2961
        %v2963 = vsub.f32 1.5, %v2962
        %v2964 = vmul.f32 %v2959, %v2963
        %vm2965 = vweird.f32 %v2906
        %vm2966 = vweird.f32 %v2959
        %vm2967 = vmor %vm2965, %vm2966
        %v2968 = vsel %vm2967, %v2959, %v2964
        %v2969 = vrsqrt.pop %v2907
        %v2970 = vmul.f32 %v2969, %v2907
        %v2971 = vmul.f32 %v2970, %v2969
        %v2972 = vmul.f32 0.5, %v2971
        %v2973 = vsub.f32 1.5, %v2972
        %v2974 = vmul.f32 %v2969, %v2973
        %vm2975 = vweird.f32 %v2907
        %vm2976 = vweird.f32 %v2969
        %vm2977 = vmor %vm2975, %vm2976
        %v2978 = vsel %vm2977, %v2969, %v2974
        %v2979 = vrsqrt.pop %v2908
        %v2980 = vmul.f32 %v2979, %v2908
        %v2981 = vmul.f32 %v2980, %v2979
        %v2982 = vmul.f32 0.5, %v2981
        %v2983 = vsub.f32 1.5, %v2982
        %v2984 = vmul.f32 %v2979, %v2983
        %vm2985 = vweird.f32 %v2908
        %vm2986 = vweird.f32 %v2979
        %vm2987 = vmor %vm2985, %vm2986
        %v2988 = vsel %vm2987, %v2979, %v2984
        %v2989 = vmul.f32 %v2853, %v2918
        %v2990 = vmul.f32 %v2854, %v2928
        %v2991 = vmul.f32 %v2855, %v2938
        %v2992 = vmul.f32 %v2856, %v2948
        %v2993 = vmul.f32 %v2857, %v2958
        %v2994 = vmul.f32 %v2858, %v2968
        %v2995 = vmul.f32 %v2859, %v2978
        %v2996 = vmul.f32 %v2860, %v2988
        %v2997 = vperm.slane %v2819, 0
        %v2998 = vmul.f32 %v2989, %v2997
        %v2999 = vmul.f32 %v2990, %v2997
        %v3000 = vmul.f32 %v2991, %v2997
        %v3001 = vmul.f32 %v2992, %v2997
        %v3002 = vmul.f32 %v2993, %v2997
        %v3003 = vmul.f32 %v2994, %v2997
        %v3004 = vmul.f32 %v2995, %v2997
        %v3005 = vmul.f32 %v2996, %v2997
        %v3006 = vperm.slane %v2820, 0
        %v3007 = vadd.f32 %v2998, %v3006
        %v3008 = vadd.f32 %v2999, %v3006
        %v3009 = vadd.f32 %v3000, %v3006
        %v3010 = vadd.f32 %v3001, %v3006
        %v3011 = vadd.f32 %v3002, %v3006
        %v3012 = vadd.f32 %v3003, %v3006
        %v3013 = vadd.f32 %v3004, %v3006
        %v3014 = vadd.f32 %v3005, %v3006
        %v3015 = vpack.c.bf16 %v3008, %v3007
        %v3016 = vpack.c.bf16 %v3010, %v3009
        %v3017 = vpack.c.bf16 %v3012, %v3011
        %v3018 = vpack.c.bf16 %v3014, %v3013
        %v3019 = vld [vmem:[%s4] sm:$0xf]
        %v3020 = vld [vmem:[%s4 + $0x4] sm:$0xf]
        %v3021 = vld [vmem:[%s4 + $0x8] sm:$0xf]
        %v3022 = vld [vmem:[%s4 + $0xc] sm:$0xf]
        %v3027 = vunpack.c.l.b16 %v3019
        %v3028 = vunpack.c.l.b16 %v3020
        %v3029 = vunpack.c.l.b16 %v3021
        %v3030 = vunpack.c.l.b16 %v3022
        %v3031 = vpack.c.b16 %v3028, %v3027
        %v3032 = vpack.c.b16 %v3030, %v3029
        %v3036 = vsel %vm382, %v3015, 0
        %v3039 = vsel %vm382, %v3016, 0
        %v3042 = vsel %vm382, %v3017, 0
        %v3045 = vsel %vm382, %v3018, 0
        %3047 = vmatpush.bf16.msra.mxu0 0
        %3048 = vmatpush.bf16.msra.mxu0 0
        %3049 = vmatpush.bf16.msra.mxu0 0
        %3050 = vmatpush.bf16.msra.mxu0 0
        %3051 = vmatpush.bf16.msra.mxu0 0
        %3052 = vmatpush.bf16.msra.mxu0 0
        %3053 = vmatpush.bf16.msra.mxu0 %v3032
        %3054 = vmatpush.bf16.msra.mxu0 %v3031
        %3055 = vmatmul.bf16.gmra.mxu0 %v3036
        %v3056 = vpop.f32.mrf.mxu0
        %v3057 = vadd.f32 0.0, %v3056
        %v3058 = vpop.f32.mrf.mxu0
        %v3059 = vadd.f32 0.0, %v3058
        %3060 = vmatmul.bf16.gmra.mxu0 %v3039
        %v3061 = vpop.f32.mrf.mxu0
        %v3062 = vadd.f32 0.0, %v3061
        %v3063 = vpop.f32.mrf.mxu0
        %v3064 = vadd.f32 0.0, %v3063
        %3065 = vmatmul.bf16.gmra.mxu0 %v3042
        %v3066 = vpop.f32.mrf.mxu0
        %v3067 = vadd.f32 0.0, %v3066
        %v3068 = vpop.f32.mrf.mxu0
        %v3069 = vadd.f32 0.0, %v3068
        %3070 = vmatmul.bf16.gmra.mxu0 %v3045
        %v3071 = vpop.f32.mrf.mxu0
        %v3072 = vadd.f32 0.0, %v3071
        %v3073 = vpop.f32.mrf.mxu0
        %v3074 = vadd.f32 0.0, %v3073
        %3075 = vdwg.mxu0
        %v3076 = vadd.f32 %v2422, %v3057
        %v3077 = vadd.f32 %v2423, %v3059
        %v3078 = vadd.f32 %v2424, %v3062
        %v3079 = vadd.f32 %v2425, %v3064
        %v3080 = vadd.f32 %v2426, %v3067
        %v3081 = vadd.f32 %v2427, %v3069
        %v3082 = vadd.f32 %v2428, %v3072
        %v3083 = vadd.f32 %v2429, %v3074
        %v3084 = vld [vmem:[%s8 + $0xf] sm:$0x1]
        %v3085 = vperm.slane %v3084, 0
        %v3086 = vadd.f32 %v3076, %v3085
        %v3087 = vadd.f32 %v3077, %v3085
        %v3088 = vadd.f32 %v3078, %v3085
        %v3089 = vadd.f32 %v3079, %v3085
        %v3090 = vadd.f32 %v3080, %v3085
        %v3091 = vadd.f32 %v3081, %v3085
        %v3092 = vadd.f32 %v3082, %v3085
        %v3093 = vadd.f32 %v3083, %v3085
        %v3094 = vadd.f32 %v372, %v3086
        %v3095 = vadd.f32 %v373, %v3087
        %v3096 = vadd.f32 %v374, %v3088
        %v3097 = vadd.f32 %v375, %v3089
        %v3098 = vadd.f32 %v376, %v3090
        %v3099 = vadd.f32 %v377, %v3091
        %v3100 = vadd.f32 %v378, %v3092
        %v3101 = vadd.f32 %v379, %v3093
        %v3102 = vld [vmem:[%s8 + $0xd] sm:$0x1]
        %v3103 = vld [vmem:[%s8 + $0xe] sm:$0x1]
        %v3104 = vsel %vm382, %v3094, 0.0
        %3105 = vadd.xlane.f32.xlu0 %v3104
        %v3106 = vpop.xlane.xlu0 %3105
        %v3107 = vsel %vm382, %v3095, 0.0
        %3108 = vadd.xlane.f32.xlu0 %v3107
        %v3109 = vpop.xlane.xlu0 %3108
        %v3110 = vsel %vm382, %v3096, 0.0
        %3111 = vadd.xlane.f32.xlu0 %v3110
        %v3112 = vpop.xlane.xlu0 %3111
        %v3113 = vsel %vm382, %v3097, 0.0
        %3114 = vadd.xlane.f32.xlu0 %v3113
        %v3115 = vpop.xlane.xlu0 %3114
        %v3116 = vsel %vm382, %v3098, 0.0
        %3117 = vadd.xlane.f32.xlu0 %v3116
        %v3118 = vpop.xlane.xlu0 %3117
        %v3119 = vsel %vm382, %v3099, 0.0
        %3120 = vadd.xlane.f32.xlu0 %v3119
        %v3121 = vpop.xlane.xlu0 %3120
        %v3122 = vsel %vm382, %v3100, 0.0
        %3123 = vadd.xlane.f32.xlu0 %v3122
        %v3124 = vpop.xlane.xlu0 %3123
        %v3125 = vsel %vm382, %v3101, 0.0
        %3126 = vadd.xlane.f32.xlu0 %v3125
        %v3127 = vpop.xlane.xlu0 %3126
        %v3128 = vmul.f32 %v3106, %v413
        %v3129 = vmul.f32 %v3109, %v413
        %v3130 = vmul.f32 %v3112, %v413
        %v3131 = vmul.f32 %v3115, %v413
        %v3132 = vmul.f32 %v3118, %v413
        %v3133 = vmul.f32 %v3121, %v413
        %v3134 = vmul.f32 %v3124, %v413
        %v3135 = vmul.f32 %v3127, %v413
        %v3136 = vsub.f32 %v3094, %v3128
        %v3137 = vsub.f32 %v3095, %v3129
        %v3138 = vsub.f32 %v3096, %v3130
        %v3139 = vsub.f32 %v3097, %v3131
        %v3140 = vsub.f32 %v3098, %v3132
        %v3141 = vsub.f32 %v3099, %v3133
        %v3142 = vsub.f32 %v3100, %v3134
        %v3143 = vsub.f32 %v3101, %v3135
        %v3144 = vmul.f32 %v3136, %v3136
        %v3145 = vmul.f32 %v3137, %v3137
        %v3146 = vmul.f32 %v3138, %v3138
        %v3147 = vmul.f32 %v3139, %v3139
        %v3148 = vmul.f32 %v3140, %v3140
        %v3149 = vmul.f32 %v3141, %v3141
        %v3150 = vmul.f32 %v3142, %v3142
        %v3151 = vmul.f32 %v3143, %v3143
        %v3152 = vsel %vm382, %v3144, 0.0
        %3153 = vadd.xlane.f32.xlu0 %v3152
        %v3154 = vpop.xlane.xlu0 %3153
        %v3155 = vsel %vm382, %v3145, 0.0
        %3156 = vadd.xlane.f32.xlu0 %v3155
        %v3157 = vpop.xlane.xlu0 %3156
        %v3158 = vsel %vm382, %v3146, 0.0
        %3159 = vadd.xlane.f32.xlu0 %v3158
        %v3160 = vpop.xlane.xlu0 %3159
        %v3161 = vsel %vm382, %v3147, 0.0
        %3162 = vadd.xlane.f32.xlu0 %v3161
        %v3163 = vpop.xlane.xlu0 %3162
        %v3164 = vsel %vm382, %v3148, 0.0
        %3165 = vadd.xlane.f32.xlu0 %v3164
        %v3166 = vpop.xlane.xlu0 %3165
        %v3167 = vsel %vm382, %v3149, 0.0
        %3168 = vadd.xlane.f32.xlu0 %v3167
        %v3169 = vpop.xlane.xlu0 %3168
        %v3170 = vsel %vm382, %v3150, 0.0
        %3171 = vadd.xlane.f32.xlu0 %v3170
        %v3172 = vpop.xlane.xlu0 %3171
        %v3173 = vsel %vm382, %v3151, 0.0
        %3174 = vadd.xlane.f32.xlu0 %v3173
        %v3175 = vpop.xlane.xlu0 %3174
        %v3176 = vmul.f32 %v3154, %v413
        %v3177 = vmul.f32 %v3157, %v413
        %v3178 = vmul.f32 %v3160, %v413
        %v3179 = vmul.f32 %v3163, %v413
        %v3180 = vmul.f32 %v3166, %v413
        %v3181 = vmul.f32 %v3169, %v413
        %v3182 = vmul.f32 %v3172, %v413
        %v3183 = vmul.f32 %v3175, %v413
        %v3184 = vadd.f32 %v3176, 1e-06
        %v3185 = vadd.f32 %v3177, 1e-06
        %v3186 = vadd.f32 %v3178, 1e-06
        %v3187 = vadd.f32 %v3179, 1e-06
        %v3188 = vadd.f32 %v3180, 1e-06
        %v3189 = vadd.f32 %v3181, 1e-06
        %v3190 = vadd.f32 %v3182, 1e-06
        %v3191 = vadd.f32 %v3183, 1e-06
        %v3192 = vrsqrt.pop %v3184
        %v3193 = vmul.f32 %v3192, %v3184
        %v3194 = vmul.f32 %v3193, %v3192
        %v3195 = vmul.f32 0.5, %v3194
        %v3196 = vsub.f32 1.5, %v3195
        %v3197 = vmul.f32 %v3192, %v3196
        %vm3198 = vweird.f32 %v3184
        %vm3199 = vweird.f32 %v3192
        %vm3200 = vmor %vm3198, %vm3199
        %v3201 = vsel %vm3200, %v3192, %v3197
        %v3202 = vrsqrt.pop %v3185
        %v3203 = vmul.f32 %v3202, %v3185
        %v3204 = vmul.f32 %v3203, %v3202
        %v3205 = vmul.f32 0.5, %v3204
        %v3206 = vsub.f32 1.5, %v3205
        %v3207 = vmul.f32 %v3202, %v3206
        %vm3208 = vweird.f32 %v3185
        %vm3209 = vweird.f32 %v3202
        %vm3210 = vmor %vm3208, %vm3209
        %v3211 = vsel %vm3210, %v3202, %v3207
        %v3212 = vrsqrt.pop %v3186
        %v3213 = vmul.f32 %v3212, %v3186
        %v3214 = vmul.f32 %v3213, %v3212
        %v3215 = vmul.f32 0.5, %v3214
        %v3216 = vsub.f32 1.5, %v3215
        %v3217 = vmul.f32 %v3212, %v3216
        %vm3218 = vweird.f32 %v3186
        %vm3219 = vweird.f32 %v3212
        %vm3220 = vmor %vm3218, %vm3219
        %v3221 = vsel %vm3220, %v3212, %v3217
        %v3222 = vrsqrt.pop %v3187
        %v3223 = vmul.f32 %v3222, %v3187
        %v3224 = vmul.f32 %v3223, %v3222
        %v3225 = vmul.f32 0.5, %v3224
        %v3226 = vsub.f32 1.5, %v3225
        %v3227 = vmul.f32 %v3222, %v3226
        %vm3228 = vweird.f32 %v3187
        %vm3229 = vweird.f32 %v3222
        %vm3230 = vmor %vm3228, %vm3229
        %v3231 = vsel %vm3230, %v3222, %v3227
        %v3232 = vrsqrt.pop %v3188
        %v3233 = vmul.f32 %v3232, %v3188
        %v3234 = vmul.f32 %v3233, %v3232
        %v3235 = vmul.f32 0.5, %v3234
        %v3236 = vsub.f32 1.5, %v3235
        %v3237 = vmul.f32 %v3232, %v3236
        %vm3238 = vweird.f32 %v3188
        %vm3239 = vweird.f32 %v3232
        %vm3240 = vmor %vm3238, %vm3239
        %v3241 = vsel %vm3240, %v3232, %v3237
        %v3242 = vrsqrt.pop %v3189
        %v3243 = vmul.f32 %v3242, %v3189
        %v3244 = vmul.f32 %v3243, %v3242
        %v3245 = vmul.f32 0.5, %v3244
        %v3246 = vsub.f32 1.5, %v3245
        %v3247 = vmul.f32 %v3242, %v3246
        %vm3248 = vweird.f32 %v3189
        %vm3249 = vweird.f32 %v3242
        %vm3250 = vmor %vm3248, %vm3249
        %v3251 = vsel %vm3250, %v3242, %v3247
        %v3252 = vrsqrt.pop %v3190
        %v3253 = vmul.f32 %v3252, %v3190
        %v3254 = vmul.f32 %v3253, %v3252
        %v3255 = vmul.f32 0.5, %v3254
        %v3256 = vsub.f32 1.5, %v3255
        %v3257 = vmul.f32 %v3252, %v3256
        %vm3258 = vweird.f32 %v3190
        %vm3259 = vweird.f32 %v3252
        %vm3260 = vmor %vm3258, %vm3259
        %v3261 = vsel %vm3260, %v3252, %v3257
        %v3262 = vrsqrt.pop %v3191
        %v3263 = vmul.f32 %v3262, %v3191
        %v3264 = vmul.f32 %v3263, %v3262
        %v3265 = vmul.f32 0.5, %v3264
        %v3266 = vsub.f32 1.5, %v3265
        %v3267 = vmul.f32 %v3262, %v3266
        %vm3268 = vweird.f32 %v3191
        %vm3269 = vweird.f32 %v3262
        %vm3270 = vmor %vm3268, %vm3269
        %v3271 = vsel %vm3270, %v3262, %v3267
        %v3272 = vmul.f32 %v3136, %v3201
        %v3273 = vmul.f32 %v3137, %v3211
        %v3274 = vmul.f32 %v3138, %v3221
        %v3275 = vmul.f32 %v3139, %v3231
        %v3276 = vmul.f32 %v3140, %v3241
        %v3277 = vmul.f32 %v3141, %v3251
        %v3278 = vmul.f32 %v3142, %v3261
        %v3279 = vmul.f32 %v3143, %v3271
        %v3280 = vperm.slane %v3102, 0
        %v3281 = vmul.f32 %v3272, %v3280
        %v3282 = vmul.f32 %v3273, %v3280
        %v3283 = vmul.f32 %v3274, %v3280
        %v3284 = vmul.f32 %v3275, %v3280
        %v3285 = vmul.f32 %v3276, %v3280
        %v3286 = vmul.f32 %v3277, %v3280
        %v3287 = vmul.f32 %v3278, %v3280
        %v3288 = vmul.f32 %v3279, %v3280
        %v3289 = vperm.slane %v3103, 0
        %v3290 = vadd.f32 %v3281, %v3289
        %v3291 = vadd.f32 %v3282, %v3289
        %v3292 = vadd.f32 %v3283, %v3289
        %v3293 = vadd.f32 %v3284, %v3289
        %v3294 = vadd.f32 %v3285, %v3289
        %v3295 = vadd.f32 %v3286, %v3289
        %v3296 = vadd.f32 %v3287, %v3289
        %v3297 = vadd.f32 %v3288, %v3289
        %v3298 = vpack.c.bf16 %v3291, %v3290
        %v3299 = vpack.c.bf16 %v3293, %v3292
        %v3300 = vpack.c.bf16 %v3295, %v3294
        %v3301 = vpack.c.bf16 %v3297, %v3296
        %v3302 = vld [vmem:[%s5] sm:$0xf]
        %v3303 = vld [vmem:[%s5 + $0x4] sm:$0xf]
        %v3304 = vld [vmem:[%s5 + $0x8] sm:$0xf]
        %v3305 = vld [vmem:[%s5 + $0xc] sm:$0xf]
        %v3306 = vld [vmem:[%s6] sm:$0x1]
        %v3308 = vperm.slane %v3306, 0
        %v3314 = vunpack.c.l.b16 %v3302
        %v3315 = vunpack.c.l.b16 %v3303
        %v3316 = vunpack.c.l.b16 %v3304
        %v3317 = vunpack.c.l.b16 %v3305
        %v3318 = vpack.c.b16 %v3315, %v3314
        %v3319 = vpack.c.b16 %v3317, %v3316
        %v3323 = vsel %vm382, %v3298, 0
        %v3326 = vsel %vm382, %v3299, 0
        %v3329 = vsel %vm382, %v3300, 0
        %v3332 = vsel %vm382, %v3301, 0
        %3334 = vmatpush.bf16.msra.mxu0 0
        %3335 = vmatpush.bf16.msra.mxu0 0
        %3336 = vmatpush.bf16.msra.mxu0 0
        %3337 = vmatpush.bf16.msra.mxu0 0
        %3338 = vmatpush.bf16.msra.mxu0 0
        %3339 = vmatpush.bf16.msra.mxu0 0
        %3340 = vmatpush.bf16.msra.mxu0 %v3319
        %3341 = vmatpush.bf16.msra.mxu0 %v3318
        %3342 = vmatmul.bf16.gmra.mxu0 %v3323
        %v3343 = vpop.f32.mrf.mxu0
        %v3344 = vadd.f32 %v3308, %v3343
        %v3345 = vpop.f32.mrf.mxu0
        %v3346 = vadd.f32 %v3308, %v3345
        %3347 = vmatmul.bf16.gmra.mxu0 %v3326
        %v3348 = vpop.f32.mrf.mxu0
        %v3349 = vadd.f32 %v3308, %v3348
        %v3350 = vpop.f32.mrf.mxu0
        %v3351 = vadd.f32 %v3308, %v3350
        %3352 = vmatmul.bf16.gmra.mxu0 %v3329
        %v3353 = vpop.f32.mrf.mxu0
        %v3354 = vadd.f32 %v3308, %v3353
        %v3355 = vpop.f32.mrf.mxu0
        %v3356 = vadd.f32 %v3308, %v3355
        %3357 = vmatmul.bf16.gmra.mxu0 %v3332
        %v3358 = vpop.f32.mrf.mxu0
        %v3359 = vadd.f32 %v3308, %v3358
        %v3360 = vpop.f32.mrf.mxu0
        %v3361 = vadd.f32 %v3308, %v3360
        %3362 = vdwg.mxu0
        %v3363 = vmul.f32 %v3344, 0.5
        %v3364 = vmul.f32 %v3346, 0.5
        %v3365 = vmul.f32 %v3349, 0.5
        %v3366 = vmul.f32 %v3351, 0.5
        %v3367 = vmul.f32 %v3354, 0.5
        %v3368 = vmul.f32 %v3356, 0.5
        %v3369 = vmul.f32 %v3359, 0.5
        %v3370 = vmul.f32 %v3361, 0.5
        %v3371 = vmul.f32 %v3344, 0.70710677
        %v3372 = vmul.f32 %v3346, 0.70710677
        %v3373 = vmul.f32 %v3349, 0.70710677
        %v3374 = vmul.f32 %v3351, 0.70710677
        %v3375 = vmul.f32 %v3354, 0.70710677
        %v3376 = vmul.f32 %v3356, 0.70710677
        %v3377 = vmul.f32 %v3359, 0.70710677
        %v3378 = vmul.f32 %v3361, 0.70710677
        %v3379 = vmul.f32 %v3371, %v3371
        %v3380 = vmin.f32 16.0, %v3379
        %v3381 = vmul.f32 %v3380, 2.1237322e-06
        %v3382 = vadd.f32 %v3381, 0.00028619796
        %v3383 = vmul.f32 %v3380, %v3382
        %v3384 = vadd.f32 %v3383, 0.0036580483
        %v3385 = vmul.f32 %v3380, %v3384
        %v3386 = vadd.f32 %v3385, 0.05243302
        %v3387 = vmul.f32 %v3380, %v3386
        %v3388 = vadd.f32 %v3387, 0.18741608
        %v3389 = vmul.f32 %v3380, %v3388
        %v3390 = vadd.f32 %v3389, 1.1283791
        %v3391 = vmul.f32 %v3371, %v3390
        %v3392 = vmul.f32 %v3380, 3.8918573e-05
        %v3393 = vadd.f32 %v3392, 0.001143296
        %v3394 = vmul.f32 %v3380, %v3393
        %v3395 = vadd.f32 %v3394, 0.014752088
        %v3396 = vmul.f32 %v3380, %v3395
        %v3397 = vadd.f32 %v3396, 0.112945676
        %v3398 = vmul.f32 %v3380, %v3397
        %v3399 = vadd.f32 %v3398, 0.4994258
        %v3400 = vmul.f32 %v3380, %v3399
        %v3401 = vadd.f32 %v3400, 1.0
        %v3402 = vrcp.pop %v3401
        %v3403 = vmul.f32 %v3401, %v3402
        %v3404 = vsub.f32 1.0, %v3403
        %v3405 = vmul.f32 %v3402, %v3404
        %v3406 = vadd.f32 %v3402, %v3405
        %vm3407 = vweird.f32 %v3401
        %vm3408 = vweird.f32 %v3402
        %vm3409 = vmor %vm3407, %vm3408
        %v3410 = vsel %vm3409, %v3402, %v3406
        %v3411 = vand.u32 2147483647, %v3401
        %vm3412 = vcmp.eq.f32.partialorder %v3411, 8.507059e+37
        %v3413 = vand.u32 %v3401, 2147483648
        %v3414 = vor.u32 1.1754944e-38, %v3413
        %v3415 = vsel %vm3412, %v3414, %v3410
        %v3416 = vmul.f32 %v3391, %v3415
        %v3417 = vmin.f32 %v3416, 1.0
        %v3418 = vmax.f32 %v3417, -1.0
        %v3419 = vmul.f32 %v3372, %v3372
        %v3420 = vmin.f32 16.0, %v3419
        %v3421 = vmul.f32 %v3420, 2.1237322e-06
        %v3422 = vadd.f32 %v3421, 0.00028619796
        %v3423 = vmul.f32 %v3420, %v3422
        %v3424 = vadd.f32 %v3423, 0.0036580483
        %v3425 = vmul.f32 %v3420, %v3424
        %v3426 = vadd.f32 %v3425, 0.05243302
        %v3427 = vmul.f32 %v3420, %v3426
        %v3428 = vadd.f32 %v3427, 0.18741608
        %v3429 = vmul.f32 %v3420, %v3428
        %v3430 = vadd.f32 %v3429, 1.1283791
        %v3431 = vmul.f32 %v3372, %v3430
        %v3432 = vmul.f32 %v3420, 3.8918573e-05
        %v3433 = vadd.f32 %v3432, 0.001143296
        %v3434 = vmul.f32 %v3420, %v3433
        %v3435 = vadd.f32 %v3434, 0.014752088
        %v3436 = vmul.f32 %v3420, %v3435
        %v3437 = vadd.f32 %v3436, 0.112945676
        %v3438 = vmul.f32 %v3420, %v3437
        %v3439 = vadd.f32 %v3438, 0.4994258
        %v3440 = vmul.f32 %v3420, %v3439
        %v3441 = vadd.f32 %v3440, 1.0
        %v3442 = vrcp.pop %v3441
        %v3443 = vmul.f32 %v3441, %v3442
        %v3444 = vsub.f32 1.0, %v3443
        %v3445 = vmul.f32 %v3442, %v3444
        %v3446 = vadd.f32 %v3442, %v3445
        %vm3447 = vweird.f32 %v3441
        %vm3448 = vweird.f32 %v3442
        %vm3449 = vmor %vm3447, %vm3448
        %v3450 = vsel %vm3449, %v3442, %v3446
        %v3451 = vand.u32 2147483647, %v3441
        %vm3452 = vcmp.eq.f32.partialorder %v3451, 8.507059e+37
        %v3453 = vand.u32 %v3441, 2147483648
        %v3454 = vor.u32 1.1754944e-38, %v3453
        %v3455 = vsel %vm3452, %v3454, %v3450
        %v3456 = vmul.f32 %v3431, %v3455
        %v3457 = vmin.f32 %v3456, 1.0
        %v3458 = vmax.f32 %v3457, -1.0
        %v3459 = vmul.f32 %v3373, %v3373
        %v3460 = vmin.f32 16.0, %v3459
        %v3461 = vmul.f32 %v3460, 2.1237322e-06
        %v3462 = vadd.f32 %v3461, 0.00028619796
        %v3463 = vmul.f32 %v3460, %v3462
        %v3464 = vadd.f32 %v3463, 0.0036580483
        %v3465 = vmul.f32 %v3460, %v3464
        %v3466 = vadd.f32 %v3465, 0.05243302
        %v3467 = vmul.f32 %v3460, %v3466
        %v3468 = vadd.f32 %v3467, 0.18741608
        %v3469 = vmul.f32 %v3460, %v3468
        %v3470 = vadd.f32 %v3469, 1.1283791
        %v3471 = vmul.f32 %v3373, %v3470
        %v3472 = vmul.f32 %v3460, 3.8918573e-05
        %v3473 = vadd.f32 %v3472, 0.001143296
        %v3474 = vmul.f32 %v3460, %v3473
        %v3475 = vadd.f32 %v3474, 0.014752088
        %v3476 = vmul.f32 %v3460, %v3475
        %v3477 = vadd.f32 %v3476, 0.112945676
        %v3478 = vmul.f32 %v3460, %v3477
        %v3479 = vadd.f32 %v3478, 0.4994258
        %v3480 = vmul.f32 %v3460, %v3479
        %v3481 = vadd.f32 %v3480, 1.0
        %v3482 = vrcp.pop %v3481
        %v3483 = vmul.f32 %v3481, %v3482
        %v3484 = vsub.f32 1.0, %v3483
        %v3485 = vmul.f32 %v3482, %v3484
        %v3486 = vadd.f32 %v3482, %v3485
        %vm3487 = vweird.f32 %v3481
        %vm3488 = vweird.f32 %v3482
        %vm3489 = vmor %vm3487, %vm3488
        %v3490 = vsel %vm3489, %v3482, %v3486
        %v3491 = vand.u32 2147483647, %v3481
        %vm3492 = vcmp.eq.f32.partialorder %v3491, 8.507059e+37
        %v3493 = vand.u32 %v3481, 2147483648
        %v3494 = vor.u32 1.1754944e-38, %v3493
        %v3495 = vsel %vm3492, %v3494, %v3490
        %v3496 = vmul.f32 %v3471, %v3495
        %v3497 = vmin.f32 %v3496, 1.0
        %v3498 = vmax.f32 %v3497, -1.0
        %v3499 = vmul.f32 %v3374, %v3374
        %v3500 = vmin.f32 16.0, %v3499
        %v3501 = vmul.f32 %v3500, 2.1237322e-06
        %v3502 = vadd.f32 %v3501, 0.00028619796
        %v3503 = vmul.f32 %v3500, %v3502
        %v3504 = vadd.f32 %v3503, 0.0036580483
        %v3505 = vmul.f32 %v3500, %v3504
        %v3506 = vadd.f32 %v3505, 0.05243302
        %v3507 = vmul.f32 %v3500, %v3506
        %v3508 = vadd.f32 %v3507, 0.18741608
        %v3509 = vmul.f32 %v3500, %v3508
        %v3510 = vadd.f32 %v3509, 1.1283791
        %v3511 = vmul.f32 %v3374, %v3510
        %v3512 = vmul.f32 %v3500, 3.8918573e-05
        %v3513 = vadd.f32 %v3512, 0.001143296
        %v3514 = vmul.f32 %v3500, %v3513
        %v3515 = vadd.f32 %v3514, 0.014752088
        %v3516 = vmul.f32 %v3500, %v3515
        %v3517 = vadd.f32 %v3516, 0.112945676
        %v3518 = vmul.f32 %v3500, %v3517
        %v3519 = vadd.f32 %v3518, 0.4994258
        %v3520 = vmul.f32 %v3500, %v3519
        %v3521 = vadd.f32 %v3520, 1.0
        %v3522 = vrcp.pop %v3521
        %v3523 = vmul.f32 %v3521, %v3522
        %v3524 = vsub.f32 1.0, %v3523
        %v3525 = vmul.f32 %v3522, %v3524
        %v3526 = vadd.f32 %v3522, %v3525
        %vm3527 = vweird.f32 %v3521
        %vm3528 = vweird.f32 %v3522
        %vm3529 = vmor %vm3527, %vm3528
        %v3530 = vsel %vm3529, %v3522, %v3526
        %v3531 = vand.u32 2147483647, %v3521
        %vm3532 = vcmp.eq.f32.partialorder %v3531, 8.507059e+37
        %v3533 = vand.u32 %v3521, 2147483648
        %v3534 = vor.u32 1.1754944e-38, %v3533
        %v3535 = vsel %vm3532, %v3534, %v3530
        %v3536 = vmul.f32 %v3511, %v3535
        %v3537 = vmin.f32 %v3536, 1.0
        %v3538 = vmax.f32 %v3537, -1.0
        %v3539 = vmul.f32 %v3375, %v3375
        %v3540 = vmin.f32 16.0, %v3539
        %v3541 = vmul.f32 %v3540, 2.1237322e-06
        %v3542 = vadd.f32 %v3541, 0.00028619796
        %v3543 = vmul.f32 %v3540, %v3542
        %v3544 = vadd.f32 %v3543, 0.0036580483
        %v3545 = vmul.f32 %v3540, %v3544
        %v3546 = vadd.f32 %v3545, 0.05243302
        %v3547 = vmul.f32 %v3540, %v3546
        %v3548 = vadd.f32 %v3547, 0.18741608
        %v3549 = vmul.f32 %v3540, %v3548
        %v3550 = vadd.f32 %v3549, 1.1283791
        %v3551 = vmul.f32 %v3375, %v3550
        %v3552 = vmul.f32 %v3540, 3.8918573e-05
        %v3553 = vadd.f32 %v3552, 0.001143296
        %v3554 = vmul.f32 %v3540, %v3553
        %v3555 = vadd.f32 %v3554, 0.014752088
        %v3556 = vmul.f32 %v3540, %v3555
        %v3557 = vadd.f32 %v3556, 0.112945676
        %v3558 = vmul.f32 %v3540, %v3557
        %v3559 = vadd.f32 %v3558, 0.4994258
        %v3560 = vmul.f32 %v3540, %v3559
        %v3561 = vadd.f32 %v3560, 1.0
        %v3562 = vrcp.pop %v3561
        %v3563 = vmul.f32 %v3561, %v3562
        %v3564 = vsub.f32 1.0, %v3563
        %v3565 = vmul.f32 %v3562, %v3564
        %v3566 = vadd.f32 %v3562, %v3565
        %vm3567 = vweird.f32 %v3561
        %vm3568 = vweird.f32 %v3562
        %vm3569 = vmor %vm3567, %vm3568
        %v3570 = vsel %vm3569, %v3562, %v3566
        %v3571 = vand.u32 2147483647, %v3561
        %vm3572 = vcmp.eq.f32.partialorder %v3571, 8.507059e+37
        %v3573 = vand.u32 %v3561, 2147483648
        %v3574 = vor.u32 1.1754944e-38, %v3573
        %v3575 = vsel %vm3572, %v3574, %v3570
        %v3576 = vmul.f32 %v3551, %v3575
        %v3577 = vmin.f32 %v3576, 1.0
        %v3578 = vmax.f32 %v3577, -1.0
        %v3579 = vmul.f32 %v3376, %v3376
        %v3580 = vmin.f32 16.0, %v3579
        %v3581 = vmul.f32 %v3580, 2.1237322e-06
        %v3582 = vadd.f32 %v3581, 0.00028619796
        %v3583 = vmul.f32 %v3580, %v3582
        %v3584 = vadd.f32 %v3583, 0.0036580483
        %v3585 = vmul.f32 %v3580, %v3584
        %v3586 = vadd.f32 %v3585, 0.05243302
        %v3587 = vmul.f32 %v3580, %v3586
        %v3588 = vadd.f32 %v3587, 0.18741608
        %v3589 = vmul.f32 %v3580, %v3588
        %v3590 = vadd.f32 %v3589, 1.1283791
        %v3591 = vmul.f32 %v3376, %v3590
        %v3592 = vmul.f32 %v3580, 3.8918573e-05
        %v3593 = vadd.f32 %v3592, 0.001143296
        %v3594 = vmul.f32 %v3580, %v3593
        %v3595 = vadd.f32 %v3594, 0.014752088
        %v3596 = vmul.f32 %v3580, %v3595
        %v3597 = vadd.f32 %v3596, 0.112945676
        %v3598 = vmul.f32 %v3580, %v3597
        %v3599 = vadd.f32 %v3598, 0.4994258
        %v3600 = vmul.f32 %v3580, %v3599
        %v3601 = vadd.f32 %v3600, 1.0
        %v3602 = vrcp.pop %v3601
        %v3603 = vmul.f32 %v3601, %v3602
        %v3604 = vsub.f32 1.0, %v3603
        %v3605 = vmul.f32 %v3602, %v3604
        %v3606 = vadd.f32 %v3602, %v3605
        %vm3607 = vweird.f32 %v3601
        %vm3608 = vweird.f32 %v3602
        %vm3609 = vmor %vm3607, %vm3608
        %v3610 = vsel %vm3609, %v3602, %v3606
        %v3611 = vand.u32 2147483647, %v3601
        %vm3612 = vcmp.eq.f32.partialorder %v3611, 8.507059e+37
        %v3613 = vand.u32 %v3601, 2147483648
        %v3614 = vor.u32 1.1754944e-38, %v3613
        %v3615 = vsel %vm3612, %v3614, %v3610
        %v3616 = vmul.f32 %v3591, %v3615
        %v3617 = vmin.f32 %v3616, 1.0
        %v3618 = vmax.f32 %v3617, -1.0
        %v3619 = vmul.f32 %v3377, %v3377
        %v3620 = vmin.f32 16.0, %v3619
        %v3621 = vmul.f32 %v3620, 2.1237322e-06
        %v3622 = vadd.f32 %v3621, 0.00028619796
        %v3623 = vmul.f32 %v3620, %v3622
        %v3624 = vadd.f32 %v3623, 0.0036580483
        %v3625 = vmul.f32 %v3620, %v3624
        %v3626 = vadd.f32 %v3625, 0.05243302
        %v3627 = vmul.f32 %v3620, %v3626
        %v3628 = vadd.f32 %v3627, 0.18741608
        %v3629 = vmul.f32 %v3620, %v3628
        %v3630 = vadd.f32 %v3629, 1.1283791
        %v3631 = vmul.f32 %v3377, %v3630
        %v3632 = vmul.f32 %v3620, 3.8918573e-05
        %v3633 = vadd.f32 %v3632, 0.001143296
        %v3634 = vmul.f32 %v3620, %v3633
        %v3635 = vadd.f32 %v3634, 0.014752088
        %v3636 = vmul.f32 %v3620, %v3635
        %v3637 = vadd.f32 %v3636, 0.112945676
        %v3638 = vmul.f32 %v3620, %v3637
        %v3639 = vadd.f32 %v3638, 0.4994258
        %v3640 = vmul.f32 %v3620, %v3639
        %v3641 = vadd.f32 %v3640, 1.0
        %v3642 = vrcp.pop %v3641
        %v3643 = vmul.f32 %v3641, %v3642
        %v3644 = vsub.f32 1.0, %v3643
        %v3645 = vmul.f32 %v3642, %v3644
        %v3646 = vadd.f32 %v3642, %v3645
        %vm3647 = vweird.f32 %v3641
        %vm3648 = vweird.f32 %v3642
        %vm3649 = vmor %vm3647, %vm3648
        %v3650 = vsel %vm3649, %v3642, %v3646
        %v3651 = vand.u32 2147483647, %v3641
        %vm3652 = vcmp.eq.f32.partialorder %v3651, 8.507059e+37
        %v3653 = vand.u32 %v3641, 2147483648
        %v3654 = vor.u32 1.1754944e-38, %v3653
        %v3655 = vsel %vm3652, %v3654, %v3650
        %v3656 = vmul.f32 %v3631, %v3655
        %v3657 = vmin.f32 %v3656, 1.0
        %v3658 = vmax.f32 %v3657, -1.0
        %v3659 = vmul.f32 %v3378, %v3378
        %v3660 = vmin.f32 16.0, %v3659
        %v3661 = vmul.f32 %v3660, 2.1237322e-06
        %v3662 = vadd.f32 %v3661, 0.00028619796
        %v3663 = vmul.f32 %v3660, %v3662
        %v3664 = vadd.f32 %v3663, 0.0036580483
        %v3665 = vmul.f32 %v3660, %v3664
        %v3666 = vadd.f32 %v3665, 0.05243302
        %v3667 = vmul.f32 %v3660, %v3666
        %v3668 = vadd.f32 %v3667, 0.18741608
        %v3669 = vmul.f32 %v3660, %v3668
        %v3670 = vadd.f32 %v3669, 1.1283791
        %v3671 = vmul.f32 %v3378, %v3670
        %v3672 = vmul.f32 %v3660, 3.8918573e-05
        %v3673 = vadd.f32 %v3672, 0.001143296
        %v3674 = vmul.f32 %v3660, %v3673
        %v3675 = vadd.f32 %v3674, 0.014752088
        %v3676 = vmul.f32 %v3660, %v3675
        %v3677 = vadd.f32 %v3676, 0.112945676
        %v3678 = vmul.f32 %v3660, %v3677
        %v3679 = vadd.f32 %v3678, 0.4994258
        %v3680 = vmul.f32 %v3660, %v3679
        %v3681 = vadd.f32 %v3680, 1.0
        %v3682 = vrcp.pop %v3681
        %v3683 = vmul.f32 %v3681, %v3682
        %v3684 = vsub.f32 1.0, %v3683
        %v3685 = vmul.f32 %v3682, %v3684
        %v3686 = vadd.f32 %v3682, %v3685
        %vm3687 = vweird.f32 %v3681
        %vm3688 = vweird.f32 %v3682
        %vm3689 = vmor %vm3687, %vm3688
        %v3690 = vsel %vm3689, %v3682, %v3686
        %v3691 = vand.u32 2147483647, %v3681
        %vm3692 = vcmp.eq.f32.partialorder %v3691, 8.507059e+37
        %v3693 = vand.u32 %v3681, 2147483648
        %v3694 = vor.u32 1.1754944e-38, %v3693
        %v3695 = vsel %vm3692, %v3694, %v3690
        %v3696 = vmul.f32 %v3671, %v3695
        %v3697 = vmin.f32 %v3696, 1.0
        %v3698 = vmax.f32 %v3697, -1.0
        %v3699 = vadd.f32 %v3418, 1.0
        %v3700 = vadd.f32 %v3458, 1.0
        %v3701 = vadd.f32 %v3498, 1.0
        %v3702 = vadd.f32 %v3538, 1.0
        %v3703 = vadd.f32 %v3578, 1.0
        %v3704 = vadd.f32 %v3618, 1.0
        %v3705 = vadd.f32 %v3658, 1.0
        %v3706 = vadd.f32 %v3698, 1.0
        %v3707 = vmul.f32 %v3363, %v3699
        %v3708 = vmul.f32 %v3364, %v3700
        %v3709 = vmul.f32 %v3365, %v3701
        %v3710 = vmul.f32 %v3366, %v3702
        %v3711 = vmul.f32 %v3367, %v3703
        %v3712 = vmul.f32 %v3368, %v3704
        %v3713 = vmul.f32 %v3369, %v3705
        %v3714 = vmul.f32 %v3370, %v3706
        %v3715 = vpack.c.bf16 %v3708, %v3707
        %v3716 = vpack.c.bf16 %v3710, %v3709
        %v3717 = vpack.c.bf16 %v3712, %v3711
        %v3718 = vpack.c.bf16 %v3714, %v3713
        %v3719 = vld [vmem:[%s7] sm:$0xf]
        %v3720 = vld [vmem:[%s7 + $0x4] sm:$0xf]
        %v3721 = vld [vmem:[%s7 + $0x8] sm:$0xf]
        %v3722 = vld [vmem:[%s7 + $0xc] sm:$0xf]
        %v3723 = vld [vmem:[%s7 + $0x10] sm:$0xf]
        %v3724 = vld [vmem:[%s7 + $0x14] sm:$0xf]
        %v3725 = vld [vmem:[%s7 + $0x18] sm:$0xf]
        %v3726 = vld [vmem:[%s7 + $0x1c] sm:$0xf]
        %v3727 = vld [vmem:[%s7 + $0x20] sm:$0xf]
        %v3728 = vld [vmem:[%s7 + $0x24] sm:$0xf]
        %v3729 = vld [vmem:[%s7 + $0x28] sm:$0xf]
        %v3730 = vld [vmem:[%s7 + $0x2c] sm:$0xf]
        %v3731 = vld [vmem:[%s7 + $0x30] sm:$0xf]
        %v3732 = vld [vmem:[%s7 + $0x34] sm:$0xf]
        %v3733 = vld [vmem:[%s7 + $0x38] sm:$0xf]
        %v3734 = vld [vmem:[%s7 + $0x3c] sm:$0xf]
        %v3735 = vld [vmem:[%s8 + $0x11] sm:$0x1]
        %v3736 = vperm.slane %v3735, 0
        %v3753 = vunpack.c.l.b16 %v3719
        %v3754 = vunpack.c.l.b16 %v3720
        %v3755 = vunpack.c.l.b16 %v3721
        %v3756 = vunpack.c.l.b16 %v3722
        %v3757 = vunpack.c.l.b16 %v3723
        %v3758 = vunpack.c.l.b16 %v3724
        %v3759 = vunpack.c.l.b16 %v3725
        %v3760 = vunpack.c.l.b16 %v3726
        %v3761 = vunpack.c.l.b16 %v3727
        %v3762 = vunpack.c.l.b16 %v3728
        %v3763 = vunpack.c.l.b16 %v3729
        %v3764 = vunpack.c.l.b16 %v3730
        %v3765 = vunpack.c.l.b16 %v3731
        %v3766 = vunpack.c.l.b16 %v3732
        %v3767 = vunpack.c.l.b16 %v3733
        %v3768 = vunpack.c.l.b16 %v3734
        %v3769 = vpack.c.b16 %v3754, %v3753
        %v3770 = vpack.c.b16 %v3756, %v3755
        %v3771 = vpack.c.b16 %v3758, %v3757
        %v3772 = vpack.c.b16 %v3760, %v3759
        %v3773 = vpack.c.b16 %v3762, %v3761
        %v3774 = vpack.c.b16 %v3764, %v3763
        %v3775 = vpack.c.b16 %v3766, %v3765
        %v3776 = vpack.c.b16 %v3768, %v3767
        %3785 = vmatpush.bf16.msra.mxu0 %v3776
        %3786 = vmatpush.bf16.msra.mxu0 %v3775
        %3787 = vmatpush.bf16.msra.mxu0 %v3774
        %3788 = vmatpush.bf16.msra.mxu0 %v3773
        %3789 = vmatpush.bf16.msra.mxu0 %v3772
        %3790 = vmatpush.bf16.msra.mxu0 %v3771
        %3791 = vmatpush.bf16.msra.mxu0 %v3770
        %3792 = vmatpush.bf16.msra.mxu0 %v3769
        %3793 = vmatmul.bf16.gmra.mxu0 %v3715
        %v3794 = vpop.f32.mrf.mxu0
        %v3795 = vadd.f32 %v3736, %v3794
        %v3796 = vpop.f32.mrf.mxu0
        %v3797 = vadd.f32 %v3736, %v3796
        %3798 = vmatmul.bf16.gmra.mxu0 %v3716
        %v3799 = vpop.f32.mrf.mxu0
        %v3800 = vadd.f32 %v3736, %v3799
        %v3801 = vpop.f32.mrf.mxu0
        %v3802 = vadd.f32 %v3736, %v3801
        %3803 = vmatmul.bf16.gmra.mxu0 %v3717
        %v3804 = vpop.f32.mrf.mxu0
        %v3805 = vadd.f32 %v3736, %v3804
        %v3806 = vpop.f32.mrf.mxu0
        %v3807 = vadd.f32 %v3736, %v3806
        %3808 = vmatmul.bf16.gmra.mxu0 %v3718
        %v3809 = vpop.f32.mrf.mxu0
        %v3810 = vadd.f32 %v3736, %v3809
        %v3811 = vpop.f32.mrf.mxu0
        %v3812 = vadd.f32 %v3736, %v3811
        %3813 = vdwg.mxu0
        %v3814 = vadd.f32 %v3094, %v3795
        %v3815 = vadd.f32 %v3095, %v3797
        %v3816 = vadd.f32 %v3096, %v3800
        %v3817 = vadd.f32 %v3097, %v3802
        %v3818 = vadd.f32 %v3098, %v3805
        %v3819 = vadd.f32 %v3099, %v3807
        %v3820 = vadd.f32 %v3100, %v3810
        %v3821 = vadd.f32 %v3101, %v3812
        %3822 = vst.msk [vmem:[%s370] sm:$0xff] %vm382, %v3814
        %3823 = vst.msk [vmem:[%s370 + $0x8] sm:$0xff] %vm382, %v3815
        %3824 = vst.msk [vmem:[%s370 + $0x10] sm:$0xff] %vm382, %v3816
        %3825 = vst.msk [vmem:[%s370 + $0x18] sm:$0xff] %vm382, %v3817
        %3826 = vst.msk [vmem:[%s370 + $0x20] sm:$0xff] %vm382, %v3818
        %3827 = vst.msk [vmem:[%s370 + $0x28] sm:$0xff] %vm382, %v3819
        %3828 = vst.msk [vmem:[%s370 + $0x30] sm:$0xff] %vm382, %v3820
        %3829 = vst.msk [vmem:[%s370 + $0x38] sm:$0xff] %vm382, %v3821
        %p3830 = scmp.lt.s32.totalorder %s25, 1
        %s3831 = scalar_select %p3830, %s25, 1
        %s3832 = smul.addr %s3831, 8
        %s3833 = smul.addr %s3832, 8
        %s3834 = scalar_lea.vmem %s9, %s3833
        %s3835 = sand.u32 %s253, 1
        %s3836 = scalar_lea.sflag [#allocation4], %s3835
        %s3837 = sand.u32 %s253, 1
        %s3838 = smul.addr %s3837, 64
        %s3839 = scalar_lea.vmem [#allocation3], %s3838
        // Predicated region
        $region57: #{tpu_custom_call.1} parent=55 // pred_check
          %p3840 = pneg %p237
        $region58: #{tpu_custom_call.1} parent=55 // pred_check_branch
          %3842 = sbr.rel (%p3840) target = $region60
        $region59: #{tpu_custom_call.1} parent=55 // pred_region
          _
        $region60: #{tpu_custom_call.1} parent=55 // pred_fallthru
          _
        // Predicated region
        $region61: #{tpu_custom_call.1} parent=55 // pred_check
          %p3843 = pneg %p263
        $region62: #{tpu_custom_call.1} parent=55 // pred_check_branch
          %3845 = sbr.rel (%p3843) target = $region64
        $region63: #{tpu_custom_call.1} parent=55 // pred_region
          %3847 = vsyncadd %s3836, 0
          %s3848 = smul.addr %s25, 16
          %s3849 = smul.addr %s3848, 4
          %s3850 = scalar_lea.hbm %s10, %s3849
          %s3851 = sshll.u32 %s3839, 4
          %s3852 = int_to_ptr.vmem [resolvable:$true] %s3851
          %s3853 = sshll.u32 %s3850, 4
          %s3854 = int_to_ptr.hbm [resolvable:$true] %s3853
          %3859 = dma.vmem_to_hbm [thread:$0]  %s3852, 1024, %s3854, %s3836, 128, 128, 8
        $region64: #{tpu_custom_call.1} parent=55 // pred_fallthru
          _
      $region56: #{tpu_custom_call.1} parent=5 // pred_fallthru
        _
      %p3860 = scmp.le.s32.totalorder 2, %s20
      // Predicated region
      $region65: #{tpu_custom_call.1} parent=5 // pred_check
        %p3861 = pneg %p3860
      $region66: #{tpu_custom_call.1} parent=5 // pred_check_branch
        %3863 = sbr.rel (%p3861) target = $region68
      $region67: #{tpu_custom_call.1} parent=5 // pred_region
        %s3864 = ssub.s32 %s20, 2
        // Predicated region
        $region69: #{tpu_custom_call.1} parent=67 // pred_check
          %p3865 = pneg %p243
        $region70: #{tpu_custom_call.1} parent=67 // pred_check_branch
          %3867 = sbr.rel (%p3865) target = $region72
        $region71: #{tpu_custom_call.1} parent=67 // pred_region
          %p3868 = scmp.lt.s32.totalorder %s26, 1
          %s3869 = scalar_select %p3868, %s26, 1
          %s3870 = smul.addr %s3869, 8
          %s3871 = smul.addr %s3870, 8
          %s3872 = scalar_lea.vmem %s9, %s3871
        $region72: #{tpu_custom_call.1} parent=67 // pred_fallthru
          _
        // Predicated region
        $region73: #{tpu_custom_call.1} parent=67 // pred_check
          %p3873 = pneg %p269
        $region74: #{tpu_custom_call.1} parent=67 // pred_check_branch
          %3875 = sbr.rel (%p3873) target = $region76
        $region75: #{tpu_custom_call.1} parent=67 // pred_region
          %s3876 = sand.u32 %s254, 1
          %s3877 = scalar_lea.sflag [#allocation4], %s3876
          %s3878 = sand.u32 %s254, 1
          %s3879 = smul.addr %s3878, 64
          %s3880 = scalar_lea.vmem [#allocation3], %s3879
          %3882 = dma.done %s3877, 1024
        $region76: #{tpu_custom_call.1} parent=67 // pred_fallthru
          _
      $region68: #{tpu_custom_call.1} parent=5 // pred_fallthru
        _
    $region6: #{tpu_custom_call.1} parent=1 // loop_footer
      %s24 = sadd.s32 1, %s20
    $region7: #{tpu_custom_call.1} parent=1 // loop_footer_branch
      %19 = sbr.rel target = $region3
    $region8: #{tpu_custom_call.1} parent=1 // loop_exit
      _
    %3883 = vsyncpa [#allocation4], 1
    %s3884 = scalar_lea.sflag [#allocation4], 1
    %3885 = vsyncpa %s3884, 1

</llo_original>
